<compile_context>
chip_gen: v5e
topology: v5e:2x2
jax: 0.10.0
libtpu: 0.0.40
codegen_flags: <defaults>
</compile_context>

<pallas_src>
import functools
import math

import jax
import jax.numpy as jnp
from jax.experimental import pallas as pl
from jax.experimental.pallas import tpu as pltpu


def _round_up(x, m):
    return ((x + m - 1) // m) * m


# -----------------------------------------------------------------------------
# Kernel A: per-batch fused ModulateMLP weights (style + demodulation folded)
# -----------------------------------------------------------------------------
def _modulation_kernel(*refs, num_layers, num_groups, eps, gain):
    n_in = 5 + 4 * (num_layers - 1) + 8
    in_refs, out_refs = refs[:n_in], refs[n_in:]

    it = iter(in_refs)
    wp_ref = next(it)           # [num_ws, bs, w_dim]
    a0_ref = next(it)           # [G, w_dim, 3]   style affine (wscale folded), grouped
    sb0_ref = next(it)          # [G, 1, 3]       style bias (init 1.0)
    w0g_ref = next(it)          # [G, C, 3]       raw conv weight, grouped
    w0gsqT_ref = next(it)       # [G, 3, C]       (W^2)^T, grouped
    mids = [(next(it), next(it), next(it), next(it))
            for _ in range(num_layers - 1)]        # a (w_dim,C), sb (1,C), w (C,C), wsqT (C,C)
    acfx_ref = next(it)         # [w_dim, C]
    sbcfx_ref = next(it)        # [1, C]
    wcfx_ref = next(it)         # [C, C]
    wcfxsqT_ref = next(it)      # [C, C]
    acfd_ref = next(it)         # [w_dim, 3]
    sbcfd_ref = next(it)        # [1, 3]
    wcfd_ref = next(it)         # [C, 3]
    wcfdsqT_ref = next(it)      # [3, C]

    ot = iter(out_refs)
    wf0_out = next(ot)          # [G, bs, C, 3]
    mid_outs = [next(ot) for _ in range(num_layers - 1)]   # [bs, C, C]
    wfcfx_out = next(ot)        # [bs, C, C]
    wfcfd_out = next(ot)        # [bs, C, 3]

    f32 = jnp.float32

    # ---- layer 0 (positional-embedding ModulateMLP), grouped -----------------
    w_lat = wp_ref[0].astype(f32)                                  # [bs, w_dim]
    s_list = []
    dec = None
    for g in range(num_groups):
        s_g = jnp.dot(w_lat, a0_ref[g], preferred_element_type=f32) + sb0_ref[g]
        s_list.append(s_g)                                         # [bs, 3]
        contrib = jnp.dot(s_g * s_g, w0gsqT_ref[g], preferred_element_type=f32)
        dec = contrib if dec is None else dec + contrib
    dec = jax.lax.rsqrt(dec + eps)                                 # [bs, C]
    for g in range(num_groups):
        wf0_out[g] = (dec[:, :, None] * w0g_ref[g][None, :, :]
                      * s_list[g][:, None, :])                     # [bs, C, 3]

    # ---- middle ModulateMLP layers (consume previous layer's lrelu gain) -----
    for i in range(num_layers - 1):
        a_ref, sb_ref, w_ref, wsqT_ref = mids[i]
        w_lat = wp_ref[i + 1].astype(f32)
        s = jnp.dot(w_lat, a_ref[...], preferred_element_type=f32) + sb_ref[...]
        dec = jax.lax.rsqrt(
            jnp.dot(s * s, wsqT_ref[...], preferred_element_type=f32) + eps)
        mid_outs[i][...] = (dec[:, :, None] * w_ref[...][None, :, :]
                            * s[:, None, :]) * gain                # [bs, C, C]

    # ---- color film (input = [features | dirs], weight pre-split) ------------
    w_lat = wp_ref[num_layers].astype(f32)
    s_x = jnp.dot(w_lat, acfx_ref[...], preferred_element_type=f32) + sbcfx_ref[...]
    s_d = jnp.dot(w_lat, acfd_ref[...], preferred_element_type=f32) + sbcfd_ref[...]
    dec = jax.lax.rsqrt(
        jnp.dot(s_x * s_x, wcfxsqT_ref[...], preferred_element_type=f32)
        + jnp.dot(s_d * s_d, wcfdsqT_ref[...], preferred_element_type=f32) + eps)
    # x-part consumes the last mlp layer's deferred lrelu gain; dirs do not.
    wfcfx_out[...] = (dec[:, :, None] * wcfx_ref[...][None, :, :]
                      * s_x[:, None, :]) * gain                    # [bs, C, C]
    wfcfd_out[...] = (dec[:, :, None] * wcfd_ref[...][None, :, :]
                      * s_d[:, None, :])                           # [bs, C, 3]


# -----------------------------------------------------------------------------
# Kernel B: per-point MLP stack, channel-first / point-on-lane layout.
# grid = (batch, point_tiles); activations are [C, T] with T on the lane axis.
# -----------------------------------------------------------------------------
def _points_kernel(*refs, num_layers, num_groups, freqs):
    n_in = 4 + 2 * (num_layers - 1) + 7
    in_refs, out_refs = refs[:n_in], refs[n_in:]

    it = iter(in_refs)
    pts_ref = next(it)          # (1, 3, T)
    dirs_ref = next(it)         # (1, 3, T)
    wf0_ref = next(it)          # (G, 1, C, 3)  fused layer-0 weight (this batch)
    b0_ref = next(it)           # (C, 1)
    mids = [(next(it), next(it)) for _ in range(num_layers - 1)]  # (1,C,C), (C,1)
    wfx_ref = next(it)          # (1, C, C)     fused color-film x-weight
    wfd_ref = next(it)          # (1, C, 3)     fused color-film dirs-weight
    bcf_ref = next(it)          # (C, 1)
    wsig_ref = next(it)         # (1, C)        wscale * gain folded
    bsig_ref = next(it)         # (1, 1)
    wcol_ref = next(it)         # (fd, C)       wscale * gain folded
    bcol_ref = next(it)         # (fd, 1)
    sig_out, rgb_out = out_refs # (1, 1, T), (1, fd, T)

    f32 = jnp.float32
    pts = pts_ref[0]            # [3, T]
    dirs = dirs_ref[0]          # [3, T]

    # ---- layer 0: fused weight over the positional embedding (concat-free) ---
    y = jnp.dot(wf0_ref[0, 0], pts, preferred_element_type=f32)    # [C, T]
    for g in range(1, num_groups):
        k = (g - 1) // 2
        scaled = pts * freqs[k]
        feat = jnp.sin(scaled) if (g - 1) % 2 == 0 else jnp.cos(scaled)
        y = y + jnp.dot(wf0_ref[g, 0], feat, preferred_element_type=f32)
    y = y + b0_ref[...]
    y = jnp.maximum(y, 0.2 * y)                 # lrelu; gain folded downstream

    # ---- remaining ModulateMLP layers (pure matmul + bias + lrelu) -----------
    for wf_ref, b_ref in mids:
        y = jnp.dot(wf_ref[0], y, preferred_element_type=f32) + b_ref[...]
        y = jnp.maximum(y, 0.2 * y)

    # ---- sigma head (lane-dense [1, T] store) ---------------------------------
    sig_out[0] = jnp.dot(wsig_ref[...], y, preferred_element_type=f32) + bsig_ref[...]

    # ---- color film: [features | dirs] via split fused weights ----------------
    ycf = (jnp.dot(wfx_ref[0], y, preferred_element_type=f32)
           + jnp.dot(wfd_ref[0], dirs, preferred_element_type=f32)
           + bcf_ref[...])
    ycf = jnp.maximum(ycf, 0.2 * ycf)

    # ---- color head (lane-dense [fd, T] store) ---------------------------------
    rgb_out[0] = jnp.dot(wcol_ref[...], ycf, preferred_element_type=f32) + bcol_ref[...]


# -----------------------------------------------------------------------------
# Parameters (raw = torch-equivalent params, prep = build-time folded/split)
# -----------------------------------------------------------------------------
def build_params(key, cfg):
    w_dim, C, fd = cfg["w_dim"], cfg["out_channels"], cfg["feature_dim"]
    F, nl = cfg["num_freqs"], cfg["num_layers"]
    emb = 3 * (1 + 2 * F)
    in_dims = [emb] + [C] * (nl - 1)
    keys = iter(jax.random.split(key, 2 * nl + 4))

    raw = {}
    for i, ind in enumerate(in_dims):                       # ModulateMLP layers
        raw[f"w{i}"] = jax.random.normal(next(keys), (C, ind), jnp.float32)
        raw[f"b{i}"] = jnp.zeros((C,), jnp.float32)
        raw[f"sw{i}"] = jax.random.normal(next(keys), (ind, w_dim), jnp.float32)
        raw[f"sb{i}"] = jnp.ones((ind,), jnp.float32)       # init_bias = 1.0
    cf_in = C + 3                                           # color_film ([x|dirs])
    raw["wcf"] = jax.random.normal(next(keys), (C, cf_in), jnp.float32)
    raw["bcf"] = jnp.zeros((C,), jnp.float32)
    raw["swcf"] = jax.random.normal(next(keys), (cf_in, w_dim), jnp.float32)
    raw["sbcf"] = jnp.ones((cf_in,), jnp.float32)
    raw["wsig"] = jax.random.normal(next(keys), (1, C), jnp.float32)    # sigma head
    raw["bsig"] = jnp.zeros((1,), jnp.float32)
    raw["wcol"] = jax.random.normal(next(keys), (fd, C), jnp.float32)   # color head
    raw["bcol"] = jnp.zeros((fd,), jnp.float32)
    return raw


def prepare_params(raw, cfg):
    w_dim, C, fd = cfg["w_dim"], cfg["out_channels"], cfg["feature_dim"]
    F, nl = cfg["num_freqs"], cfg["num_layers"]
    G = 1 + 2 * F
    s_wscale = 1.0 / math.sqrt(w_dim)      # style DenseLayer wscale (gain=1, lr_mul=1)
    h_wscale = 1.0 / math.sqrt(C)          # head DenseLayer wscale
    gain = math.sqrt(2.0)                  # lrelu def_gain (folded into consumers)

    prep = {}
    # layer 0: grouped layout (identity / sin_k / cos_k groups of 3 channels)
    w0 = raw["w0"]                                              # [C, emb]
    w0g = w0.reshape(C, G, 3).transpose(1, 0, 2)                # [G, C, 3]
    prep["w0_grp"] = w0g
    prep["w0_grp_sqT"] = (w0g ** 2).transpose(0, 2, 1)          # [G, 3, C]
    a0 = (raw["sw0"] * s_wscale).T                              # [w_dim, emb]
    prep["a0_grp"] = a0.reshape(w_dim, G, 3).transpose(1, 0, 2)  # [G, w_dim, 3]
    prep["sb0_grp"] = raw["sb0"].reshape(G, 1, 3)
    prep["b0"] = raw["b0"].reshape(C, 1)
    # middle layers
    for i in range(1, nl):
        prep[f"w{i}"] = raw[f"w{i}"]                            # [C, C]
        prep[f"w{i}_sqT"] = (raw[f"w{i}"] ** 2).T
        prep[f"a{i}"] = (raw[f"sw{i}"] * s_wscale).T            # [w_dim, C]
        prep[f"sb{i}"] = raw[f"sb{i}"].reshape(1, C)
        prep[f"b{i}"] = raw[f"b{i}"].reshape(C, 1)
    # color film split into [features | dirs] column blocks
    prep["wcf_x"] = raw["wcf"][:, :C]                           # [C, C]
    prep["wcf_x_sqT"] = (raw["wcf"][:, :C] ** 2).T
    prep["wcf_d"] = raw["wcf"][:, C:]                           # [C, 3]
    prep["wcf_d_sqT"] = (raw["wcf"][:, C:] ** 2).T              # [3, C]
    acf = (raw["swcf"] * s_wscale).T                            # [w_dim, C+3]
    prep["acf_x"] = acf[:, :C]
    prep["acf_d"] = acf[:, C:]
    prep["sbcf_x"] = raw["sbcf"][:C].reshape(1, C)
    prep["sbcf_d"] = raw["sbcf"][C:].reshape(1, 3)
    prep["bcf"] = raw["bcf"].reshape(C, 1)
    # heads: wscale + deferred lrelu gain of their input folded at build time
    prep["wsig"] = raw["wsig"] * h_wscale * gain                # [1, C]
    prep["bsig"] = raw["bsig"].reshape(1, 1)
    prep["wcol"] = raw["wcol"] * h_wscale * gain                # [fd, C]
    prep["bcol"] = raw["bcol"].reshape(fd, 1)
    return prep


# -----------------------------------------------------------------------------
# Wrapper
# -----------------------------------------------------------------------------
def _run_modulation(wp_t, prep, cfg, bs):
    nl, C = cfg["num_layers"], cfg["out_channels"]
    G = 1 + 2 * cfg["num_freqs"]
    gain = math.sqrt(2.0)

    inputs = [wp_t, prep["a0_grp"], prep["sb0_grp"], prep["w0_grp"],
              prep["w0_grp_sqT"]]
    for i in range(1, nl):
        inputs += [prep[f"a{i}"], prep[f"sb{i}"], prep[f"w{i}"], prep[f"w{i}_sqT"]]
    inputs += [prep["acf_x"], prep["sbcf_x"], prep["wcf_x"], prep["wcf_x_sqT"],
               prep["acf_d"], prep["sbcf_d"], prep["wcf_d"], prep["wcf_d_sqT"]]

    out_shape = [jax.ShapeDtypeStruct((G, bs, C, 3), jnp.float32)]
    for _ in range(1, nl):
        out_shape.append(jax.ShapeDtypeStruct((bs, C, C), jnp.float32))
    out_shape += [jax.ShapeDtypeStruct((bs, C, C), jnp.float32),
                  jax.ShapeDtypeStruct((bs, C, 3), jnp.float32)]

    kernel = functools.partial(_modulation_kernel, num_layers=nl,
                               num_groups=G, eps=cfg["eps"], gain=gain)
    return pl.pallas_call(
        kernel,
        out_shape=tuple(out_shape),
        in_specs=[pl.BlockSpec(memory_space=pltpu.MemorySpace.VMEM)] * len(inputs),
        out_specs=tuple(pl.BlockSpec(memory_space=pltpu.MemorySpace.VMEM)
                        for _ in out_shape),
    )(*inputs)


def _run_points(p, d, fused, prep, cfg, bs, lp, tile):
    nl, C, fd = cfg["num_layers"], cfg["out_channels"], cfg["feature_dim"]
    G = 1 + 2 * cfg["num_freqs"]
    wf0 = fused[0]                                  # (G, bs, C, 3)
    wf_mid = fused[1:nl]                            # (nl-1) x (bs, C, C)
    wfcf_x, wfcf_d = fused[nl], fused[nl + 1]

    pts_map = lambda b, t: (b, 0, t)
    per_batch3 = lambda b, t: (b, 0, 0)
    const2 = lambda b, t: (0, 0)

    inputs = [p, d, wf0, prep["b0"]]
    in_specs = [pl.BlockSpec((1, 3, tile), pts_map),
                pl.BlockSpec((1, 3, tile), pts_map),
                pl.BlockSpec((G, 1, C, 3), lambda b, t: (0, b, 0, 0)),
                pl.BlockSpec((C, 1), const2)]
    for i in range(1, nl):
        inputs += [wf_mid[i - 1], prep[f"b{i}"]]
        in_specs += [pl.BlockSpec((1, C, C), per_batch3),
                     pl.BlockSpec((C, 1), const2)]
    inputs += [wfcf_x, wfcf_d, prep["bcf"],
               prep["wsig"], prep["bsig"], prep["wcol"], prep["bcol"]]
    in_specs += [pl.BlockSpec((1, C, C), per_batch3),
                 pl.BlockSpec((1, C, 3), per_batch3),
                 pl.BlockSpec((C, 1), const2),
                 pl.BlockSpec((1, C), const2),
                 pl.BlockSpec((1, 1), const2),
                 pl.BlockSpec((fd, C), const2),
                 pl.BlockSpec((fd, 1), const2)]

    out_shape = (jax.ShapeDtypeStruct((bs, 1, lp), jnp.float32),
                 jax.ShapeDtypeStruct((bs, fd, lp), jnp.float32))
    out_specs = (pl.BlockSpec((1, 1, tile), pts_map),
                 pl.BlockSpec((1, fd, tile), pts_map))

    kernel = functools.partial(_points_kernel, num_layers=nl, num_groups=G,
                               freqs=tuple(cfg["freq_bands"]))
    return pl.pallas_call(
        kernel,
        grid=(bs, lp // tile),
        out_shape=out_shape,
        in_specs=in_specs,
        out_specs=out_specs,
        compiler_params=pltpu.CompilerParams(
            dimension_semantics=("parallel", "parallel")),
    )(*inputs)


def synthesis_forward(wp, pts, dirs, prep, cfg, tile=512):
    """pts: [bs, N, D, 3], dirs: [bs, N, 3], wp: [bs, num_layers+1, w_dim]."""
    assert tile % 128 == 0
    bs, n, d_samp, _ = pts.shape
    fd = cfg["feature_dim"]
    length = n * d_samp

    p = pts.reshape(bs, length, 3)
    d = jnp.broadcast_to(dirs[:, :, None, :], pts.shape).reshape(bs, length, 3)
    # channel-first: point axis on lanes inside the kernel
    p = jnp.transpose(p, (0, 2, 1)).astype(jnp.float32)    # [bs, 3, L]
    d = jnp.transpose(d, (0, 2, 1)).astype(jnp.float32)

    tile_eff = max(128, min(tile, _round_up(length, 128)))
    lp = _round_up(length, tile_eff)
    if lp != length:
        p = jnp.pad(p, ((0, 0), (0, 0), (0, lp - length)))
        d = jnp.pad(d, ((0, 0), (0, 0), (0, lp - length)))

    wp_t = jnp.transpose(wp, (1, 0, 2)).astype(jnp.float32)   # [num_ws, bs, w_dim]
    fused = _run_modulation(wp_t, prep, cfg, bs)
    sigma, rgb = _run_points(p, d, fused, prep, cfg, bs, lp, tile_eff)

    sigma = sigma[:, 0, :length].reshape(bs, n, d_samp, 1)
    rgb = jnp.transpose(rgb[:, :, :length], (0, 2, 1)).reshape(bs, n, d_samp, fd)
    return {"sigma": sigma, "rgb": rgb}


# -----------------------------------------------------------------------------
# Pure-JAX reference (uses the RAW parameters + full torch formulas)
# -----------------------------------------------------------------------------
def synthesis_forward_ref(wp, pts, dirs, raw, cfg):
    eps, nl = cfg["eps"], cfg["num_layers"]
    C, w_dim, fd = cfg["out_channels"], cfg["w_dim"], cfg["feature_dim"]
    bs, n, d_samp, _ = pts.shape
    length = n * d_samp
    p = pts.reshape(bs, length, 3).astype(jnp.float32)
    de = jnp.broadcast_to(dirs[:, :, None, :], pts.shape).reshape(bs, length, 3)
    de = de.astype(jnp.float32)

    feats = [p]
    for f in cfg["freq_bands"]:
        feats += [jnp.sin(p * f), jnp.cos(p * f)]
    x = jnp.concatenate(feats, axis=-1)

    s_wscale = 1.0 / math.sqrt(w_dim)
    gain = math.sqrt(2.0)

    def modulate_mlp(x, w_lat, weight, bias, sw, sb):
        style = w_lat @ (sw.T * s_wscale) + sb                     # [bs, in]
        xm = x * style[:, None, :]
        y = jnp.einsum("blc,oc->blo", xm, weight)
        dec = jax.lax.rsqrt(
            jnp.sum((weight[None, :, :] * style[:, None, :]) ** 2, axis=-1) + eps)
        y = y * dec[:, None, :]
        return jax.nn.leaky_relu(y + bias, 0.2) * gain

    for i in range(nl):
        x = modulate_mlp(x, wp[:, i, :], raw[f"w{i}"], raw[f"b{i}"],
                         raw[f"sw{i}"], raw[f"sb{i}"])
    h_wscale = 1.0 / math.sqrt(C)
    sigma = jnp.einsum("blc,oc->blo", x, raw["wsig"] * h_wscale) + raw["bsig"]
    dcat = jnp.concatenate([x, de], axis=-1)
    c = modulate_mlp(dcat, wp[:, nl, :], raw["wcf"], raw["bcf"],
                     raw["swcf"], raw["sbcf"])
    rgb = jnp.einsum("blc,oc->blo", c, raw["wcol"] * h_wscale) + raw["bcol"]
    return sigma.reshape(bs, n, d_samp, 1), rgb.reshape(bs, n, d_samp, fd)


# -----------------------------------------------------------------------------
if __name__ == "__main__":
    cfg = dict(
        w_dim=32,
        out_channels=32,
        num_layers=2,
        feature_dim=3,
        num_freqs=4,
        max_freq_log2=3.0,
        eps=1e-8,
        use_dirs=True,
    )
    nf = cfg["num_freqs"]
    if nf > 1:
        cfg["freq_bands"] = [2.0 ** (cfg["max_freq_log2"] * i / (nf - 1))
                             for i in range(nf)]
    else:
        cfg["freq_bands"] = [1.0]

    key = jax.random.PRNGKey(0)
    kp, kw, kpts, kdirs = jax.random.split(key, 4)
    raw = build_params(kp, cfg)
    prep = prepare_params(raw, cfg)

    bs, n_rays, n_samples = 2, 8, 32                 # 256 points per batch
    wp = jax.random.normal(kw, (bs, cfg["num_layers"] + 1, cfg["w_dim"]),
                           jnp.float32)
    pts = jax.random.uniform(kpts, (bs, n_rays, n_samples, 3), jnp.float32,
                             -1.0, 1.0)
    dirs = jax.random.normal(kdirs, (bs, n_rays, 3), jnp.float32)
    dirs = dirs / jnp.linalg.norm(dirs, axis=-1, keepdims=True)

    fwd = jax.jit(lambda wp_, pts_, dirs_:
                  synthesis_forward(wp_, pts_, dirs_, prep, cfg, tile=512))
    out = fwd(wp, pts, dirs)
    jax.block_until_ready(out["sigma"])
    jax.block_until_ready(out["rgb"])

    sig_ref, rgb_ref = synthesis_forward_ref(wp, pts, dirs, raw, cfg)
    assert out["sigma"].shape == (bs, n_rays, n_samples, 1)
    assert out["rgb"].shape == (bs, n_rays, n_samples, cfg["feature_dim"])
    assert jnp.allclose(out["sigma"], sig_ref, rtol=2e-3, atol=2e-3), \
        float(jnp.max(jnp.abs(out["sigma"] - sig_ref)))
    assert jnp.allclose(out["rgb"], rgb_ref, rtol=2e-3, atol=2e-3), \
        float(jnp.max(jnp.abs(out["rgb"] - rgb_ref)))

    print("KERNEL_OK")
</pallas_src>

<mosaic_0001>
module attributes {stable_mosaic.version = 11 : i64} {
  func.func @_points_kernel(%arg0: i32, %arg1: i32, %arg2: memref<1x3x256xf32, #tpu.memory_space<vmem>>, %arg3: memref<1x3x256xf32, #tpu.memory_space<vmem>>, %arg4: memref<9x1x32x3xf32, #tpu.memory_space<vmem>>, %arg5: memref<32x1xf32, #tpu.memory_space<vmem>>, %arg6: memref<1x32x32xf32, #tpu.memory_space<vmem>>, %arg7: memref<32x1xf32, #tpu.memory_space<vmem>>, %arg8: memref<1x32x32xf32, #tpu.memory_space<vmem>>, %arg9: memref<1x32x3xf32, #tpu.memory_space<vmem>>, %arg10: memref<32x1xf32, #tpu.memory_space<vmem>>, %arg11: memref<1x32xf32, #tpu.memory_space<vmem>>, %arg12: memref<1x1xf32, #tpu.memory_space<vmem>>, %arg13: memref<3x32xf32, #tpu.memory_space<vmem>>, %arg14: memref<3x1xf32, #tpu.memory_space<vmem>>, %arg15: memref<1x1x256xf32, #tpu.memory_space<vmem>>, %arg16: memref<1x3x256xf32, #tpu.memory_space<vmem>>) attributes {dimension_semantics = [#tpu.dimension_semantics<parallel>, #tpu.dimension_semantics<parallel>], iteration_bounds = array<i64: 2, 1>, scalar_prefetch = 0 : i64, scratch_operands = 0 : i64, tpu.core_type = #tpu.core_type<tc>, window_params = [{transform_indices = @transform_0, window_bounds = array<i64: 1, 3, 256>}, {transform_indices = @transform_1, window_bounds = array<i64: 1, 3, 256>}, {transform_indices = @transform_2, window_bounds = array<i64: 9, 1, 32, 3>}, {pipeline_mode = #tpu.pipeline_mode<synchronous>, transform_indices = @transform_3, window_bounds = array<i64: 32, 1>}, {transform_indices = @transform_4, window_bounds = array<i64: 1, 32, 32>}, {pipeline_mode = #tpu.pipeline_mode<synchronous>, transform_indices = @transform_5, window_bounds = array<i64: 32, 1>}, {transform_indices = @transform_6, window_bounds = array<i64: 1, 32, 32>}, {transform_indices = @transform_7, window_bounds = array<i64: 1, 32, 3>}, {pipeline_mode = #tpu.pipeline_mode<synchronous>, transform_indices = @transform_8, window_bounds = array<i64: 32, 1>}, {pipeline_mode = #tpu.pipeline_mode<synchronous>, transform_indices = @transform_9, window_bounds = array<i64: 1, 32>}, {pipeline_mode = #tpu.pipeline_mode<synchronous>, transform_indices = @transform_10, window_bounds = array<i64: 1, 1>}, {pipeline_mode = #tpu.pipeline_mode<synchronous>, transform_indices = @transform_11, window_bounds = array<i64: 3, 32>}, {pipeline_mode = #tpu.pipeline_mode<synchronous>, transform_indices = @transform_12, window_bounds = array<i64: 3, 1>}, {transform_indices = @transform_13, window_bounds = array<i64: 1, 1, 256>}, {transform_indices = @transform_14, window_bounds = array<i64: 1, 3, 256>}]} {
    %c0 = arith.constant 0 : index
    %c0_0 = arith.constant 0 : index
    %c0_1 = arith.constant 0 : index
    %0 = vector.load %arg2[%c0, %c0_0, %c0_1] : memref<1x3x256xf32, #tpu.memory_space<vmem>>, vector<1x3x256xf32>
    %1 = vector.shape_cast %0 : vector<1x3x256xf32> to vector<3x256xf32>
    %c0_2 = arith.constant 0 : index
    %c0_3 = arith.constant 0 : index
    %c0_4 = arith.constant 0 : index
    %2 = vector.load %arg3[%c0_2, %c0_3, %c0_4] : memref<1x3x256xf32, #tpu.memory_space<vmem>>, vector<1x3x256xf32>
    %3 = vector.shape_cast %2 : vector<1x3x256xf32> to vector<3x256xf32>
    %c0_5 = arith.constant 0 : index
    %c0_6 = arith.constant 0 : index
    %c0_7 = arith.constant 0 : index
    %c0_8 = arith.constant 0 : index
    %4 = vector.load %arg4[%c0_5, %c0_6, %c0_7, %c0_8] : memref<9x1x32x3xf32, #tpu.memory_space<vmem>>, vector<1x1x32x3xf32>
    %5 = vector.shape_cast %4 : vector<1x1x32x3xf32> to vector<32x3xf32>
    %cst = arith.constant dense<0.000000e+00> : vector<32x256xf32>
    %6 = tpu.matmul %5, %1, %cst {dimension_numbers = #tpu.dot_dimension_numbers<[1], [0], [0], [1], [0, 0, 1, 1], [], []>} : vector<32x3xf32>, vector<3x256xf32>, vector<32x256xf32> -> vector<32x256xf32>
    %cst_9 = arith.constant 1.000000e+00 : f32
    %7 = vector.broadcast %cst_9 : f32 to vector<3x256xf32>
    %8 = arith.mulf %1, %7 : vector<3x256xf32>
    %9 = math.sin %8 : vector<3x256xf32>
    %c1 = arith.constant 1 : index
    %c0_10 = arith.constant 0 : index
    %c0_11 = arith.constant 0 : index
    %c0_12 = arith.constant 0 : index
    %10 = vector.load %arg4[%c1, %c0_10, %c0_11, %c0_12] : memref<9x1x32x3xf32, #tpu.memory_space<vmem>>, vector<1x1x32x3xf32>
    %11 = vector.shape_cast %10 : vector<1x1x32x3xf32> to vector<32x3xf32>
    %cst_13 = arith.constant dense<0.000000e+00> : vector<32x256xf32>
    %12 = tpu.matmul %11, %9, %cst_13 {dimension_numbers = #tpu.dot_dimension_numbers<[1], [0], [0], [1], [0, 0, 1, 1], [], []>} : vector<32x3xf32>, vector<3x256xf32>, vector<32x256xf32> -> vector<32x256xf32>
    %13 = arith.addf %6, %12 : vector<32x256xf32>
    %cst_14 = arith.constant 1.000000e+00 : f32
    %14 = vector.broadcast %cst_14 : f32 to vector<3x256xf32>
    %15 = arith.mulf %1, %14 : vector<3x256xf32>
    %16 = math.cos %15 : vector<3x256xf32>
    %c2 = arith.constant 2 : index
    %c0_15 = arith.constant 0 : index
    %c0_16 = arith.constant 0 : index
    %c0_17 = arith.constant 0 : index
    %17 = vector.load %arg4[%c2, %c0_15, %c0_16, %c0_17] : memref<9x1x32x3xf32, #tpu.memory_space<vmem>>, vector<1x1x32x3xf32>
    %18 = vector.shape_cast %17 : vector<1x1x32x3xf32> to vector<32x3xf32>
    %cst_18 = arith.constant dense<0.000000e+00> : vector<32x256xf32>
    %19 = tpu.matmul %18, %16, %cst_18 {dimension_numbers = #tpu.dot_dimension_numbers<[1], [0], [0], [1], [0, 0, 1, 1], [], []>} : vector<32x3xf32>, vector<3x256xf32>, vector<32x256xf32> -> vector<32x256xf32>
    %20 = arith.addf %13, %19 : vector<32x256xf32>
    %cst_19 = arith.constant 2.000000e+00 : f32
    %21 = vector.broadcast %cst_19 : f32 to vector<3x256xf32>
    %22 = arith.mulf %1, %21 : vector<3x256xf32>
    %23 = math.sin %22 : vector<3x256xf32>
    %c3 = arith.constant 3 : index
    %c0_20 = arith.constant 0 : index
    %c0_21 = arith.constant 0 : index
    %c0_22 = arith.constant 0 : index
    %24 = vector.load %arg4[%c3, %c0_20, %c0_21, %c0_22] : memref<9x1x32x3xf32, #tpu.memory_space<vmem>>, vector<1x1x32x3xf32>
    %25 = vector.shape_cast %24 : vector<1x1x32x3xf32> to vector<32x3xf32>
    %cst_23 = arith.constant dense<0.000000e+00> : vector<32x256xf32>
    %26 = tpu.matmul %25, %23, %cst_23 {dimension_numbers = #tpu.dot_dimension_numbers<[1], [0], [0], [1], [0, 0, 1, 1], [], []>} : vector<32x3xf32>, vector<3x256xf32>, vector<32x256xf32> -> vector<32x256xf32>
    %27 = arith.addf %20, %26 : vector<32x256xf32>
    %cst_24 = arith.constant 2.000000e+00 : f32
    %28 = vector.broadcast %cst_24 : f32 to vector<3x256xf32>
    %29 = arith.mulf %1, %28 : vector<3x256xf32>
    %30 = math.cos %29 : vector<3x256xf32>
    %c4 = arith.constant 4 : index
    %c0_25 = arith.constant 0 : index
    %c0_26 = arith.constant 0 : index
    %c0_27 = arith.constant 0 : index
    %31 = vector.load %arg4[%c4, %c0_25, %c0_26, %c0_27] : memref<9x1x32x3xf32, #tpu.memory_space<vmem>>, vector<1x1x32x3xf32>
    %32 = vector.shape_cast %31 : vector<1x1x32x3xf32> to vector<32x3xf32>
    %cst_28 = arith.constant dense<0.000000e+00> : vector<32x256xf32>
    %33 = tpu.matmul %32, %30, %cst_28 {dimension_numbers = #tpu.dot_dimension_numbers<[1], [0], [0], [1], [0, 0, 1, 1], [], []>} : vector<32x3xf32>, vector<3x256xf32>, vector<32x256xf32> -> vector<32x256xf32>
    %34 = arith.addf %27, %33 : vector<32x256xf32>
    %cst_29 = arith.constant 4.000000e+00 : f32
    %35 = vector.broadcast %cst_29 : f32 to vector<3x256xf32>
    %36 = arith.mulf %1, %35 : vector<3x256xf32>
    %37 = math.sin %36 : vector<3x256xf32>
    %c5 = arith.constant 5 : index
    %c0_30 = arith.constant 0 : index
    %c0_31 = arith.constant 0 : index
    %c0_32 = arith.constant 0 : index
    %38 = vector.load %arg4[%c5, %c0_30, %c0_31, %c0_32] : memref<9x1x32x3xf32, #tpu.memory_space<vmem>>, vector<1x1x32x3xf32>
    %39 = vector.shape_cast %38 : vector<1x1x32x3xf32> to vector<32x3xf32>
    %cst_33 = arith.constant dense<0.000000e+00> : vector<32x256xf32>
    %40 = tpu.matmul %39, %37, %cst_33 {dimension_numbers = #tpu.dot_dimension_numbers<[1], [0], [0], [1], [0, 0, 1, 1], [], []>} : vector<32x3xf32>, vector<3x256xf32>, vector<32x256xf32> -> vector<32x256xf32>
    %41 = arith.addf %34, %40 : vector<32x256xf32>
    %cst_34 = arith.constant 4.000000e+00 : f32
    %42 = vector.broadcast %cst_34 : f32 to vector<3x256xf32>
    %43 = arith.mulf %1, %42 : vector<3x256xf32>
    %44 = math.cos %43 : vector<3x256xf32>
    %c6 = arith.constant 6 : index
    %c0_35 = arith.constant 0 : index
    %c0_36 = arith.constant 0 : index
    %c0_37 = arith.constant 0 : index
    %45 = vector.load %arg4[%c6, %c0_35, %c0_36, %c0_37] : memref<9x1x32x3xf32, #tpu.memory_space<vmem>>, vector<1x1x32x3xf32>
    %46 = vector.shape_cast %45 : vector<1x1x32x3xf32> to vector<32x3xf32>
    %cst_38 = arith.constant dense<0.000000e+00> : vector<32x256xf32>
    %47 = tpu.matmul %46, %44, %cst_38 {dimension_numbers = #tpu.dot_dimension_numbers<[1], [0], [0], [1], [0, 0, 1, 1], [], []>} : vector<32x3xf32>, vector<3x256xf32>, vector<32x256xf32> -> vector<32x256xf32>
    %48 = arith.addf %41, %47 : vector<32x256xf32>
    %cst_39 = arith.constant 8.000000e+00 : f32
    %49 = vector.broadcast %cst_39 : f32 to vector<3x256xf32>
    %50 = arith.mulf %1, %49 : vector<3x256xf32>
    %51 = math.sin %50 : vector<3x256xf32>
    %c7 = arith.constant 7 : index
    %c0_40 = arith.constant 0 : index
    %c0_41 = arith.constant 0 : index
    %c0_42 = arith.constant 0 : index
    %52 = vector.load %arg4[%c7, %c0_40, %c0_41, %c0_42] : memref<9x1x32x3xf32, #tpu.memory_space<vmem>>, vector<1x1x32x3xf32>
    %53 = vector.shape_cast %52 : vector<1x1x32x3xf32> to vector<32x3xf32>
    %cst_43 = arith.constant dense<0.000000e+00> : vector<32x256xf32>
    %54 = tpu.matmul %53, %51, %cst_43 {dimension_numbers = #tpu.dot_dimension_numbers<[1], [0], [0], [1], [0, 0, 1, 1], [], []>} : vector<32x3xf32>, vector<3x256xf32>, vector<32x256xf32> -> vector<32x256xf32>
    %55 = arith.addf %48, %54 : vector<32x256xf32>
    %cst_44 = arith.constant 8.000000e+00 : f32
    %56 = vector.broadcast %cst_44 : f32 to vector<3x256xf32>
    %57 = arith.mulf %1, %56 : vector<3x256xf32>
    %58 = math.cos %57 : vector<3x256xf32>
    %c8 = arith.constant 8 : index
    %c0_45 = arith.constant 0 : index
    %c0_46 = arith.constant 0 : index
    %c0_47 = arith.constant 0 : index
    %59 = vector.load %arg4[%c8, %c0_45, %c0_46, %c0_47] : memref<9x1x32x3xf32, #tpu.memory_space<vmem>>, vector<1x1x32x3xf32>
    %60 = vector.shape_cast %59 : vector<1x1x32x3xf32> to vector<32x3xf32>
    %cst_48 = arith.constant dense<0.000000e+00> : vector<32x256xf32>
    %61 = tpu.matmul %60, %58, %cst_48 {dimension_numbers = #tpu.dot_dimension_numbers<[1], [0], [0], [1], [0, 0, 1, 1], [], []>} : vector<32x3xf32>, vector<3x256xf32>, vector<32x256xf32> -> vector<32x256xf32>
    %62 = arith.addf %55, %61 : vector<32x256xf32>
    %c0_49 = arith.constant 0 : index
    %c0_50 = arith.constant 0 : index
    %63 = vector.load %arg5[%c0_49, %c0_50] : memref<32x1xf32, #tpu.memory_space<vmem>>, vector<32x1xf32>
    %64 = vector.broadcast %63 : vector<32x1xf32> to vector<32x256xf32>
    %65 = arith.addf %62, %64 : vector<32x256xf32>
    %cst_51 = arith.constant 2.000000e-01 : f32
    %66 = vector.broadcast %cst_51 : f32 to vector<32x256xf32>
    %67 = arith.mulf %66, %65 : vector<32x256xf32>
    %68 = arith.maximumf %65, %67 : vector<32x256xf32>
    %c0_52 = arith.constant 0 : index
    %c0_53 = arith.constant 0 : index
    %c0_54 = arith.constant 0 : index
    %69 = vector.load %arg6[%c0_52, %c0_53, %c0_54] : memref<1x32x32xf32, #tpu.memory_space<vmem>>, vector<1x32x32xf32>
    %70 = vector.shape_cast %69 : vector<1x32x32xf32> to vector<32x32xf32>
    %cst_55 = arith.constant dense<0.000000e+00> : vector<32x256xf32>
    %71 = tpu.matmul %70, %68, %cst_55 {dimension_numbers = #tpu.dot_dimension_numbers<[1], [0], [0], [1], [0, 0, 1, 1], [], []>} : vector<32x32xf32>, vector<32x256xf32>, vector<32x256xf32> -> vector<32x256xf32>
    %c0_56 = arith.constant 0 : index
    %c0_57 = arith.constant 0 : index
    %72 = vector.load %arg7[%c0_56, %c0_57] : memref<32x1xf32, #tpu.memory_space<vmem>>, vector<32x1xf32>
    %73 = vector.broadcast %72 : vector<32x1xf32> to vector<32x256xf32>
    %74 = arith.addf %71, %73 : vector<32x256xf32>
    %cst_58 = arith.constant 2.000000e-01 : f32
    %75 = vector.broadcast %cst_58 : f32 to vector<32x256xf32>
    %76 = arith.mulf %75, %74 : vector<32x256xf32>
    %77 = arith.maximumf %74, %76 : vector<32x256xf32>
    %c0_59 = arith.constant 0 : index
    %c0_60 = arith.constant 0 : index
    %78 = vector.load %arg11[%c0_59, %c0_60] : memref<1x32xf32, #tpu.memory_space<vmem>>, vector<1x32xf32>
    %cst_61 = arith.constant dense<0.000000e+00> : vector<1x256xf32>
    %79 = tpu.matmul %78, %77, %cst_61 {dimension_numbers = #tpu.dot_dimension_numbers<[1], [0], [0], [1], [0, 0, 1, 1], [], []>} : vector<1x32xf32>, vector<32x256xf32>, vector<1x256xf32> -> vector<1x256xf32>
    %c0_62 = arith.constant 0 : index
    %c0_63 = arith.constant 0 : index
    %80 = vector.load %arg12[%c0_62, %c0_63] : memref<1x1xf32, #tpu.memory_space<vmem>>, vector<1x1xf32>
    %81 = vector.broadcast %80 : vector<1x1xf32> to vector<1x256xf32>
    %82 = arith.addf %79, %81 : vector<1x256xf32>
    %c0_64 = arith.constant 0 : index
    %c0_65 = arith.constant 0 : index
    %c0_66 = arith.constant 0 : index
    %83 = vector.load %arg15[%c0_64, %c0_65, %c0_66] : memref<1x1x256xf32, #tpu.memory_space<vmem>>, vector<1x1x256xf32>
    %84 = vector.shape_cast %83 : vector<1x1x256xf32> to vector<1x256xf32>
    %85 = vector.shape_cast %82 : vector<1x256xf32> to vector<1x1x256xf32>
    tpu.vector_store %arg15[%c0_64, %c0_65, %c0_66], %85 {strides = array<i32>} : memref<1x1x256xf32, #tpu.memory_space<vmem>>, vector<1x1x256xf32>,
    %c0_67 = arith.constant 0 : index
    %c0_68 = arith.constant 0 : index
    %c0_69 = arith.constant 0 : index
    %86 = vector.load %arg8[%c0_67, %c0_68, %c0_69] : memref<1x32x32xf32, #tpu.memory_space<vmem>>, vector<1x32x32xf32>
    %87 = vector.shape_cast %86 : vector<1x32x32xf32> to vector<32x32xf32>
    %cst_70 = arith.constant dense<0.000000e+00> : vector<32x256xf32>
    %88 = tpu.matmul %87, %77, %cst_70 {dimension_numbers = #tpu.dot_dimension_numbers<[1], [0], [0], [1], [0, 0, 1, 1], [], []>} : vector<32x32xf32>, vector<32x256xf32>, vector<32x256xf32> -> vector<32x256xf32>
    %c0_71 = arith.constant 0 : index
    %c0_72 = arith.constant 0 : index
    %c0_73 = arith.constant 0 : index
    %89 = vector.load %arg9[%c0_71, %c0_72, %c0_73] : memref<1x32x3xf32, #tpu.memory_space<vmem>>, vector<1x32x3xf32>
    %90 = vector.shape_cast %89 : vector<1x32x3xf32> to vector<32x3xf32>
    %cst_74 = arith.constant dense<0.000000e+00> : vector<32x256xf32>
    %91 = tpu.matmul %90, %3, %cst_74 {dimension_numbers = #tpu.dot_dimension_numbers<[1], [0], [0], [1], [0, 0, 1, 1], [], []>} : vector<32x3xf32>, vector<3x256xf32>, vector<32x256xf32> -> vector<32x256xf32>
    %92 = arith.addf %88, %91 : vector<32x256xf32>
    %c0_75 = arith.constant 0 : index
    %c0_76 = arith.constant 0 : index
    %93 = vector.load %arg10[%c0_75, %c0_76] : memref<32x1xf32, #tpu.memory_space<vmem>>, vector<32x1xf32>
    %94 = vector.broadcast %93 : vector<32x1xf32> to vector<32x256xf32>
    %95 = arith.addf %92, %94 : vector<32x256xf32>
    %cst_77 = arith.constant 2.000000e-01 : f32
    %96 = vector.broadcast %cst_77 : f32 to vector<32x256xf32>
    %97 = arith.mulf %96, %95 : vector<32x256xf32>
    %98 = arith.maximumf %95, %97 : vector<32x256xf32>
    %c0_78 = arith.constant 0 : index
    %c0_79 = arith.constant 0 : index
    %99 = vector.load %arg13[%c0_78, %c0_79] : memref<3x32xf32, #tpu.memory_space<vmem>>, vector<3x32xf32>
    %cst_80 = arith.constant dense<0.000000e+00> : vector<3x256xf32>
    %100 = tpu.matmul %99, %98, %cst_80 {dimension_numbers = #tpu.dot_dimension_numbers<[1], [0], [0], [1], [0, 0, 1, 1], [], []>} : vector<3x32xf32>, vector<32x256xf32>, vector<3x256xf32> -> vector<3x256xf32>
    %c0_81 = arith.constant 0 : index
    %c0_82 = arith.constant 0 : index
    %101 = vector.load %arg14[%c0_81, %c0_82] : memref<3x1xf32, #tpu.memory_space<vmem>>, vector<3x1xf32>
    %102 = vector.broadcast %101 : vector<3x1xf32> to vector<3x256xf32>
    %103 = arith.addf %100, %102 : vector<3x256xf32>
    %c0_83 = arith.constant 0 : index
    %c0_84 = arith.constant 0 : index
    %c0_85 = arith.constant 0 : index
    %104 = vector.load %arg16[%c0_83, %c0_84, %c0_85] : memref<1x3x256xf32, #tpu.memory_space<vmem>>, vector<1x3x256xf32>
    %105 = vector.shape_cast %104 : vector<1x3x256xf32> to vector<3x256xf32>
    %106 = vector.shape_cast %103 : vector<3x256xf32> to vector<1x3x256xf32>
    tpu.vector_store %arg16[%c0_83, %c0_84, %c0_85], %106 {strides = array<i32>} : memref<1x3x256xf32, #tpu.memory_space<vmem>>, vector<1x3x256xf32>,
    return
  }
  func.func @transform_0(%arg0: i32, %arg1: i32) -> (i32, i32, i32) {
    %c0_i32 = arith.constant 0 : i32
    %c0_i32_0 = arith.constant 0 : i32
    return %arg0, %c0_i32, %arg1 : i32, i32, i32
  }
  func.func @transform_1(%arg0: i32, %arg1: i32) -> (i32, i32, i32) {
    %c0_i32 = arith.constant 0 : i32
    %c0_i32_0 = arith.constant 0 : i32
    return %arg0, %c0_i32, %arg1 : i32, i32, i32
  }
  func.func @transform_2(%arg0: i32, %arg1: i32) -> (i32, i32, i32, i32) {
    %c0_i32 = arith.constant 0 : i32
    %c0_i32_0 = arith.constant 0 : i32
    %c0_i32_1 = arith.constant 0 : i32
    %c0_i32_2 = arith.constant 0 : i32
    return %c0_i32, %arg0, %c0_i32_0, %c0_i32_1 : i32, i32, i32, i32
  }
  func.func @transform_3(%arg0: i32, %arg1: i32) -> (i32, i32) {
    %c0_i32 = arith.constant 0 : i32
    %c0_i32_0 = arith.constant 0 : i32
    %c0_i32_1 = arith.constant 0 : i32
    return %c0_i32, %c0_i32_0 : i32, i32
  }
  func.func @transform_4(%arg0: i32, %arg1: i32) -> (i32, i32, i32) {
    %c0_i32 = arith.constant 0 : i32
    %c0_i32_0 = arith.constant 0 : i32
    %c0_i32_1 = arith.constant 0 : i32
    return %arg0, %c0_i32, %c0_i32_0 : i32, i32, i32
  }
  func.func @transform_5(%arg0: i32, %arg1: i32) -> (i32, i32) {
    %c0_i32 = arith.constant 0 : i32
    %c0_i32_0 = arith.constant 0 : i32
    %c0_i32_1 = arith.constant 0 : i32
    return %c0_i32, %c0_i32_0 : i32, i32
  }
  func.func @transform_6(%arg0: i32, %arg1: i32) -> (i32, i32, i32) {
    %c0_i32 = arith.constant 0 : i32
    %c0_i32_0 = arith.constant 0 : i32
    %c0_i32_1 = arith.constant 0 : i32
    return %arg0, %c0_i32, %c0_i32_0 : i32, i32, i32
  }
  func.func @transform_7(%arg0: i32, %arg1: i32) -> (i32, i32, i32) {
    %c0_i32 = arith.constant 0 : i32
    %c0_i32_0 = arith.constant 0 : i32
    %c0_i32_1 = arith.constant 0 : i32
    return %arg0, %c0_i32, %c0_i32_0 : i32, i32, i32
  }
  func.func @transform_8(%arg0: i32, %arg1: i32) -> (i32, i32) {
    %c0_i32 = arith.constant 0 : i32
    %c0_i32_0 = arith.constant 0 : i32
    %c0_i32_1 = arith.constant 0 : i32
    return %c0_i32, %c0_i32_0 : i32, i32
  }
  func.func @transform_9(%arg0: i32, %arg1: i32) -> (i32, i32) {
    %c0_i32 = arith.constant 0 : i32
    %c0_i32_0 = arith.constant 0 : i32
    %c0_i32_1 = arith.constant 0 : i32
    return %c0_i32, %c0_i32_0 : i32, i32
  }
  func.func @transform_10(%arg0: i32, %arg1: i32) -> (i32, i32) {
    %c0_i32 = arith.constant 0 : i32
    %c0_i32_0 = arith.constant 0 : i32
    %c0_i32_1 = arith.constant 0 : i32
    return %c0_i32, %c0_i32_0 : i32, i32
  }
  func.func @transform_11(%arg0: i32, %arg1: i32) -> (i32, i32) {
    %c0_i32 = arith.constant 0 : i32
    %c0_i32_0 = arith.constant 0 : i32
    %c0_i32_1 = arith.constant 0 : i32
    return %c0_i32, %c0_i32_0 : i32, i32
  }
  func.func @transform_12(%arg0: i32, %arg1: i32) -> (i32, i32) {
    %c0_i32 = arith.constant 0 : i32
    %c0_i32_0 = arith.constant 0 : i32
    %c0_i32_1 = arith.constant 0 : i32
    return %c0_i32, %c0_i32_0 : i32, i32
  }
  func.func @transform_13(%arg0: i32, %arg1: i32) -> (i32, i32, i32) {
    %c0_i32 = arith.constant 0 : i32
    %c0_i32_0 = arith.constant 0 : i32
    return %arg0, %c0_i32, %arg1 : i32, i32, i32
  }
  func.func @transform_14(%arg0: i32, %arg1: i32) -> (i32, i32, i32) {
    %c0_i32 = arith.constant 0 : i32
    %c0_i32_0 = arith.constant 0 : i32
    return %arg0, %c0_i32, %arg1 : i32, i32, i32
  }
}

module attributes {stable_mosaic.version = 11 : i64} {
  func.func @_modulation_kernel(%arg0: memref<3x2x32xf32, #tpu.memory_space<vmem>>, %arg1: memref<9x32x3xf32, #tpu.memory_space<vmem>>, %arg2: memref<9x1x3xf32, #tpu.memory_space<vmem>>, %arg3: memref<9x32x3xf32, #tpu.memory_space<vmem>>, %arg4: memref<9x3x32xf32, #tpu.memory_space<vmem>>, %arg5: memref<32x32xf32, #tpu.memory_space<vmem>>, %arg6: memref<1x32xf32, #tpu.memory_space<vmem>>, %arg7: memref<32x32xf32, #tpu.memory_space<vmem>>, %arg8: memref<32x32xf32, #tpu.memory_space<vmem>>, %arg9: memref<32x32xf32, #tpu.memory_space<vmem>>, %arg10: memref<1x32xf32, #tpu.memory_space<vmem>>, %arg11: memref<32x32xf32, #tpu.memory_space<vmem>>, %arg12: memref<32x32xf32, #tpu.memory_space<vmem>>, %arg13: memref<32x3xf32, #tpu.memory_space<vmem>>, %arg14: memref<1x3xf32, #tpu.memory_space<vmem>>, %arg15: memref<32x3xf32, #tpu.memory_space<vmem>>, %arg16: memref<3x32xf32, #tpu.memory_space<vmem>>, %arg17: memref<9x2x32x3xf32, #tpu.memory_space<vmem>>, %arg18: memref<2x32x32xf32, #tpu.memory_space<vmem>>, %arg19: memref<2x32x32xf32, #tpu.memory_space<vmem>>, %arg20: memref<2x32x3xf32, #tpu.memory_space<vmem>>) attributes {dimension_semantics = [], scalar_prefetch = 0 : i64, scratch_operands = 0 : i64, tpu.core_type = #tpu.core_type<tc>} {
    %c0 = arith.constant 0 : index
    %c0_0 = arith.constant 0 : index
    %c0_1 = arith.constant 0 : index
    %0 = vector.load %arg0[%c0, %c0_0, %c0_1] : memref<3x2x32xf32, #tpu.memory_space<vmem>>, vector<1x2x32xf32>
    %1 = vector.shape_cast %0 : vector<1x2x32xf32> to vector<2x32xf32>
    %c0_2 = arith.constant 0 : index
    %c0_3 = arith.constant 0 : index
    %c0_4 = arith.constant 0 : index
    %2 = vector.load %arg1[%c0_2, %c0_3, %c0_4] : memref<9x32x3xf32, #tpu.memory_space<vmem>>, vector<1x32x3xf32>
    %3 = vector.shape_cast %2 : vector<1x32x3xf32> to vector<32x3xf32>
    %cst = arith.constant dense<0.000000e+00> : vector<2x3xf32>
    %4 = tpu.matmul %1, %3, %cst {dimension_numbers = #tpu.dot_dimension_numbers<[1], [0], [0], [1], [0, 0, 1, 1], [], []>} : vector<2x32xf32>, vector<32x3xf32>, vector<2x3xf32> -> vector<2x3xf32>
    %c0_5 = arith.constant 0 : index
    %c0_6 = arith.constant 0 : index
    %c0_7 = arith.constant 0 : index
    %5 = vector.load %arg2[%c0_5, %c0_6, %c0_7] : memref<9x1x3xf32, #tpu.memory_space<vmem>>, vector<1x1x3xf32>
    %6 = vector.shape_cast %5 : vector<1x1x3xf32> to vector<1x3xf32>
    %7 = vector.broadcast %6 : vector<1x3xf32> to vector<2x3xf32>
    %8 = arith.addf %4, %7 : vector<2x3xf32>
    %9 = arith.mulf %8, %8 : vector<2x3xf32>
    %c0_8 = arith.constant 0 : index
    %c0_9 = arith.constant 0 : index
    %c0_10 = arith.constant 0 : index
    %10 = vector.load %arg4[%c0_8, %c0_9, %c0_10] : memref<9x3x32xf32, #tpu.memory_space<vmem>>, vector<1x3x32xf32>
    %11 = vector.shape_cast %10 : vector<1x3x32xf32> to vector<3x32xf32>
    %cst_11 = arith.constant dense<0.000000e+00> : vector<2x32xf32>
    %12 = tpu.matmul %9, %11, %cst_11 {dimension_numbers = #tpu.dot_dimension_numbers<[1], [0], [0], [1], [0, 0, 1, 1], [], []>} : vector<2x3xf32>, vector<3x32xf32>, vector<2x32xf32> -> vector<2x32xf32>
    %c1 = arith.constant 1 : index
    %c0_12 = arith.constant 0 : index
    %c0_13 = arith.constant 0 : index
    %13 = vector.load %arg1[%c1, %c0_12, %c0_13] : memref<9x32x3xf32, #tpu.memory_space<vmem>>, vector<1x32x3xf32>
    %14 = vector.shape_cast %13 : vector<1x32x3xf32> to vector<32x3xf32>
    %cst_14 = arith.constant dense<0.000000e+00> : vector<2x3xf32>
    %15 = tpu.matmul %1, %14, %cst_14 {dimension_numbers = #tpu.dot_dimension_numbers<[1], [0], [0], [1], [0, 0, 1, 1], [], []>} : vector<2x32xf32>, vector<32x3xf32>, vector<2x3xf32> -> vector<2x3xf32>
    %c1_15 = arith.constant 1 : index
    %c0_16 = arith.constant 0 : index
    %c0_17 = arith.constant 0 : index
    %16 = vector.load %arg2[%c1_15, %c0_16, %c0_17] : memref<9x1x3xf32, #tpu.memory_space<vmem>>, vector<1x1x3xf32>
    %17 = vector.shape_cast %16 : vector<1x1x3xf32> to vector<1x3xf32>
    %18 = vector.broadcast %17 : vector<1x3xf32> to vector<2x3xf32>
    %19 = arith.addf %15, %18 : vector<2x3xf32>
    %20 = arith.mulf %19, %19 : vector<2x3xf32>
    %c1_18 = arith.constant 1 : index
    %c0_19 = arith.constant 0 : index
    %c0_20 = arith.constant 0 : index
    %21 = vector.load %arg4[%c1_18, %c0_19, %c0_20] : memref<9x3x32xf32, #tpu.memory_space<vmem>>, vector<1x3x32xf32>
    %22 = vector.shape_cast %21 : vector<1x3x32xf32> to vector<3x32xf32>
    %cst_21 = arith.constant dense<0.000000e+00> : vector<2x32xf32>
    %23 = tpu.matmul %20, %22, %cst_21 {dimension_numbers = #tpu.dot_dimension_numbers<[1], [0], [0], [1], [0, 0, 1, 1], [], []>} : vector<2x3xf32>, vector<3x32xf32>, vector<2x32xf32> -> vector<2x32xf32>
    %24 = arith.addf %12, %23 : vector<2x32xf32>
    %c2 = arith.constant 2 : index
    %c0_22 = arith.constant 0 : index
    %c0_23 = arith.constant 0 : index
    %25 = vector.load %arg1[%c2, %c0_22, %c0_23] : memref<9x32x3xf32, #tpu.memory_space<vmem>>, vector<1x32x3xf32>
    %26 = vector.shape_cast %25 : vector<1x32x3xf32> to vector<32x3xf32>
    %cst_24 = arith.constant dense<0.000000e+00> : vector<2x3xf32>
    %27 = tpu.matmul %1, %26, %cst_24 {dimension_numbers = #tpu.dot_dimension_numbers<[1], [0], [0], [1], [0, 0, 1, 1], [], []>} : vector<2x32xf32>, vector<32x3xf32>, vector<2x3xf32> -> vector<2x3xf32>
    %c2_25 = arith.constant 2 : index
    %c0_26 = arith.constant 0 : index
    %c0_27 = arith.constant 0 : index
    %28 = vector.load %arg2[%c2_25, %c0_26, %c0_27] : memref<9x1x3xf32, #tpu.memory_space<vmem>>, vector<1x1x3xf32>
    %29 = vector.shape_cast %28 : vector<1x1x3xf32> to vector<1x3xf32>
    %30 = vector.broadcast %29 : vector<1x3xf32> to vector<2x3xf32>
    %31 = arith.addf %27, %30 : vector<2x3xf32>
    %32 = arith.mulf %31, %31 : vector<2x3xf32>
    %c2_28 = arith.constant 2 : index
    %c0_29 = arith.constant 0 : index
    %c0_30 = arith.constant 0 : index
    %33 = vector.load %arg4[%c2_28, %c0_29, %c0_30] : memref<9x3x32xf32, #tpu.memory_space<vmem>>, vector<1x3x32xf32>
    %34 = vector.shape_cast %33 : vector<1x3x32xf32> to vector<3x32xf32>
    %cst_31 = arith.constant dense<0.000000e+00> : vector<2x32xf32>
    %35 = tpu.matmul %32, %34, %cst_31 {dimension_numbers = #tpu.dot_dimension_numbers<[1], [0], [0], [1], [0, 0, 1, 1], [], []>} : vector<2x3xf32>, vector<3x32xf32>, vector<2x32xf32> -> vector<2x32xf32>
    %36 = arith.addf %24, %35 : vector<2x32xf32>
    %c3 = arith.constant 3 : index
    %c0_32 = arith.constant 0 : index
    %c0_33 = arith.constant 0 : index
    %37 = vector.load %arg1[%c3, %c0_32, %c0_33] : memref<9x32x3xf32, #tpu.memory_space<vmem>>, vector<1x32x3xf32>
    %38 = vector.shape_cast %37 : vector<1x32x3xf32> to vector<32x3xf32>
    %cst_34 = arith.constant dense<0.000000e+00> : vector<2x3xf32>
    %39 = tpu.matmul %1, %38, %cst_34 {dimension_numbers = #tpu.dot_dimension_numbers<[1], [0], [0], [1], [0, 0, 1, 1], [], []>} : vector<2x32xf32>, vector<32x3xf32>, vector<2x3xf32> -> vector<2x3xf32>
    %c3_35 = arith.constant 3 : index
    %c0_36 = arith.constant 0 : index
    %c0_37 = arith.constant 0 : index
    %40 = vector.load %arg2[%c3_35, %c0_36, %c0_37] : memref<9x1x3xf32, #tpu.memory_space<vmem>>, vector<1x1x3xf32>
    %41 = vector.shape_cast %40 : vector<1x1x3xf32> to vector<1x3xf32>
    %42 = vector.broadcast %41 : vector<1x3xf32> to vector<2x3xf32>
    %43 = arith.addf %39, %42 : vector<2x3xf32>
    %44 = arith.mulf %43, %43 : vector<2x3xf32>
    %c3_38 = arith.constant 3 : index
    %c0_39 = arith.constant 0 : index
    %c0_40 = arith.constant 0 : index
    %45 = vector.load %arg4[%c3_38, %c0_39, %c0_40] : memref<9x3x32xf32, #tpu.memory_space<vmem>>, vector<1x3x32xf32>
    %46 = vector.shape_cast %45 : vector<1x3x32xf32> to vector<3x32xf32>
    %cst_41 = arith.constant dense<0.000000e+00> : vector<2x32xf32>
    %47 = tpu.matmul %44, %46, %cst_41 {dimension_numbers = #tpu.dot_dimension_numbers<[1], [0], [0], [1], [0, 0, 1, 1], [], []>} : vector<2x3xf32>, vector<3x32xf32>, vector<2x32xf32> -> vector<2x32xf32>
    %48 = arith.addf %36, %47 : vector<2x32xf32>
    %c4 = arith.constant 4 : index
    %c0_42 = arith.constant 0 : index
    %c0_43 = arith.constant 0 : index
    %49 = vector.load %arg1[%c4, %c0_42, %c0_43] : memref<9x32x3xf32, #tpu.memory_space<vmem>>, vector<1x32x3xf32>
    %50 = vector.shape_cast %49 : vector<1x32x3xf32> to vector<32x3xf32>
    %cst_44 = arith.constant dense<0.000000e+00> : vector<2x3xf32>
    %51 = tpu.matmul %1, %50, %cst_44 {dimension_numbers = #tpu.dot_dimension_numbers<[1], [0], [0], [1], [0, 0, 1, 1], [], []>} : vector<2x32xf32>, vector<32x3xf32>, vector<2x3xf32> -> vector<2x3xf32>
    %c4_45 = arith.constant 4 : index
    %c0_46 = arith.constant 0 : index
    %c0_47 = arith.constant 0 : index
    %52 = vector.load %arg2[%c4_45, %c0_46, %c0_47] : memref<9x1x3xf32, #tpu.memory_space<vmem>>, vector<1x1x3xf32>
    %53 = vector.shape_cast %52 : vector<1x1x3xf32> to vector<1x3xf32>
    %54 = vector.broadcast %53 : vector<1x3xf32> to vector<2x3xf32>
    %55 = arith.addf %51, %54 : vector<2x3xf32>
    %56 = arith.mulf %55, %55 : vector<2x3xf32>
    %c4_48 = arith.constant 4 : index
    %c0_49 = arith.constant 0 : index
    %c0_50 = arith.constant 0 : index
    %57 = vector.load %arg4[%c4_48, %c0_49, %c0_50] : memref<9x3x32xf32, #tpu.memory_space<vmem>>, vector<1x3x32xf32>
    %58 = vector.shape_cast %57 : vector<1x3x32xf32> to vector<3x32xf32>
    %cst_51 = arith.constant dense<0.000000e+00> : vector<2x32xf32>
    %59 = tpu.matmul %56, %58, %cst_51 {dimension_numbers = #tpu.dot_dimension_numbers<[1], [0], [0], [1], [0, 0, 1, 1], [], []>} : vector<2x3xf32>, vector<3x32xf32>, vector<2x32xf32> -> vector<2x32xf32>
    %60 = arith.addf %48, %59 : vector<2x32xf32>
    %c5 = arith.constant 5 : index
    %c0_52 = arith.constant 0 : index
    %c0_53 = arith.constant 0 : index
    %61 = vector.load %arg1[%c5, %c0_52, %c0_53] : memref<9x32x3xf32, #tpu.memory_space<vmem>>, vector<1x32x3xf32>
    %62 = vector.shape_cast %61 : vector<1x32x3xf32> to vector<32x3xf32>
    %cst_54 = arith.constant dense<0.000000e+00> : vector<2x3xf32>
    %63 = tpu.matmul %1, %62, %cst_54 {dimension_numbers = #tpu.dot_dimension_numbers<[1], [0], [0], [1], [0, 0, 1, 1], [], []>} : vector<2x32xf32>, vector<32x3xf32>, vector<2x3xf32> -> vector<2x3xf32>
    %c5_55 = arith.constant 5 : index
    %c0_56 = arith.constant 0 : index
    %c0_57 = arith.constant 0 : index
    %64 = vector.load %arg2[%c5_55, %c0_56, %c0_57] : memref<9x1x3xf32, #tpu.memory_space<vmem>>, vector<1x1x3xf32>
    %65 = vector.shape_cast %64 : vector<1x1x3xf32> to vector<1x3xf32>
    %66 = vector.broadcast %65 : vector<1x3xf32> to vector<2x3xf32>
    %67 = arith.addf %63, %66 : vector<2x3xf32>
    %68 = arith.mulf %67, %67 : vector<2x3xf32>
    %c5_58 = arith.constant 5 : index
    %c0_59 = arith.constant 0 : index
    %c0_60 = arith.constant 0 : index
    %69 = vector.load %arg4[%c5_58, %c0_59, %c0_60] : memref<9x3x32xf32, #tpu.memory_space<vmem>>, vector<1x3x32xf32>
    %70 = vector.shape_cast %69 : vector<1x3x32xf32> to vector<3x32xf32>
    %cst_61 = arith.constant dense<0.000000e+00> : vector<2x32xf32>
    %71 = tpu.matmul %68, %70, %cst_61 {dimension_numbers = #tpu.dot_dimension_numbers<[1], [0], [0], [1], [0, 0, 1, 1], [], []>} : vector<2x3xf32>, vector<3x32xf32>, vector<2x32xf32> -> vector<2x32xf32>
    %72 = arith.addf %60, %71 : vector<2x32xf32>
    %c6 = arith.constant 6 : index
    %c0_62 = arith.constant 0 : index
    %c0_63 = arith.constant 0 : index
    %73 = vector.load %arg1[%c6, %c0_62, %c0_63] : memref<9x32x3xf32, #tpu.memory_space<vmem>>, vector<1x32x3xf32>
    %74 = vector.shape_cast %73 : vector<1x32x3xf32> to vector<32x3xf32>
    %cst_64 = arith.constant dense<0.000000e+00> : vector<2x3xf32>
    %75 = tpu.matmul %1, %74, %cst_64 {dimension_numbers = #tpu.dot_dimension_numbers<[1], [0], [0], [1], [0, 0, 1, 1], [], []>} : vector<2x32xf32>, vector<32x3xf32>, vector<2x3xf32> -> vector<2x3xf32>
    %c6_65 = arith.constant 6 : index
    %c0_66 = arith.constant 0 : index
    %c0_67 = arith.constant 0 : index
    %76 = vector.load %arg2[%c6_65, %c0_66, %c0_67] : memref<9x1x3xf32, #tpu.memory_space<vmem>>, vector<1x1x3xf32>
    %77 = vector.shape_cast %76 : vector<1x1x3xf32> to vector<1x3xf32>
    %78 = vector.broadcast %77 : vector<1x3xf32> to vector<2x3xf32>
    %79 = arith.addf %75, %78 : vector<2x3xf32>
    %80 = arith.mulf %79, %79 : vector<2x3xf32>
    %c6_68 = arith.constant 6 : index
    %c0_69 = arith.constant 0 : index
    %c0_70 = arith.constant 0 : index
    %81 = vector.load %arg4[%c6_68, %c0_69, %c0_70] : memref<9x3x32xf32, #tpu.memory_space<vmem>>, vector<1x3x32xf32>
    %82 = vector.shape_cast %81 : vector<1x3x32xf32> to vector<3x32xf32>
    %cst_71 = arith.constant dense<0.000000e+00> : vector<2x32xf32>
    %83 = tpu.matmul %80, %82, %cst_71 {dimension_numbers = #tpu.dot_dimension_numbers<[1], [0], [0], [1], [0, 0, 1, 1], [], []>} : vector<2x3xf32>, vector<3x32xf32>, vector<2x32xf32> -> vector<2x32xf32>
    %84 = arith.addf %72, %83 : vector<2x32xf32>
    %c7 = arith.constant 7 : index
    %c0_72 = arith.constant 0 : index
    %c0_73 = arith.constant 0 : index
    %85 = vector.load %arg1[%c7, %c0_72, %c0_73] : memref<9x32x3xf32, #tpu.memory_space<vmem>>, vector<1x32x3xf32>
    %86 = vector.shape_cast %85 : vector<1x32x3xf32> to vector<32x3xf32>
    %cst_74 = arith.constant dense<0.000000e+00> : vector<2x3xf32>
    %87 = tpu.matmul %1, %86, %cst_74 {dimension_numbers = #tpu.dot_dimension_numbers<[1], [0], [0], [1], [0, 0, 1, 1], [], []>} : vector<2x32xf32>, vector<32x3xf32>, vector<2x3xf32> -> vector<2x3xf32>
    %c7_75 = arith.constant 7 : index
    %c0_76 = arith.constant 0 : index
    %c0_77 = arith.constant 0 : index
    %88 = vector.load %arg2[%c7_75, %c0_76, %c0_77] : memref<9x1x3xf32, #tpu.memory_space<vmem>>, vector<1x1x3xf32>
    %89 = vector.shape_cast %88 : vector<1x1x3xf32> to vector<1x3xf32>
    %90 = vector.broadcast %89 : vector<1x3xf32> to vector<2x3xf32>
    %91 = arith.addf %87, %90 : vector<2x3xf32>
    %92 = arith.mulf %91, %91 : vector<2x3xf32>
    %c7_78 = arith.constant 7 : index
    %c0_79 = arith.constant 0 : index
    %c0_80 = arith.constant 0 : index
    %93 = vector.load %arg4[%c7_78, %c0_79, %c0_80] : memref<9x3x32xf32, #tpu.memory_space<vmem>>, vector<1x3x32xf32>
    %94 = vector.shape_cast %93 : vector<1x3x32xf32> to vector<3x32xf32>
    %cst_81 = arith.constant dense<0.000000e+00> : vector<2x32xf32>
    %95 = tpu.matmul %92, %94, %cst_81 {dimension_numbers = #tpu.dot_dimension_numbers<[1], [0], [0], [1], [0, 0, 1, 1], [], []>} : vector<2x3xf32>, vector<3x32xf32>, vector<2x32xf32> -> vector<2x32xf32>
    %96 = arith.addf %84, %95 : vector<2x32xf32>
    %c8 = arith.constant 8 : index
    %c0_82 = arith.constant 0 : index
    %c0_83 = arith.constant 0 : index
    %97 = vector.load %arg1[%c8, %c0_82, %c0_83] : memref<9x32x3xf32, #tpu.memory_space<vmem>>, vector<1x32x3xf32>
    %98 = vector.shape_cast %97 : vector<1x32x3xf32> to vector<32x3xf32>
    %cst_84 = arith.constant dense<0.000000e+00> : vector<2x3xf32>
    %99 = tpu.matmul %1, %98, %cst_84 {dimension_numbers = #tpu.dot_dimension_numbers<[1], [0], [0], [1], [0, 0, 1, 1], [], []>} : vector<2x32xf32>, vector<32x3xf32>, vector<2x3xf32> -> vector<2x3xf32>
    %c8_85 = arith.constant 8 : index
    %c0_86 = arith.constant 0 : index
    %c0_87 = arith.constant 0 : index
    %100 = vector.load %arg2[%c8_85, %c0_86, %c0_87] : memref<9x1x3xf32, #tpu.memory_space<vmem>>, vector<1x1x3xf32>
    %101 = vector.shape_cast %100 : vector<1x1x3xf32> to vector<1x3xf32>
    %102 = vector.broadcast %101 : vector<1x3xf32> to vector<2x3xf32>
    %103 = arith.addf %99, %102 : vector<2x3xf32>
    %104 = arith.mulf %103, %103 : vector<2x3xf32>
    %c8_88 = arith.constant 8 : index
    %c0_89 = arith.constant 0 : index
    %c0_90 = arith.constant 0 : index
    %105 = vector.load %arg4[%c8_88, %c0_89, %c0_90] : memref<9x3x32xf32, #tpu.memory_space<vmem>>, vector<1x3x32xf32>
    %106 = vector.shape_cast %105 : vector<1x3x32xf32> to vector<3x32xf32>
    %cst_91 = arith.constant dense<0.000000e+00> : vector<2x32xf32>
    %107 = tpu.matmul %104, %106, %cst_91 {dimension_numbers = #tpu.dot_dimension_numbers<[1], [0], [0], [1], [0, 0, 1, 1], [], []>} : vector<2x3xf32>, vector<3x32xf32>, vector<2x32xf32> -> vector<2x32xf32>
    %108 = arith.addf %96, %107 : vector<2x32xf32>
    %cst_92 = arith.constant 9.99999993E-9 : f32
    %109 = vector.broadcast %cst_92 : f32 to vector<2x32xf32>
    %110 = arith.addf %108, %109 : vector<2x32xf32>
    %111 = math.rsqrt %110 : vector<2x32xf32>
    %112 = vector.shape_cast %111 : vector<2x32xf32> to vector<2x32x1xf32>
    %c0_93 = arith.constant 0 : index
    %c0_94 = arith.constant 0 : index
    %c0_95 = arith.constant 0 : index
    %113 = vector.load %arg3[%c0_93, %c0_94, %c0_95] : memref<9x32x3xf32, #tpu.memory_space<vmem>>, vector<1x32x3xf32>
    %114 = vector.shape_cast %113 : vector<1x32x3xf32> to vector<32x3xf32>
    %115 = vector.shape_cast %114 : vector<32x3xf32> to vector<1x32x3xf32>
    %116 = vector.broadcast %112 : vector<2x32x1xf32> to vector<2x32x3xf32>
    %117 = vector.broadcast %115 : vector<1x32x3xf32> to vector<2x32x3xf32>
    %118 = arith.mulf %116, %117 : vector<2x32x3xf32>
    %119 = vector.shape_cast %8 : vector<2x3xf32> to vector<2x1x3xf32>
    %120 = vector.broadcast %119 : vector<2x1x3xf32> to vector<2x32x3xf32>
    %121 = arith.mulf %118, %120 : vector<2x32x3xf32>
    %c0_96 = arith.constant 0 : index
    %c0_97 = arith.constant 0 : index
    %c0_98 = arith.constant 0 : index
    %c0_99 = arith.constant 0 : index
    %122 = vector.load %arg17[%c0_96, %c0_97, %c0_98, %c0_99] : memref<9x2x32x3xf32, #tpu.memory_space<vmem>>, vector<1x2x32x3xf32>
    %123 = vector.shape_cast %122 : vector<1x2x32x3xf32> to vector<2x32x3xf32>
    %124 = vector.shape_cast %121 : vector<2x32x3xf32> to vector<1x2x32x3xf32>
    tpu.vector_store %arg17[%c0_96, %c0_97, %c0_98, %c0_99], %124 {strides = array<i32>} : memref<9x2x32x3xf32, #tpu.memory_space<vmem>>, vector<1x2x32x3xf32>,
    %125 = vector.shape_cast %111 : vector<2x32xf32> to vector<2x32x1xf32>
    %c1_100 = arith.constant 1 : index
    %c0_101 = arith.constant 0 : index
    %c0_102 = arith.constant 0 : index
    %126 = vector.load %arg3[%c1_100, %c0_101, %c0_102] : memref<9x32x3xf32, #tpu.memory_space<vmem>>, vector<1x32x3xf32>
    %127 = vector.shape_cast %126 : vector<1x32x3xf32> to vector<32x3xf32>
    %128 = vector.shape_cast %127 : vector<32x3xf32> to vector<1x32x3xf32>
    %129 = vector.broadcast %125 : vector<2x32x1xf32> to vector<2x32x3xf32>
    %130 = vector.broadcast %128 : vector<1x32x3xf32> to vector<2x32x3xf32>
    %131 = arith.mulf %129, %130 : vector<2x32x3xf32>
    %132 = vector.shape_cast %19 : vector<2x3xf32> to vector<2x1x3xf32>
    %133 = vector.broadcast %132 : vector<2x1x3xf32> to vector<2x32x3xf32>
    %134 = arith.mulf %131, %133 : vector<2x32x3xf32>
    %c1_103 = arith.constant 1 : index
    %c0_104 = arith.constant 0 : index
    %c0_105 = arith.constant 0 : index
    %c0_106 = arith.constant 0 : index
    %135 = vector.load %arg17[%c1_103, %c0_104, %c0_105, %c0_106] : memref<9x2x32x3xf32, #tpu.memory_space<vmem>>, vector<1x2x32x3xf32>
    %136 = vector.shape_cast %135 : vector<1x2x32x3xf32> to vector<2x32x3xf32>
    %137 = vector.shape_cast %134 : vector<2x32x3xf32> to vector<1x2x32x3xf32>
    tpu.vector_store %arg17[%c1_103, %c0_104, %c0_105, %c0_106], %137 {strides = array<i32>} : memref<9x2x32x3xf32, #tpu.memory_space<vmem>>, vector<1x2x32x3xf32>,
    %138 = vector.shape_cast %111 : vector<2x32xf32> to vector<2x32x1xf32>
    %c2_107 = arith.constant 2 : index
    %c0_108 = arith.constant 0 : index
    %c0_109 = arith.constant 0 : index
    %139 = vector.load %arg3[%c2_107, %c0_108, %c0_109] : memref<9x32x3xf32, #tpu.memory_space<vmem>>, vector<1x32x3xf32>
    %140 = vector.shape_cast %139 : vector<1x32x3xf32> to vector<32x3xf32>
    %141 = vector.shape_cast %140 : vector<32x3xf32> to vector<1x32x3xf32>
    %142 = vector.broadcast %138 : vector<2x32x1xf32> to vector<2x32x3xf32>
    %143 = vector.broadcast %141 : vector<1x32x3xf32> to vector<2x32x3xf32>
    %144 = arith.mulf %142, %143 : vector<2x32x3xf32>
    %145 = vector.shape_cast %31 : vector<2x3xf32> to vector<2x1x3xf32>
    %146 = vector.broadcast %145 : vector<2x1x3xf32> to vector<2x32x3xf32>
    %147 = arith.mulf %144, %146 : vector<2x32x3xf32>
    %c2_110 = arith.constant 2 : index
    %c0_111 = arith.constant 0 : index
    %c0_112 = arith.constant 0 : index
    %c0_113 = arith.constant 0 : index
    %148 = vector.load %arg17[%c2_110, %c0_111, %c0_112, %c0_113] : memref<9x2x32x3xf32, #tpu.memory_space<vmem>>, vector<1x2x32x3xf32>
    %149 = vector.shape_cast %148 : vector<1x2x32x3xf32> to vector<2x32x3xf32>
    %150 = vector.shape_cast %147 : vector<2x32x3xf32> to vector<1x2x32x3xf32>
    tpu.vector_store %arg17[%c2_110, %c0_111, %c0_112, %c0_113], %150 {strides = array<i32>} : memref<9x2x32x3xf32, #tpu.memory_space<vmem>>, vector<1x2x32x3xf32>,
    %151 = vector.shape_cast %111 : vector<2x32xf32> to vector<2x32x1xf32>
    %c3_114 = arith.constant 3 : index
    %c0_115 = arith.constant 0 : index
    %c0_116 = arith.constant 0 : index
    %152 = vector.load %arg3[%c3_114, %c0_115, %c0_116] : memref<9x32x3xf32, #tpu.memory_space<vmem>>, vector<1x32x3xf32>
    %153 = vector.shape_cast %152 : vector<1x32x3xf32> to vector<32x3xf32>
    %154 = vector.shape_cast %153 : vector<32x3xf32> to vector<1x32x3xf32>
    %155 = vector.broadcast %151 : vector<2x32x1xf32> to vector<2x32x3xf32>
    %156 = vector.broadcast %154 : vector<1x32x3xf32> to vector<2x32x3xf32>
    %157 = arith.mulf %155, %156 : vector<2x32x3xf32>
    %158 = vector.shape_cast %43 : vector<2x3xf32> to vector<2x1x3xf32>
    %159 = vector.broadcast %158 : vector<2x1x3xf32> to vector<2x32x3xf32>
    %160 = arith.mulf %157, %159 : vector<2x32x3xf32>
    %c3_117 = arith.constant 3 : index
    %c0_118 = arith.constant 0 : index
    %c0_119 = arith.constant 0 : index
    %c0_120 = arith.constant 0 : index
    %161 = vector.load %arg17[%c3_117, %c0_118, %c0_119, %c0_120] : memref<9x2x32x3xf32, #tpu.memory_space<vmem>>, vector<1x2x32x3xf32>
    %162 = vector.shape_cast %161 : vector<1x2x32x3xf32> to vector<2x32x3xf32>
    %163 = vector.shape_cast %160 : vector<2x32x3xf32> to vector<1x2x32x3xf32>
    tpu.vector_store %arg17[%c3_117, %c0_118, %c0_119, %c0_120], %163 {strides = array<i32>} : memref<9x2x32x3xf32, #tpu.memory_space<vmem>>, vector<1x2x32x3xf32>,
    %164 = vector.shape_cast %111 : vector<2x32xf32> to vector<2x32x1xf32>
    %c4_121 = arith.constant 4 : index
    %c0_122 = arith.constant 0 : index
    %c0_123 = arith.constant 0 : index
    %165 = vector.load %arg3[%c4_121, %c0_122, %c0_123] : memref<9x32x3xf32, #tpu.memory_space<vmem>>, vector<1x32x3xf32>
    %166 = vector.shape_cast %165 : vector<1x32x3xf32> to vector<32x3xf32>
    %167 = vector.shape_cast %166 : vector<32x3xf32> to vector<1x32x3xf32>
    %168 = vector.broadcast %164 : vector<2x32x1xf32> to vector<2x32x3xf32>
    %169 = vector.broadcast %167 : vector<1x32x3xf32> to vector<2x32x3xf32>
    %170 = arith.mulf %168, %169 : vector<2x32x3xf32>
    %171 = vector.shape_cast %55 : vector<2x3xf32> to vector<2x1x3xf32>
    %172 = vector.broadcast %171 : vector<2x1x3xf32> to vector<2x32x3xf32>
    %173 = arith.mulf %170, %172 : vector<2x32x3xf32>
    %c4_124 = arith.constant 4 : index
    %c0_125 = arith.constant 0 : index
    %c0_126 = arith.constant 0 : index
    %c0_127 = arith.constant 0 : index
    %174 = vector.load %arg17[%c4_124, %c0_125, %c0_126, %c0_127] : memref<9x2x32x3xf32, #tpu.memory_space<vmem>>, vector<1x2x32x3xf32>
    %175 = vector.shape_cast %174 : vector<1x2x32x3xf32> to vector<2x32x3xf32>
    %176 = vector.shape_cast %173 : vector<2x32x3xf32> to vector<1x2x32x3xf32>
    tpu.vector_store %arg17[%c4_124, %c0_125, %c0_126, %c0_127], %176 {strides = array<i32>} : memref<9x2x32x3xf32, #tpu.memory_space<vmem>>, vector<1x2x32x3xf32>,
    %177 = vector.shape_cast %111 : vector<2x32xf32> to vector<2x32x1xf32>
    %c5_128 = arith.constant 5 : index
    %c0_129 = arith.constant 0 : index
    %c0_130 = arith.constant 0 : index
    %178 = vector.load %arg3[%c5_128, %c0_129, %c0_130] : memref<9x32x3xf32, #tpu.memory_space<vmem>>, vector<1x32x3xf32>
    %179 = vector.shape_cast %178 : vector<1x32x3xf32> to vector<32x3xf32>
    %180 = vector.shape_cast %179 : vector<32x3xf32> to vector<1x32x3xf32>
    %181 = vector.broadcast %177 : vector<2x32x1xf32> to vector<2x32x3xf32>
    %182 = vector.broadcast %180 : vector<1x32x3xf32> to vector<2x32x3xf32>
    %183 = arith.mulf %181, %182 : vector<2x32x3xf32>
    %184 = vector.shape_cast %67 : vector<2x3xf32> to vector<2x1x3xf32>
    %185 = vector.broadcast %184 : vector<2x1x3xf32> to vector<2x32x3xf32>
    %186 = arith.mulf %183, %185 : vector<2x32x3xf32>
    %c5_131 = arith.constant 5 : index
    %c0_132 = arith.constant 0 : index
    %c0_133 = arith.constant 0 : index
    %c0_134 = arith.constant 0 : index
    %187 = vector.load %arg17[%c5_131, %c0_132, %c0_133, %c0_134] : memref<9x2x32x3xf32, #tpu.memory_space<vmem>>, vector<1x2x32x3xf32>
    %188 = vector.shape_cast %187 : vector<1x2x32x3xf32> to vector<2x32x3xf32>
    %189 = vector.shape_cast %186 : vector<2x32x3xf32> to vector<1x2x32x3xf32>
    tpu.vector_store %arg17[%c5_131, %c0_132, %c0_133, %c0_134], %189 {strides = array<i32>} : memref<9x2x32x3xf32, #tpu.memory_space<vmem>>, vector<1x2x32x3xf32>,
    %190 = vector.shape_cast %111 : vector<2x32xf32> to vector<2x32x1xf32>
    %c6_135 = arith.constant 6 : index
    %c0_136 = arith.constant 0 : index
    %c0_137 = arith.constant 0 : index
    %191 = vector.load %arg3[%c6_135, %c0_136, %c0_137] : memref<9x32x3xf32, #tpu.memory_space<vmem>>, vector<1x32x3xf32>
    %192 = vector.shape_cast %191 : vector<1x32x3xf32> to vector<32x3xf32>
    %193 = vector.shape_cast %192 : vector<32x3xf32> to vector<1x32x3xf32>
    %194 = vector.broadcast %190 : vector<2x32x1xf32> to vector<2x32x3xf32>
    %195 = vector.broadcast %193 : vector<1x32x3xf32> to vector<2x32x3xf32>
    %196 = arith.mulf %194, %195 : vector<2x32x3xf32>
    %197 = vector.shape_cast %79 : vector<2x3xf32> to vector<2x1x3xf32>
    %198 = vector.broadcast %197 : vector<2x1x3xf32> to vector<2x32x3xf32>
    %199 = arith.mulf %196, %198 : vector<2x32x3xf32>
    %c6_138 = arith.constant 6 : index
    %c0_139 = arith.constant 0 : index
    %c0_140 = arith.constant 0 : index
    %c0_141 = arith.constant 0 : index
    %200 = vector.load %arg17[%c6_138, %c0_139, %c0_140, %c0_141] : memref<9x2x32x3xf32, #tpu.memory_space<vmem>>, vector<1x2x32x3xf32>
    %201 = vector.shape_cast %200 : vector<1x2x32x3xf32> to vector<2x32x3xf32>
    %202 = vector.shape_cast %199 : vector<2x32x3xf32> to vector<1x2x32x3xf32>
    tpu.vector_store %arg17[%c6_138, %c0_139, %c0_140, %c0_141], %202 {strides = array<i32>} : memref<9x2x32x3xf32, #tpu.memory_space<vmem>>, vector<1x2x32x3xf32>,
    %203 = vector.shape_cast %111 : vector<2x32xf32> to vector<2x32x1xf32>
    %c7_142 = arith.constant 7 : index
    %c0_143 = arith.constant 0 : index
    %c0_144 = arith.constant 0 : index
    %204 = vector.load %arg3[%c7_142, %c0_143, %c0_144] : memref<9x32x3xf32, #tpu.memory_space<vmem>>, vector<1x32x3xf32>
    %205 = vector.shape_cast %204 : vector<1x32x3xf32> to vector<32x3xf32>
    %206 = vector.shape_cast %205 : vector<32x3xf32> to vector<1x32x3xf32>
    %207 = vector.broadcast %203 : vector<2x32x1xf32> to vector<2x32x3xf32>
    %208 = vector.broadcast %206 : vector<1x32x3xf32> to vector<2x32x3xf32>
    %209 = arith.mulf %207, %208 : vector<2x32x3xf32>
    %210 = vector.shape_cast %91 : vector<2x3xf32> to vector<2x1x3xf32>
    %211 = vector.broadcast %210 : vector<2x1x3xf32> to vector<2x32x3xf32>
    %212 = arith.mulf %209, %211 : vector<2x32x3xf32>
    %c7_145 = arith.constant 7 : index
    %c0_146 = arith.constant 0 : index
    %c0_147 = arith.constant 0 : index
    %c0_148 = arith.constant 0 : index
    %213 = vector.load %arg17[%c7_145, %c0_146, %c0_147, %c0_148] : memref<9x2x32x3xf32, #tpu.memory_space<vmem>>, vector<1x2x32x3xf32>
    %214 = vector.shape_cast %213 : vector<1x2x32x3xf32> to vector<2x32x3xf32>
    %215 = vector.shape_cast %212 : vector<2x32x3xf32> to vector<1x2x32x3xf32>
    tpu.vector_store %arg17[%c7_145, %c0_146, %c0_147, %c0_148], %215 {strides = array<i32>} : memref<9x2x32x3xf32, #tpu.memory_space<vmem>>, vector<1x2x32x3xf32>,
    %216 = vector.shape_cast %111 : vector<2x32xf32> to vector<2x32x1xf32>
    %c8_149 = arith.constant 8 : index
    %c0_150 = arith.constant 0 : index
    %c0_151 = arith.constant 0 : index
    %217 = vector.load %arg3[%c8_149, %c0_150, %c0_151] : memref<9x32x3xf32, #tpu.memory_space<vmem>>, vector<1x32x3xf32>
    %218 = vector.shape_cast %217 : vector<1x32x3xf32> to vector<32x3xf32>
    %219 = vector.shape_cast %218 : vector<32x3xf32> to vector<1x32x3xf32>
    %220 = vector.broadcast %216 : vector<2x32x1xf32> to vector<2x32x3xf32>
    %221 = vector.broadcast %219 : vector<1x32x3xf32> to vector<2x32x3xf32>
    %222 = arith.mulf %220, %221 : vector<2x32x3xf32>
    %223 = vector.shape_cast %103 : vector<2x3xf32> to vector<2x1x3xf32>
    %224 = vector.broadcast %223 : vector<2x1x3xf32> to vector<2x32x3xf32>
    %225 = arith.mulf %222, %224 : vector<2x32x3xf32>
    %c8_152 = arith.constant 8 : index
    %c0_153 = arith.constant 0 : index
    %c0_154 = arith.constant 0 : index
    %c0_155 = arith.constant 0 : index
    %226 = vector.load %arg17[%c8_152, %c0_153, %c0_154, %c0_155] : memref<9x2x32x3xf32, #tpu.memory_space<vmem>>, vector<1x2x32x3xf32>
    %227 = vector.shape_cast %226 : vector<1x2x32x3xf32> to vector<2x32x3xf32>
    %228 = vector.shape_cast %225 : vector<2x32x3xf32> to vector<1x2x32x3xf32>
    tpu.vector_store %arg17[%c8_152, %c0_153, %c0_154, %c0_155], %228 {strides = array<i32>} : memref<9x2x32x3xf32, #tpu.memory_space<vmem>>, vector<1x2x32x3xf32>,
    %c1_156 = arith.constant 1 : index
    %c0_157 = arith.constant 0 : index
    %c0_158 = arith.constant 0 : index
    %229 = vector.load %arg0[%c1_156, %c0_157, %c0_158] : memref<3x2x32xf32, #tpu.memory_space<vmem>>, vector<1x2x32xf32>
    %230 = vector.shape_cast %229 : vector<1x2x32xf32> to vector<2x32xf32>
    %c0_159 = arith.constant 0 : index
    %c0_160 = arith.constant 0 : index
    %231 = vector.load %arg5[%c0_159, %c0_160] : memref<32x32xf32, #tpu.memory_space<vmem>>, vector<32x32xf32>
    %cst_161 = arith.constant dense<0.000000e+00> : vector<2x32xf32>
    %232 = tpu.matmul %230, %231, %cst_161 {dimension_numbers = #tpu.dot_dimension_numbers<[1], [0], [0], [1], [0, 0, 1, 1], [], []>} : vector<2x32xf32>, vector<32x32xf32>, vector<2x32xf32> -> vector<2x32xf32>
    %c0_162 = arith.constant 0 : index
    %c0_163 = arith.constant 0 : index
    %233 = vector.load %arg6[%c0_162, %c0_163] : memref<1x32xf32, #tpu.memory_space<vmem>>, vector<1x32xf32>
    %234 = vector.broadcast %233 : vector<1x32xf32> to vector<2x32xf32>
    %235 = arith.addf %232, %234 : vector<2x32xf32>
    %236 = arith.mulf %235, %235 : vector<2x32xf32>
    %c0_164 = arith.constant 0 : index
    %c0_165 = arith.constant 0 : index
    %237 = vector.load %arg8[%c0_164, %c0_165] : memref<32x32xf32, #tpu.memory_space<vmem>>, vector<32x32xf32>
    %cst_166 = arith.constant dense<0.000000e+00> : vector<2x32xf32>
    %238 = tpu.matmul %236, %237, %cst_166 {dimension_numbers = #tpu.dot_dimension_numbers<[1], [0], [0], [1], [0, 0, 1, 1], [], []>} : vector<2x32xf32>, vector<32x32xf32>, vector<2x32xf32> -> vector<2x32xf32>
    %cst_167 = arith.constant 9.99999993E-9 : f32
    %239 = vector.broadcast %cst_167 : f32 to vector<2x32xf32>
    %240 = arith.addf %238, %239 : vector<2x32xf32>
    %241 = math.rsqrt %240 : vector<2x32xf32>
    %242 = vector.shape_cast %241 : vector<2x32xf32> to vector<2x32x1xf32>
    %c0_168 = arith.constant 0 : index
    %c0_169 = arith.constant 0 : index
    %243 = vector.load %arg7[%c0_168, %c0_169] : memref<32x32xf32, #tpu.memory_space<vmem>>, vector<32x32xf32>
    %244 = vector.shape_cast %243 : vector<32x32xf32> to vector<1x32x32xf32>
    %245 = vector.broadcast %242 : vector<2x32x1xf32> to vector<2x32x32xf32>
    %246 = vector.broadcast %244 : vector<1x32x32xf32> to vector<2x32x32xf32>
    %247 = arith.mulf %245, %246 : vector<2x32x32xf32>
    %248 = vector.shape_cast %235 : vector<2x32xf32> to vector<2x1x32xf32>
    %249 = vector.broadcast %248 : vector<2x1x32xf32> to vector<2x32x32xf32>
    %250 = arith.mulf %247, %249 : vector<2x32x32xf32>
    %cst_170 = arith.constant 1.41421354 : f32
    %251 = vector.broadcast %cst_170 : f32 to vector<2x32x32xf32>
    %252 = arith.mulf %250, %251 : vector<2x32x32xf32>
    %c0_171 = arith.constant 0 : index
    %c0_172 = arith.constant 0 : index
    %c0_173 = arith.constant 0 : index
    %253 = vector.load %arg18[%c0_171, %c0_172, %c0_173] : memref<2x32x32xf32, #tpu.memory_space<vmem>>, vector<2x32x32xf32>
    tpu.vector_store %arg18[%c0_171, %c0_172, %c0_173], %252 {strides = array<i32>} : memref<2x32x32xf32, #tpu.memory_space<vmem>>, vector<2x32x32xf32>,
    %c2_174 = arith.constant 2 : index
    %c0_175 = arith.constant 0 : index
    %c0_176 = arith.constant 0 : index
    %254 = vector.load %arg0[%c2_174, %c0_175, %c0_176] : memref<3x2x32xf32, #tpu.memory_space<vmem>>, vector<1x2x32xf32>
    %255 = vector.shape_cast %254 : vector<1x2x32xf32> to vector<2x32xf32>
    %c0_177 = arith.constant 0 : index
    %c0_178 = arith.constant 0 : index
    %256 = vector.load %arg9[%c0_177, %c0_178] : memref<32x32xf32, #tpu.memory_space<vmem>>, vector<32x32xf32>
    %cst_179 = arith.constant dense<0.000000e+00> : vector<2x32xf32>
    %257 = tpu.matmul %255, %256, %cst_179 {dimension_numbers = #tpu.dot_dimension_numbers<[1], [0], [0], [1], [0, 0, 1, 1], [], []>} : vector<2x32xf32>, vector<32x32xf32>, vector<2x32xf32> -> vector<2x32xf32>
    %c0_180 = arith.constant 0 : index
    %c0_181 = arith.constant 0 : index
    %258 = vector.load %arg10[%c0_180, %c0_181] : memref<1x32xf32, #tpu.memory_space<vmem>>, vector<1x32xf32>
    %259 = vector.broadcast %258 : vector<1x32xf32> to vector<2x32xf32>
    %260 = arith.addf %257, %259 : vector<2x32xf32>
    %c0_182 = arith.constant 0 : index
    %c0_183 = arith.constant 0 : index
    %261 = vector.load %arg13[%c0_182, %c0_183] : memref<32x3xf32, #tpu.memory_space<vmem>>, vector<32x3xf32>
    %cst_184 = arith.constant dense<0.000000e+00> : vector<2x3xf32>
    %262 = tpu.matmul %255, %261, %cst_184 {dimension_numbers = #tpu.dot_dimension_numbers<[1], [0], [0], [1], [0, 0, 1, 1], [], []>} : vector<2x32xf32>, vector<32x3xf32>, vector<2x3xf32> -> vector<2x3xf32>
    %c0_185 = arith.constant 0 : index
    %c0_186 = arith.constant 0 : index
    %263 = vector.load %arg14[%c0_185, %c0_186] : memref<1x3xf32, #tpu.memory_space<vmem>>, vector<1x3xf32>
    %264 = vector.broadcast %263 : vector<1x3xf32> to vector<2x3xf32>
    %265 = arith.addf %262, %264 : vector<2x3xf32>
    %266 = arith.mulf %260, %260 : vector<2x32xf32>
    %c0_187 = arith.constant 0 : index
    %c0_188 = arith.constant 0 : index
    %267 = vector.load %arg12[%c0_187, %c0_188] : memref<32x32xf32, #tpu.memory_space<vmem>>, vector<32x32xf32>
    %cst_189 = arith.constant dense<0.000000e+00> : vector<2x32xf32>
    %268 = tpu.matmul %266, %267, %cst_189 {dimension_numbers = #tpu.dot_dimension_numbers<[1], [0], [0], [1], [0, 0, 1, 1], [], []>} : vector<2x32xf32>, vector<32x32xf32>, vector<2x32xf32> -> vector<2x32xf32>
    %269 = arith.mulf %265, %265 : vector<2x3xf32>
    %c0_190 = arith.constant 0 : index
    %c0_191 = arith.constant 0 : index
    %270 = vector.load %arg16[%c0_190, %c0_191] : memref<3x32xf32, #tpu.memory_space<vmem>>, vector<3x32xf32>
    %cst_192 = arith.constant dense<0.000000e+00> : vector<2x32xf32>
    %271 = tpu.matmul %269, %270, %cst_192 {dimension_numbers = #tpu.dot_dimension_numbers<[1], [0], [0], [1], [0, 0, 1, 1], [], []>} : vector<2x3xf32>, vector<3x32xf32>, vector<2x32xf32> -> vector<2x32xf32>
    %272 = arith.addf %268, %271 : vector<2x32xf32>
    %cst_193 = arith.constant 9.99999993E-9 : f32
    %273 = vector.broadcast %cst_193 : f32 to vector<2x32xf32>
    %274 = arith.addf %272, %273 : vector<2x32xf32>
    %275 = math.rsqrt %274 : vector<2x32xf32>
    %276 = vector.shape_cast %275 : vector<2x32xf32> to vector<2x32x1xf32>
    %c0_194 = arith.constant 0 : index
    %c0_195 = arith.constant 0 : index
    %277 = vector.load %arg11[%c0_194, %c0_195] : memref<32x32xf32, #tpu.memory_space<vmem>>, vector<32x32xf32>
    %278 = vector.shape_cast %277 : vector<32x32xf32> to vector<1x32x32xf32>
    %279 = vector.broadcast %276 : vector<2x32x1xf32> to vector<2x32x32xf32>
    %280 = vector.broadcast %278 : vector<1x32x32xf32> to vector<2x32x32xf32>
    %281 = arith.mulf %279, %280 : vector<2x32x32xf32>
    %282 = vector.shape_cast %260 : vector<2x32xf32> to vector<2x1x32xf32>
    %283 = vector.broadcast %282 : vector<2x1x32xf32> to vector<2x32x32xf32>
    %284 = arith.mulf %281, %283 : vector<2x32x32xf32>
    %cst_196 = arith.constant 1.41421354 : f32
    %285 = vector.broadcast %cst_196 : f32 to vector<2x32x32xf32>
    %286 = arith.mulf %284, %285 : vector<2x32x32xf32>
    %c0_197 = arith.constant 0 : index
    %c0_198 = arith.constant 0 : index
    %c0_199 = arith.constant 0 : index
    %287 = vector.load %arg19[%c0_197, %c0_198, %c0_199] : memref<2x32x32xf32, #tpu.memory_space<vmem>>, vector<2x32x32xf32>
    tpu.vector_store %arg19[%c0_197, %c0_198, %c0_199], %286 {strides = array<i32>} : memref<2x32x32xf32, #tpu.memory_space<vmem>>, vector<2x32x32xf32>,
    %288 = vector.shape_cast %275 : vector<2x32xf32> to vector<2x32x1xf32>
    %c0_200 = arith.constant 0 : index
    %c0_201 = arith.constant 0 : index
    %289 = vector.load %arg15[%c0_200, %c0_201] : memref<32x3xf32, #tpu.memory_space<vmem>>, vector<32x3xf32>
    %290 = vector.shape_cast %289 : vector<32x3xf32> to vector<1x32x3xf32>
    %291 = vector.broadcast %288 : vector<2x32x1xf32> to vector<2x32x3xf32>
    %292 = vector.broadcast %290 : vector<1x32x3xf32> to vector<2x32x3xf32>
    %293 = arith.mulf %291, %292 : vector<2x32x3xf32>
    %294 = vector.shape_cast %265 : vector<2x3xf32> to vector<2x1x3xf32>
    %295 = vector.broadcast %294 : vector<2x1x3xf32> to vector<2x32x3xf32>
    %296 = arith.mulf %293, %295 : vector<2x32x3xf32>
    %c0_202 = arith.constant 0 : index
    %c0_203 = arith.constant 0 : index
    %c0_204 = arith.constant 0 : index
    %297 = vector.load %arg20[%c0_202, %c0_203, %c0_204] : memref<2x32x3xf32, #tpu.memory_space<vmem>>, vector<2x32x3xf32>
    tpu.vector_store %arg20[%c0_202, %c0_203, %c0_204], %296 {strides = array<i32>} : memref<2x32x3xf32, #tpu.memory_space<vmem>>, vector<2x32x3xf32>,
    return
  }
}

</mosaic_0001>

<llo_original>
// kernel: squeeze.1
$region0: #{squeeze.1}
  %s0 = inlined_call_operand.vmem [shape: f32[2,256], index: 0, kind: input, shape index: {}]
  %s1 = inlined_call_operand.hbm [shape: f32[2,8,32,1], index: 1, kind: output, shape index: {}]
  $region1: #{squeeze.1} parent=0
    #allocation0 [shape = 'u8[8192]{0}', space=vmem, size = 0x2000, scoped, tag = 'operand span for operand 1']
    #allocation1 [shape = 's32[1]{0}', space=sflag, size = 0x4, scoped, tag = 'scoped memory for squeeze.1']
    #allocation2 [shape = 'u8[8192]{0}', space=vmem, size = 0x2000, scoped, tag = 'scoped mem for input reshape']
    %2 = vsyncpa [#allocation1], 0
    %s4 = ssub.s32 4, 1
    %s5 = scalar_lea.vmem %s0, 2
    %v6 = vld [vmem:[%s5] sm:%s4]
    %s7 = scalar_lea.vmem [#allocation2], 8
    %8 = vst [vmem:[%s7] sm:%s4] %v6
    %v9 = vld [vmem:[%s0] sm:%s4]
    %10 = vst [vmem:[#allocation2] sm:%s4] %v9
    %v11 = vld [vmem:[#allocation2] sm:$0x3]
    %vm12 = vcmask 261120
    %13 = vst.msk [vmem:[#allocation0] ss:$8 sm:$0x3] %vm12, %v11
    %s14 = scalar_lea.vmem [#allocation2], 8
    %v15 = vld [vmem:[%s14] sm:$0x3]
    %vm16 = vcmask 261120
    %s17 = scalar_lea.vmem [#allocation0], 4
    %18 = vst.msk [vmem:[%s17] ss:$8 sm:$0x3] %vm16, %v15
    %v19 = vld.sshfl [vmem:[#allocation2] sm:$0xff pattern:$0x99999180]
    %20 = vrot.lane.b32.xlu0 %v19, 96
    %v21 = vpop.permute.xlu0 %20
    %vm22 = vcmask 261120
    %s23 = scalar_lea.vmem [#allocation0], 1
    %24 = vst.msk [vmem:[%s23] ss:$4 sm:$0xf] %vm22, %v21
    %v25 = vld.sshfl [vmem:[#allocation2] sm:$0xff pattern:$0x99999180]
    %26 = vrot.lane.b32.xlu0 %v25, 64
    %v27 = vpop.permute.xlu0 %26
    %vm28 = vcmask 261120
    %s29 = scalar_lea.vmem [#allocation0], 2
    %30 = vst.msk [vmem:[%s29] ss:$4 sm:$0xf] %vm28, %v27
    %v31 = vld.sshfl [vmem:[#allocation2] sm:$0xff pattern:$0x99999180]
    %32 = vrot.lane.b32.xlu0 %v31, 32
    %v33 = vpop.permute.xlu0 %32
    %vm34 = vcmask 261120
    %s35 = scalar_lea.vmem [#allocation0], 3
    %36 = vst.msk [vmem:[%s35] ss:$4 sm:$0xf] %vm34, %v33
    %38 = vsyncadd [#allocation1], 0
    %s40 = sshll.u32 [#allocation0], 4
    %s41 = int_to_ptr.vmem [resolvable:$true] %s40
    %s42 = sshll.u32 %s1, 4
    %s43 = int_to_ptr.hbm [resolvable:$true] %s42
    %45 = dma.vmem_to_hbm [thread:$0]  %s41, 256, %s43, [#allocation1]
    %47 = dma.done [#allocation1], 256
    %48 = vsyncpa [#allocation1], 1

// kernel: _lambda_.2
$region0: #{_lambda_.2}
  #allocation0 [shape = 'u32[]', space=smem, size = 0x4, offset = 0x4, fixed_abs, tag = 'smem constant byte address 0x4 - core index']
  #allocation1 [shape = 'u32[72,128]{1,0:T(1,128)}', space=vmem, size = 0x9000, scoped, tag = 'internal scratch']
  %s0 = inlined_call_operand.hbm [shape: f32[3,2,32], index: 0, kind: input, shape index: {}]
  %s1 = inlined_call_operand.hbm [shape: f32[9,32,3], index: 1, kind: input, shape index: {}]
  %s2 = inlined_call_operand.vmem [shape: f32[9,1,3], index: 2, kind: input, shape index: {}]
  %s3 = inlined_call_operand.hbm [shape: f32[9,32,3], index: 3, kind: input, shape index: {}]
  %s4 = inlined_call_operand.vmem [shape: f32[9,3,32], index: 4, kind: input, shape index: {}]
  %s5 = inlined_call_operand.hbm [shape: f32[32,32], index: 5, kind: input, shape index: {}]
  %s6 = inlined_call_operand.vmem [shape: f32[1,32], index: 6, kind: input, shape index: {}, may-alias: {6,10}]
  %s7 = inlined_call_operand.hbm [shape: f32[32,32], index: 7, kind: input, shape index: {}]
  %s8 = inlined_call_operand.vmem [shape: f32[32,32], index: 8, kind: input, shape index: {}]
  %s9 = inlined_call_operand.vmem [shape: f32[32,32], index: 9, kind: input, shape index: {}]
  %s10 = inlined_call_operand.vmem [shape: f32[1,32], index: 10, kind: input, shape index: {}, may-alias: {6,10}]
  %s11 = inlined_call_operand.vmem [shape: f32[32,32], index: 11, kind: input, shape index: {}]
  %s12 = inlined_call_operand.vmem [shape: f32[32,32], index: 12, kind: input, shape index: {}]
  %s13 = inlined_call_operand.vmem [shape: f32[32,3], index: 13, kind: input, shape index: {}]
  %s14 = inlined_call_operand.vmem [shape: f32[1,3], index: 14, kind: input, shape index: {}]
  %s15 = inlined_call_operand.vmem [shape: f32[32,3], index: 15, kind: input, shape index: {}]
  %s16 = inlined_call_operand.vmem [shape: f32[3,32], index: 16, kind: input, shape index: {}]
  %s17 = inlined_call_operand.vmem [shape: f32[9,2,32,3], index: 17, kind: output, shape index: {0}]
  %s18 = inlined_call_operand.vmem [shape: f32[2,32,32], index: 18, kind: output, shape index: {1}]
  %s19 = inlined_call_operand.vmem [shape: f32[2,32,32], index: 19, kind: output, shape index: {2}]
  %s20 = inlined_call_operand.vmem [shape: f32[2,32,3], index: 20, kind: output, shape index: {3}]
  %21 = xla_tuple %s17, %s18, %s19, %s20
  %s22 = sld [smem:[#allocation0]]
  $region122: #{_lambda_.2} parent=0
    _
  %s24 = ssub.s32 1, %s22
  %s25 = scalar_select 0, %s24, %s22
  $region1: #{_lambda_.2} parent=0
    #allocation2 [shape = 'u8[3072]{0}', space=vmem, size = 0xc00, scoped, tag = 'input window, operand 0, single buffered']
    #allocation3 [shape = 's32[1]{0}', space=sflag, size = 0x4, scoped, tag = 'scoped memory for _lambda_.2']
    #allocation4 [shape = 'u8[147456]{0}', space=vmem, size = 0x24000, scoped, tag = 'input window, operand 1, single buffered']
    #allocation5 [shape = 's32[1]{0}', space=sflag, size = 0x4, scoped, tag = 'scoped memory for _lambda_.2']
    #allocation6 [shape = 'u8[147456]{0}', space=vmem, size = 0x24000, scoped, tag = 'input window, operand 3, single buffered']
    #allocation7 [shape = 'u8[16384]{0}', space=vmem, size = 0x4000, scoped, tag = 'input window, operand 5, single buffered']
    #allocation8 [shape = 's32[1]{0}', space=sflag, size = 0x4, scoped, tag = 'scoped memory for _lambda_.2']
    #allocation9 [shape = 'u8[16384]{0}', space=vmem, size = 0x4000, scoped, tag = 'input window, operand 7, single buffered']
    %26 = vsyncpa [#allocation3], 0
    %27 = vsyncpa [#allocation5], 0
    %28 = vsyncpa [#allocation8], 0
    // Predicated region
    $region2: #{_lambda_.2} parent=1 // pred_check
      _
    $region3: #{_lambda_.2} parent=1 // pred_check_branch
      %30 = sbr.rel (0) target = $region5
    $region4: #{_lambda_.2} parent=1 // pred_region
      %32 = vsyncadd [#allocation3], 0
      %s33 = sshll.u32 %s0, 4
      %s34 = int_to_ptr.hbm [resolvable:$true] %s33
      %s35 = sshll.u32 [#allocation2], 4
      %s36 = int_to_ptr.vmem [resolvable:$true] %s35
      %41 = dma.hbm_to_vmem [thread:$0]  %s34, 96, %s36, [#allocation3], 32, 32, 2
    $region5: #{_lambda_.2} parent=1 // pred_fallthru
      _
    // Predicated region
    $region6: #{_lambda_.2} parent=1 // pred_check
      _
    $region7: #{_lambda_.2} parent=1 // pred_check_branch
      %43 = sbr.rel (0) target = $region9
    $region8: #{_lambda_.2} parent=1 // pred_region
      %45 = vsyncadd [#allocation5], 0
      %s46 = sshll.u32 %s1, 4
      %s47 = int_to_ptr.hbm [resolvable:$true] %s46
      %s48 = sshll.u32 [#allocation4], 4
      %s49 = int_to_ptr.vmem [resolvable:$true] %s48
      %54 = dma.hbm_to_vmem [thread:$0]  %s47, 4608, %s49, [#allocation5], 128, 128, 8
    $region9: #{_lambda_.2} parent=1 // pred_fallthru
      _
    // Predicated region
    $region10: #{_lambda_.2} parent=1 // pred_check
      _
    $region11: #{_lambda_.2} parent=1 // pred_check_branch
      %56 = sbr.rel (0) target = $region13
    $region12: #{_lambda_.2} parent=1 // pred_region
      _
    $region13: #{_lambda_.2} parent=1 // pred_fallthru
      _
    // Predicated region
    $region14: #{_lambda_.2} parent=1 // pred_check
      _
    $region15: #{_lambda_.2} parent=1 // pred_check_branch
      %58 = sbr.rel (0) target = $region17
    $region16: #{_lambda_.2} parent=1 // pred_region
      %60 = vsyncadd [#allocation5], 0
      %s61 = sshll.u32 %s3, 4
      %s62 = int_to_ptr.hbm [resolvable:$true] %s61
      %s63 = sshll.u32 [#allocation6], 4
      %s64 = int_to_ptr.vmem [resolvable:$true] %s63
      %69 = dma.hbm_to_vmem [thread:$0]  %s62, 4608, %s64, [#allocation5], 128, 128, 8
    $region17: #{_lambda_.2} parent=1 // pred_fallthru
      _
    // Predicated region
    $region18: #{_lambda_.2} parent=1 // pred_check
      _
    $region19: #{_lambda_.2} parent=1 // pred_check_branch
      %71 = sbr.rel (0) target = $region21
    $region20: #{_lambda_.2} parent=1 // pred_region
      _
    $region21: #{_lambda_.2} parent=1 // pred_fallthru
      _
    // Predicated region
    $region22: #{_lambda_.2} parent=1 // pred_check
      _
    $region23: #{_lambda_.2} parent=1 // pred_check_branch
      %73 = sbr.rel (0) target = $region25
    $region24: #{_lambda_.2} parent=1 // pred_region
      %75 = vsyncadd [#allocation8], 0
      %s76 = sshll.u32 %s5, 4
      %s77 = int_to_ptr.hbm [resolvable:$true] %s76
      %s78 = sshll.u32 [#allocation7], 4
      %s79 = int_to_ptr.vmem [resolvable:$true] %s78
      %84 = dma.hbm_to_vmem [thread:$0]  %s77, 512, %s79, [#allocation8], 128, 128, 8
    $region25: #{_lambda_.2} parent=1 // pred_fallthru
      _
    // Predicated region
    $region26: #{_lambda_.2} parent=1 // pred_check
      _
    $region27: #{_lambda_.2} parent=1 // pred_check_branch
      %86 = sbr.rel (0) target = $region29
    $region28: #{_lambda_.2} parent=1 // pred_region
      _
    $region29: #{_lambda_.2} parent=1 // pred_fallthru
      _
    // Predicated region
    $region30: #{_lambda_.2} parent=1 // pred_check
      _
    $region31: #{_lambda_.2} parent=1 // pred_check_branch
      %88 = sbr.rel (0) target = $region33
    $region32: #{_lambda_.2} parent=1 // pred_region
      %90 = vsyncadd [#allocation8], 0
      %s91 = sshll.u32 %s7, 4
      %s92 = int_to_ptr.hbm [resolvable:$true] %s91
      %s93 = sshll.u32 [#allocation9], 4
      %s94 = int_to_ptr.vmem [resolvable:$true] %s93
      %99 = dma.hbm_to_vmem [thread:$0]  %s92, 512, %s94, [#allocation8], 128, 128, 8
    $region33: #{_lambda_.2} parent=1 // pred_fallthru
      _
    // Predicated region
    $region34: #{_lambda_.2} parent=1 // pred_check
      _
    $region35: #{_lambda_.2} parent=1 // pred_check_branch
      %101 = sbr.rel (0) target = $region37
    $region36: #{_lambda_.2} parent=1 // pred_region
      _
    $region37: #{_lambda_.2} parent=1 // pred_fallthru
      _
    // Predicated region
    $region38: #{_lambda_.2} parent=1 // pred_check
      _
    $region39: #{_lambda_.2} parent=1 // pred_check_branch
      %103 = sbr.rel (0) target = $region41
    $region40: #{_lambda_.2} parent=1 // pred_region
      _
    $region41: #{_lambda_.2} parent=1 // pred_fallthru
      _
    // Predicated region
    $region42: #{_lambda_.2} parent=1 // pred_check
      _
    $region43: #{_lambda_.2} parent=1 // pred_check_branch
      %105 = sbr.rel (0) target = $region45
    $region44: #{_lambda_.2} parent=1 // pred_region
      _
    $region45: #{_lambda_.2} parent=1 // pred_fallthru
      _
    // Predicated region
    $region46: #{_lambda_.2} parent=1 // pred_check
      _
    $region47: #{_lambda_.2} parent=1 // pred_check_branch
      %107 = sbr.rel (0) target = $region49
    $region48: #{_lambda_.2} parent=1 // pred_region
      _
    $region49: #{_lambda_.2} parent=1 // pred_fallthru
      _
    // Predicated region
    $region50: #{_lambda_.2} parent=1 // pred_check
      _
    $region51: #{_lambda_.2} parent=1 // pred_check_branch
      %109 = sbr.rel (0) target = $region53
    $region52: #{_lambda_.2} parent=1 // pred_region
      _
    $region53: #{_lambda_.2} parent=1 // pred_fallthru
      _
    // Predicated region
    $region54: #{_lambda_.2} parent=1 // pred_check
      _
    $region55: #{_lambda_.2} parent=1 // pred_check_branch
      %111 = sbr.rel (0) target = $region57
    $region56: #{_lambda_.2} parent=1 // pred_region
      _
    $region57: #{_lambda_.2} parent=1 // pred_fallthru
      _
    // Predicated region
    $region58: #{_lambda_.2} parent=1 // pred_check
      _
    $region59: #{_lambda_.2} parent=1 // pred_check_branch
      %113 = sbr.rel (0) target = $region61
    $region60: #{_lambda_.2} parent=1 // pred_region
      _
    $region61: #{_lambda_.2} parent=1 // pred_fallthru
      _
    // Predicated region
    $region62: #{_lambda_.2} parent=1 // pred_check
      _
    $region63: #{_lambda_.2} parent=1 // pred_check_branch
      %115 = sbr.rel (0) target = $region65
    $region64: #{_lambda_.2} parent=1 // pred_region
      _
    $region65: #{_lambda_.2} parent=1 // pred_fallthru
      _
    // Predicated region
    $region66: #{_lambda_.2} parent=1 // pred_check
      _
    $region67: #{_lambda_.2} parent=1 // pred_check_branch
      %117 = sbr.rel (0) target = $region69
    $region68: #{_lambda_.2} parent=1 // pred_region
      _
    $region69: #{_lambda_.2} parent=1 // pred_fallthru
      _
    // Predicated region
    $region70: #{_lambda_.2} parent=1 // pred_check
      _
    $region71: #{_lambda_.2} parent=1 // pred_check_branch
      %119 = sbr.rel (0) target = $region73
    $region72: #{_lambda_.2} parent=1 // pred_region
      %121 = dma.done [#allocation3], 96
    $region73: #{_lambda_.2} parent=1 // pred_fallthru
      _
    // Predicated region
    $region74: #{_lambda_.2} parent=1 // pred_check
      _
    $region75: #{_lambda_.2} parent=1 // pred_check_branch
      %123 = sbr.rel (0) target = $region77
    $region76: #{_lambda_.2} parent=1 // pred_region
      %125 = dma.done [#allocation5], 4608
    $region77: #{_lambda_.2} parent=1 // pred_fallthru
      _
    // Predicated region
    $region78: #{_lambda_.2} parent=1 // pred_check
      _
    $region79: #{_lambda_.2} parent=1 // pred_check_branch
      %127 = sbr.rel (0) target = $region81
    $region80: #{_lambda_.2} parent=1 // pred_region
      %129 = dma.done [#allocation5], 4608
    $region81: #{_lambda_.2} parent=1 // pred_fallthru
      _
    // Predicated region
    $region82: #{_lambda_.2} parent=1 // pred_check
      _
    $region83: #{_lambda_.2} parent=1 // pred_check_branch
      %131 = sbr.rel (0) target = $region85
    $region84: #{_lambda_.2} parent=1 // pred_region
      %133 = dma.done [#allocation8], 512
    $region85: #{_lambda_.2} parent=1 // pred_fallthru
      _
    // Predicated region
    $region86: #{_lambda_.2} parent=1 // pred_check
      _
    $region87: #{_lambda_.2} parent=1 // pred_check_branch
      %135 = sbr.rel (0) target = $region89
    $region88: #{_lambda_.2} parent=1 // pred_region
      %137 = dma.done [#allocation8], 512
    $region89: #{_lambda_.2} parent=1 // pred_fallthru
      _
    %v138 = vld [vmem:[#allocation2] sm:$0x3]
    %v139 = vld [vmem:[#allocation4] sm:$0xff]
    %v140 = vld [vmem:[#allocation4 + $0x8] sm:$0xff]
    %v141 = vld [vmem:[#allocation4 + $0x10] sm:$0xff]
    %v142 = vld [vmem:[#allocation4 + $0x18] sm:$0xff]
    %v143 = vld [vmem:[%s2] sm:$0x1]
    %v145 = vperm.slane %v143, 0
    %vm147 = vcmask 261120
    %v149 = vsel %vm147, %v138, 0
    %151 = vmatpush.msra.mxu0 0.0
    %152 = vmatpush.msra.mxu0 0.0
    %153 = vmatpush.msra.mxu0 0.0
    %154 = vmatpush.msra.mxu0 0.0
    %155 = vmatpush.msra.mxu0 0.0
    %156 = vmatpush.msra.mxu0 0.0
    %157 = vmatpush.msra.mxu0 0.0
    %158 = vmatpush.msra.mxu0 0.0
    %159 = vmatpush.msra.mxu0 0.0
    %160 = vmatpush.msra.mxu0 0.0
    %161 = vmatpush.msra.mxu0 0.0
    %162 = vmatpush.msra.mxu0 0.0
    %163 = vmatpush.msra.mxu0 %v142
    %164 = vmatpush.msra.mxu0 %v141
    %165 = vmatpush.msra.mxu0 %v140
    %166 = vmatpush.msra.mxu0 %v139
    %167 = vmatmul.f32.gmra.mxu0 %v149
    %v168 = vpop.f32.mrf.mxu0
    %v169 = vadd.f32 %v145, %v168
    %170 = vdwg.mxu0
    %v171 = vmul.f32 %v169, %v169
    %v172 = vld [vmem:[%s4] sm:$0x7]
    %s173 = scalar_lea.vmem [#allocation4], 32
    %v174 = vld [vmem:[%s173] sm:$0xff]
    %v175 = vld [vmem:[%s173 + $0x8] sm:$0xff]
    %v176 = vld [vmem:[%s173 + $0x10] sm:$0xff]
    %v177 = vld [vmem:[%s173 + $0x18] sm:$0xff]
    %s178 = scalar_lea.vmem %s2, 1
    %v179 = vld [vmem:[%s178] sm:$0x1]
    %v181 = vperm.slane %v179, 0
    %183 = vmatpush.msra.mxu0 0.0
    %184 = vmatpush.msra.mxu0 0.0
    %185 = vmatpush.msra.mxu0 0.0
    %186 = vmatpush.msra.mxu0 0.0
    %187 = vmatpush.msra.mxu0 0.0
    %188 = vmatpush.msra.mxu0 0.0
    %189 = vmatpush.msra.mxu0 0.0
    %190 = vmatpush.msra.mxu0 0.0
    %191 = vmatpush.msra.mxu0 0.0
    %192 = vmatpush.msra.mxu0 0.0
    %193 = vmatpush.msra.mxu0 0.0
    %194 = vmatpush.msra.mxu0 0.0
    %195 = vmatpush.msra.mxu0 %v177
    %196 = vmatpush.msra.mxu0 %v176
    %197 = vmatpush.msra.mxu0 %v175
    %198 = vmatpush.msra.mxu0 %v174
    %199 = vmatmul.f32.gmra.mxu0 %v149
    %v200 = vpop.f32.mrf.mxu0
    %v201 = vadd.f32 %v181, %v200
    %202 = vdwg.mxu0
    %v203 = vmul.f32 %v201, %v201
    %s204 = scalar_lea.vmem %s4, 4
    %v205 = vld [vmem:[%s204] sm:$0x7]
    %vm206 = vcmask 23552
    %v208 = vsel %vm206, %v203, 0
    %vm210 = vcmask 1042432
    %v212 = vsel %vm210, %v205, 0
    %214 = vmatpush.msra.mxu0 0.0
    %215 = vmatpush.msra.mxu0 0.0
    %216 = vmatpush.msra.mxu0 0.0
    %217 = vmatpush.msra.mxu0 0.0
    %218 = vmatpush.msra.mxu0 0.0
    %219 = vmatpush.msra.mxu0 0.0
    %220 = vmatpush.msra.mxu0 0.0
    %221 = vmatpush.msra.mxu0 0.0
    %222 = vmatpush.msra.mxu0 0.0
    %223 = vmatpush.msra.mxu0 0.0
    %224 = vmatpush.msra.mxu0 0.0
    %225 = vmatpush.msra.mxu0 0.0
    %226 = vmatpush.msra.mxu0 0.0
    %227 = vmatpush.msra.mxu0 0.0
    %228 = vmatpush.msra.mxu0 0.0
    %229 = vmatpush.msra.mxu0 %v212
    %230 = vmatmul.f32.gmra.mxu0 %v208
    %v231 = vpop.f32.mrf.mxu0
    %v232 = vadd.f32 0.0, %v231
    %233 = vdwg.mxu0
    %v235 = vsel %vm206, %v171, 0
    %v238 = vsel %vm210, %v172, 0
    %240 = vmatpush.msra.mxu0 0.0
    %241 = vmatpush.msra.mxu0 0.0
    %242 = vmatpush.msra.mxu0 0.0
    %243 = vmatpush.msra.mxu0 0.0
    %244 = vmatpush.msra.mxu0 0.0
    %245 = vmatpush.msra.mxu0 0.0
    %246 = vmatpush.msra.mxu0 0.0
    %247 = vmatpush.msra.mxu0 0.0
    %248 = vmatpush.msra.mxu0 0.0
    %249 = vmatpush.msra.mxu0 0.0
    %250 = vmatpush.msra.mxu0 0.0
    %251 = vmatpush.msra.mxu0 0.0
    %252 = vmatpush.msra.mxu0 0.0
    %253 = vmatpush.msra.mxu0 0.0
    %254 = vmatpush.msra.mxu0 0.0
    %255 = vmatpush.msra.mxu0 %v238
    %256 = vmatmul.f32.gmra.mxu0 %v235
    %v257 = vpop.f32.mrf.mxu0
    %v258 = vadd.f32 %v232, %v257
    %259 = vdwg.mxu0
    %s260 = scalar_lea.vmem [#allocation4], 64
    %v261 = vld [vmem:[%s260] sm:$0xff]
    %v262 = vld [vmem:[%s260 + $0x8] sm:$0xff]
    %v263 = vld [vmem:[%s260 + $0x10] sm:$0xff]
    %v264 = vld [vmem:[%s260 + $0x18] sm:$0xff]
    %s265 = scalar_lea.vmem %s2, 2
    %v266 = vld [vmem:[%s265] sm:$0x1]
    %v268 = vperm.slane %v266, 0
    %270 = vmatpush.msra.mxu0 0.0
    %271 = vmatpush.msra.mxu0 0.0
    %272 = vmatpush.msra.mxu0 0.0
    %273 = vmatpush.msra.mxu0 0.0
    %274 = vmatpush.msra.mxu0 0.0
    %275 = vmatpush.msra.mxu0 0.0
    %276 = vmatpush.msra.mxu0 0.0
    %277 = vmatpush.msra.mxu0 0.0
    %278 = vmatpush.msra.mxu0 0.0
    %279 = vmatpush.msra.mxu0 0.0
    %280 = vmatpush.msra.mxu0 0.0
    %281 = vmatpush.msra.mxu0 0.0
    %282 = vmatpush.msra.mxu0 %v264
    %283 = vmatpush.msra.mxu0 %v263
    %284 = vmatpush.msra.mxu0 %v262
    %285 = vmatpush.msra.mxu0 %v261
    %286 = vmatmul.f32.gmra.mxu0 %v149
    %v287 = vpop.f32.mrf.mxu0
    %v288 = vadd.f32 %v268, %v287
    %289 = vdwg.mxu0
    %v290 = vmul.f32 %v288, %v288
    %s291 = scalar_lea.vmem %s4, 8
    %v292 = vld [vmem:[%s291] sm:$0x7]
    %v294 = vsel %vm206, %v290, 0
    %v297 = vsel %vm210, %v292, 0
    %299 = vmatpush.msra.mxu0 0.0
    %300 = vmatpush.msra.mxu0 0.0
    %301 = vmatpush.msra.mxu0 0.0
    %302 = vmatpush.msra.mxu0 0.0
    %303 = vmatpush.msra.mxu0 0.0
    %304 = vmatpush.msra.mxu0 0.0
    %305 = vmatpush.msra.mxu0 0.0
    %306 = vmatpush.msra.mxu0 0.0
    %307 = vmatpush.msra.mxu0 0.0
    %308 = vmatpush.msra.mxu0 0.0
    %309 = vmatpush.msra.mxu0 0.0
    %310 = vmatpush.msra.mxu0 0.0
    %311 = vmatpush.msra.mxu0 0.0
    %312 = vmatpush.msra.mxu0 0.0
    %313 = vmatpush.msra.mxu0 0.0
    %314 = vmatpush.msra.mxu0 %v297
    %315 = vmatmul.f32.gmra.mxu0 %v294
    %v316 = vpop.f32.mrf.mxu0
    %v317 = vadd.f32 0.0, %v316
    %318 = vdwg.mxu0
    %v319 = vadd.f32 %v258, %v317
    %s320 = scalar_lea.vmem [#allocation4], 96
    %v321 = vld [vmem:[%s320] sm:$0xff]
    %v322 = vld [vmem:[%s320 + $0x8] sm:$0xff]
    %v323 = vld [vmem:[%s320 + $0x10] sm:$0xff]
    %v324 = vld [vmem:[%s320 + $0x18] sm:$0xff]
    %s325 = scalar_lea.vmem %s2, 3
    %v326 = vld [vmem:[%s325] sm:$0x1]
    %v328 = vperm.slane %v326, 0
    %330 = vmatpush.msra.mxu0 0.0
    %331 = vmatpush.msra.mxu0 0.0
    %332 = vmatpush.msra.mxu0 0.0
    %333 = vmatpush.msra.mxu0 0.0
    %334 = vmatpush.msra.mxu0 0.0
    %335 = vmatpush.msra.mxu0 0.0
    %336 = vmatpush.msra.mxu0 0.0
    %337 = vmatpush.msra.mxu0 0.0
    %338 = vmatpush.msra.mxu0 0.0
    %339 = vmatpush.msra.mxu0 0.0
    %340 = vmatpush.msra.mxu0 0.0
    %341 = vmatpush.msra.mxu0 0.0
    %342 = vmatpush.msra.mxu0 %v324
    %343 = vmatpush.msra.mxu0 %v323
    %344 = vmatpush.msra.mxu0 %v322
    %345 = vmatpush.msra.mxu0 %v321
    %346 = vmatmul.f32.gmra.mxu0 %v149
    %v347 = vpop.f32.mrf.mxu0
    %v348 = vadd.f32 %v328, %v347
    %349 = vdwg.mxu0
    %v350 = vmul.f32 %v348, %v348
    %s351 = scalar_lea.vmem %s4, 12
    %v352 = vld [vmem:[%s351] sm:$0x7]
    %v354 = vsel %vm206, %v350, 0
    %v357 = vsel %vm210, %v352, 0
    %359 = vmatpush.msra.mxu0 0.0
    %360 = vmatpush.msra.mxu0 0.0
    %361 = vmatpush.msra.mxu0 0.0
    %362 = vmatpush.msra.mxu0 0.0
    %363 = vmatpush.msra.mxu0 0.0
    %364 = vmatpush.msra.mxu0 0.0
    %365 = vmatpush.msra.mxu0 0.0
    %366 = vmatpush.msra.mxu0 0.0
    %367 = vmatpush.msra.mxu0 0.0
    %368 = vmatpush.msra.mxu0 0.0
    %369 = vmatpush.msra.mxu0 0.0
    %370 = vmatpush.msra.mxu0 0.0
    %371 = vmatpush.msra.mxu0 0.0
    %372 = vmatpush.msra.mxu0 0.0
    %373 = vmatpush.msra.mxu0 0.0
    %374 = vmatpush.msra.mxu0 %v357
    %375 = vmatmul.f32.gmra.mxu0 %v354
    %v376 = vpop.f32.mrf.mxu0
    %v377 = vadd.f32 0.0, %v376
    %378 = vdwg.mxu0
    %v379 = vadd.f32 %v319, %v377
    %s380 = scalar_lea.vmem [#allocation4], 128
    %v381 = vld [vmem:[%s380] sm:$0xff]
    %v382 = vld [vmem:[%s380 + $0x8] sm:$0xff]
    %v383 = vld [vmem:[%s380 + $0x10] sm:$0xff]
    %v384 = vld [vmem:[%s380 + $0x18] sm:$0xff]
    %s385 = scalar_lea.vmem %s2, 4
    %v386 = vld [vmem:[%s385] sm:$0x1]
    %v388 = vperm.slane %v386, 0
    %390 = vmatpush.msra.mxu0 0.0
    %391 = vmatpush.msra.mxu0 0.0
    %392 = vmatpush.msra.mxu0 0.0
    %393 = vmatpush.msra.mxu0 0.0
    %394 = vmatpush.msra.mxu0 0.0
    %395 = vmatpush.msra.mxu0 0.0
    %396 = vmatpush.msra.mxu0 0.0
    %397 = vmatpush.msra.mxu0 0.0
    %398 = vmatpush.msra.mxu0 0.0
    %399 = vmatpush.msra.mxu0 0.0
    %400 = vmatpush.msra.mxu0 0.0
    %401 = vmatpush.msra.mxu0 0.0
    %402 = vmatpush.msra.mxu0 %v384
    %403 = vmatpush.msra.mxu0 %v383
    %404 = vmatpush.msra.mxu0 %v382
    %405 = vmatpush.msra.mxu0 %v381
    %406 = vmatmul.f32.gmra.mxu0 %v149
    %v407 = vpop.f32.mrf.mxu0
    %v408 = vadd.f32 %v388, %v407
    %409 = vdwg.mxu0
    %v410 = vmul.f32 %v408, %v408
    %s411 = scalar_lea.vmem %s4, 16
    %v412 = vld [vmem:[%s411] sm:$0x7]
    %v414 = vsel %vm206, %v410, 0
    %v417 = vsel %vm210, %v412, 0
    %419 = vmatpush.msra.mxu0 0.0
    %420 = vmatpush.msra.mxu0 0.0
    %421 = vmatpush.msra.mxu0 0.0
    %422 = vmatpush.msra.mxu0 0.0
    %423 = vmatpush.msra.mxu0 0.0
    %424 = vmatpush.msra.mxu0 0.0
    %425 = vmatpush.msra.mxu0 0.0
    %426 = vmatpush.msra.mxu0 0.0
    %427 = vmatpush.msra.mxu0 0.0
    %428 = vmatpush.msra.mxu0 0.0
    %429 = vmatpush.msra.mxu0 0.0
    %430 = vmatpush.msra.mxu0 0.0
    %431 = vmatpush.msra.mxu0 0.0
    %432 = vmatpush.msra.mxu0 0.0
    %433 = vmatpush.msra.mxu0 0.0
    %434 = vmatpush.msra.mxu0 %v417
    %435 = vmatmul.f32.gmra.mxu0 %v414
    %v436 = vpop.f32.mrf.mxu0
    %v437 = vadd.f32 0.0, %v436
    %438 = vdwg.mxu0
    %v439 = vadd.f32 %v379, %v437
    %s440 = scalar_lea.vmem [#allocation4], 160
    %v441 = vld [vmem:[%s440] sm:$0xff]
    %v442 = vld [vmem:[%s440 + $0x8] sm:$0xff]
    %v443 = vld [vmem:[%s440 + $0x10] sm:$0xff]
    %v444 = vld [vmem:[%s440 + $0x18] sm:$0xff]
    %s445 = scalar_lea.vmem %s2, 5
    %v446 = vld [vmem:[%s445] sm:$0x1]
    %v448 = vperm.slane %v446, 0
    %450 = vmatpush.msra.mxu0 0.0
    %451 = vmatpush.msra.mxu0 0.0
    %452 = vmatpush.msra.mxu0 0.0
    %453 = vmatpush.msra.mxu0 0.0
    %454 = vmatpush.msra.mxu0 0.0
    %455 = vmatpush.msra.mxu0 0.0
    %456 = vmatpush.msra.mxu0 0.0
    %457 = vmatpush.msra.mxu0 0.0
    %458 = vmatpush.msra.mxu0 0.0
    %459 = vmatpush.msra.mxu0 0.0
    %460 = vmatpush.msra.mxu0 0.0
    %461 = vmatpush.msra.mxu0 0.0
    %462 = vmatpush.msra.mxu0 %v444
    %463 = vmatpush.msra.mxu0 %v443
    %464 = vmatpush.msra.mxu0 %v442
    %465 = vmatpush.msra.mxu0 %v441
    %466 = vmatmul.f32.gmra.mxu0 %v149
    %v467 = vpop.f32.mrf.mxu0
    %v468 = vadd.f32 %v448, %v467
    %469 = vdwg.mxu0
    %v470 = vmul.f32 %v468, %v468
    %s471 = scalar_lea.vmem %s4, 20
    %v472 = vld [vmem:[%s471] sm:$0x7]
    %v474 = vsel %vm206, %v470, 0
    %v477 = vsel %vm210, %v472, 0
    %479 = vmatpush.msra.mxu0 0.0
    %480 = vmatpush.msra.mxu0 0.0
    %481 = vmatpush.msra.mxu0 0.0
    %482 = vmatpush.msra.mxu0 0.0
    %483 = vmatpush.msra.mxu0 0.0
    %484 = vmatpush.msra.mxu0 0.0
    %485 = vmatpush.msra.mxu0 0.0
    %486 = vmatpush.msra.mxu0 0.0
    %487 = vmatpush.msra.mxu0 0.0
    %488 = vmatpush.msra.mxu0 0.0
    %489 = vmatpush.msra.mxu0 0.0
    %490 = vmatpush.msra.mxu0 0.0
    %491 = vmatpush.msra.mxu0 0.0
    %492 = vmatpush.msra.mxu0 0.0
    %493 = vmatpush.msra.mxu0 0.0
    %494 = vmatpush.msra.mxu0 %v477
    %495 = vmatmul.f32.gmra.mxu0 %v474
    %v496 = vpop.f32.mrf.mxu0
    %v497 = vadd.f32 0.0, %v496
    %498 = vdwg.mxu0
    %v499 = vadd.f32 %v439, %v497
    %s500 = scalar_lea.vmem [#allocation4], 192
    %v501 = vld [vmem:[%s500] sm:$0xff]
    %v502 = vld [vmem:[%s500 + $0x8] sm:$0xff]
    %v503 = vld [vmem:[%s500 + $0x10] sm:$0xff]
    %v504 = vld [vmem:[%s500 + $0x18] sm:$0xff]
    %s505 = scalar_lea.vmem %s2, 6
    %v506 = vld [vmem:[%s505] sm:$0x1]
    %v508 = vperm.slane %v506, 0
    %510 = vmatpush.msra.mxu0 0.0
    %511 = vmatpush.msra.mxu0 0.0
    %512 = vmatpush.msra.mxu0 0.0
    %513 = vmatpush.msra.mxu0 0.0
    %514 = vmatpush.msra.mxu0 0.0
    %515 = vmatpush.msra.mxu0 0.0
    %516 = vmatpush.msra.mxu0 0.0
    %517 = vmatpush.msra.mxu0 0.0
    %518 = vmatpush.msra.mxu0 0.0
    %519 = vmatpush.msra.mxu0 0.0
    %520 = vmatpush.msra.mxu0 0.0
    %521 = vmatpush.msra.mxu0 0.0
    %522 = vmatpush.msra.mxu0 %v504
    %523 = vmatpush.msra.mxu0 %v503
    %524 = vmatpush.msra.mxu0 %v502
    %525 = vmatpush.msra.mxu0 %v501
    %526 = vmatmul.f32.gmra.mxu0 %v149
    %v527 = vpop.f32.mrf.mxu0
    %v528 = vadd.f32 %v508, %v527
    %529 = vdwg.mxu0
    %v530 = vmul.f32 %v528, %v528
    %s531 = scalar_lea.vmem %s4, 24
    %v532 = vld [vmem:[%s531] sm:$0x7]
    %v534 = vsel %vm206, %v530, 0
    %v537 = vsel %vm210, %v532, 0
    %539 = vmatpush.msra.mxu0 0.0
    %540 = vmatpush.msra.mxu0 0.0
    %541 = vmatpush.msra.mxu0 0.0
    %542 = vmatpush.msra.mxu0 0.0
    %543 = vmatpush.msra.mxu0 0.0
    %544 = vmatpush.msra.mxu0 0.0
    %545 = vmatpush.msra.mxu0 0.0
    %546 = vmatpush.msra.mxu0 0.0
    %547 = vmatpush.msra.mxu0 0.0
    %548 = vmatpush.msra.mxu0 0.0
    %549 = vmatpush.msra.mxu0 0.0
    %550 = vmatpush.msra.mxu0 0.0
    %551 = vmatpush.msra.mxu0 0.0
    %552 = vmatpush.msra.mxu0 0.0
    %553 = vmatpush.msra.mxu0 0.0
    %554 = vmatpush.msra.mxu0 %v537
    %555 = vmatmul.f32.gmra.mxu0 %v534
    %v556 = vpop.f32.mrf.mxu0
    %v557 = vadd.f32 0.0, %v556
    %558 = vdwg.mxu0
    %v559 = vadd.f32 %v499, %v557
    %s560 = scalar_lea.vmem [#allocation4], 224
    %v561 = vld [vmem:[%s560] sm:$0xff]
    %v562 = vld [vmem:[%s560 + $0x8] sm:$0xff]
    %v563 = vld [vmem:[%s560 + $0x10] sm:$0xff]
    %v564 = vld [vmem:[%s560 + $0x18] sm:$0xff]
    %s565 = scalar_lea.vmem %s2, 7
    %v566 = vld [vmem:[%s565] sm:$0x1]
    %v568 = vperm.slane %v566, 0
    %570 = vmatpush.msra.mxu0 0.0
    %571 = vmatpush.msra.mxu0 0.0
    %572 = vmatpush.msra.mxu0 0.0
    %573 = vmatpush.msra.mxu0 0.0
    %574 = vmatpush.msra.mxu0 0.0
    %575 = vmatpush.msra.mxu0 0.0
    %576 = vmatpush.msra.mxu0 0.0
    %577 = vmatpush.msra.mxu0 0.0
    %578 = vmatpush.msra.mxu0 0.0
    %579 = vmatpush.msra.mxu0 0.0
    %580 = vmatpush.msra.mxu0 0.0
    %581 = vmatpush.msra.mxu0 0.0
    %582 = vmatpush.msra.mxu0 %v564
    %583 = vmatpush.msra.mxu0 %v563
    %584 = vmatpush.msra.mxu0 %v562
    %585 = vmatpush.msra.mxu0 %v561
    %586 = vmatmul.f32.gmra.mxu0 %v149
    %v587 = vpop.f32.mrf.mxu0
    %v588 = vadd.f32 %v568, %v587
    %589 = vdwg.mxu0
    %v590 = vmul.f32 %v588, %v588
    %s591 = scalar_lea.vmem %s4, 28
    %v592 = vld [vmem:[%s591] sm:$0x7]
    %v594 = vsel %vm206, %v590, 0
    %v597 = vsel %vm210, %v592, 0
    %599 = vmatpush.msra.mxu0 0.0
    %600 = vmatpush.msra.mxu0 0.0
    %601 = vmatpush.msra.mxu0 0.0
    %602 = vmatpush.msra.mxu0 0.0
    %603 = vmatpush.msra.mxu0 0.0
    %604 = vmatpush.msra.mxu0 0.0
    %605 = vmatpush.msra.mxu0 0.0
    %606 = vmatpush.msra.mxu0 0.0
    %607 = vmatpush.msra.mxu0 0.0
    %608 = vmatpush.msra.mxu0 0.0
    %609 = vmatpush.msra.mxu0 0.0
    %610 = vmatpush.msra.mxu0 0.0
    %611 = vmatpush.msra.mxu0 0.0
    %612 = vmatpush.msra.mxu0 0.0
    %613 = vmatpush.msra.mxu0 0.0
    %614 = vmatpush.msra.mxu0 %v597
    %615 = vmatmul.f32.gmra.mxu0 %v594
    %v616 = vpop.f32.mrf.mxu0
    %v617 = vadd.f32 0.0, %v616
    %618 = vdwg.mxu0
    %v619 = vadd.f32 %v559, %v617
    %s620 = scalar_lea.vmem [#allocation4], 256
    %v621 = vld [vmem:[%s620] sm:$0xff]
    %v622 = vld [vmem:[%s620 + $0x8] sm:$0xff]
    %v623 = vld [vmem:[%s620 + $0x10] sm:$0xff]
    %v624 = vld [vmem:[%s620 + $0x18] sm:$0xff]
    %s625 = scalar_lea.vmem %s2, 8
    %v626 = vld [vmem:[%s625] sm:$0x1]
    %v628 = vperm.slane %v626, 0
    %630 = vmatpush.msra.mxu0 0.0
    %631 = vmatpush.msra.mxu0 0.0
    %632 = vmatpush.msra.mxu0 0.0
    %633 = vmatpush.msra.mxu0 0.0
    %634 = vmatpush.msra.mxu0 0.0
    %635 = vmatpush.msra.mxu0 0.0
    %636 = vmatpush.msra.mxu0 0.0
    %637 = vmatpush.msra.mxu0 0.0
    %638 = vmatpush.msra.mxu0 0.0
    %639 = vmatpush.msra.mxu0 0.0
    %640 = vmatpush.msra.mxu0 0.0
    %641 = vmatpush.msra.mxu0 0.0
    %642 = vmatpush.msra.mxu0 %v624
    %643 = vmatpush.msra.mxu0 %v623
    %644 = vmatpush.msra.mxu0 %v622
    %645 = vmatpush.msra.mxu0 %v621
    %646 = vmatmul.f32.gmra.mxu0 %v149
    %v647 = vpop.f32.mrf.mxu0
    %v648 = vadd.f32 %v628, %v647
    %649 = vdwg.mxu0
    %v650 = vmul.f32 %v648, %v648
    %s651 = scalar_lea.vmem %s4, 32
    %v652 = vld [vmem:[%s651] sm:$0x7]
    %v654 = vsel %vm206, %v650, 0
    %v657 = vsel %vm210, %v652, 0
    %659 = vmatpush.msra.mxu0 0.0
    %660 = vmatpush.msra.mxu0 0.0
    %661 = vmatpush.msra.mxu0 0.0
    %662 = vmatpush.msra.mxu0 0.0
    %663 = vmatpush.msra.mxu0 0.0
    %664 = vmatpush.msra.mxu0 0.0
    %665 = vmatpush.msra.mxu0 0.0
    %666 = vmatpush.msra.mxu0 0.0
    %667 = vmatpush.msra.mxu0 0.0
    %668 = vmatpush.msra.mxu0 0.0
    %669 = vmatpush.msra.mxu0 0.0
    %670 = vmatpush.msra.mxu0 0.0
    %671 = vmatpush.msra.mxu0 0.0
    %672 = vmatpush.msra.mxu0 0.0
    %673 = vmatpush.msra.mxu0 0.0
    %674 = vmatpush.msra.mxu0 %v657
    %675 = vmatmul.f32.gmra.mxu0 %v654
    %v676 = vpop.f32.mrf.mxu0
    %v677 = vadd.f32 0.0, %v676
    %678 = vdwg.mxu0
    %v679 = vadd.f32 %v619, %v677
    %v680 = vadd.f32 %v679, 1e-08
    %v681 = vrsqrt.pop %v680
    %v682 = vmul.f32 %v681, %v680
    %v683 = vmul.f32 %v682, %v681
    %v684 = vmul.f32 0.5, %v683
    %v685 = vsub.f32 1.5, %v684
    %v686 = vmul.f32 %v681, %v685
    %vm687 = vweird.f32 %v680
    %vm688 = vweird.f32 %v681
    %vm689 = vmor %vm687, %vm688
    %v690 = vsel %vm689, %v681, %v686
    %v691 = vperm.slane %v690, 0
    %v692 = vlaneseq
    %v693 = vshrl.u32 %v692, 7
    %695 = vset.pattern.permute.xlu0 %v693
    %696 = vperm.xlu0 %695, %v691
    %v697 = vpop.permute.xlu0 %696
    %v698 = vlaneseq
    %v699 = vshrl.u32 %v698, 7
    %v700 = vadd.s32 %v699, 8
    %701 = vset.pattern.permute.xlu0 %v700
    %702 = vperm.xlu0 %701, %v691
    %v703 = vpop.permute.xlu0 %702
    %v704 = vlaneseq
    %v705 = vshrl.u32 %v704, 7
    %v706 = vadd.s32 %v705, 16
    %707 = vset.pattern.permute.xlu0 %v706
    %708 = vperm.xlu0 %707, %v691
    %v709 = vpop.permute.xlu0 %708
    %v710 = vlaneseq
    %v711 = vshrl.u32 %v710, 7
    %v712 = vadd.s32 %v711, 24
    %713 = vset.pattern.permute.xlu0 %v712
    %714 = vperm.xlu0 %713, %v691
    %v715 = vpop.permute.xlu0 %714
    %v716 = vperm.slane %v690, 1
    %v717 = vlaneseq
    %v718 = vshrl.u32 %v717, 7
    %720 = vset.pattern.permute.xlu0 %v718
    %721 = vperm.xlu0 %720, %v716
    %v722 = vpop.permute.xlu0 %721
    %v723 = vlaneseq
    %v724 = vshrl.u32 %v723, 7
    %v725 = vadd.s32 %v724, 8
    %726 = vset.pattern.permute.xlu0 %v725
    %727 = vperm.xlu0 %726, %v716
    %v728 = vpop.permute.xlu0 %727
    %v729 = vlaneseq
    %v730 = vshrl.u32 %v729, 7
    %v731 = vadd.s32 %v730, 16
    %732 = vset.pattern.permute.xlu0 %v731
    %733 = vperm.xlu0 %732, %v716
    %v734 = vpop.permute.xlu0 %733
    %v735 = vlaneseq
    %v736 = vshrl.u32 %v735, 7
    %v737 = vadd.s32 %v736, 24
    %738 = vset.pattern.permute.xlu0 %v737
    %739 = vperm.xlu0 %738, %v716
    %v740 = vpop.permute.xlu0 %739
    %v741 = vld [vmem:[#allocation6] sm:$0xff]
    %v742 = vld [vmem:[#allocation6 + $0x8] sm:$0xff]
    %v743 = vld [vmem:[#allocation6 + $0x10] sm:$0xff]
    %v744 = vld [vmem:[#allocation6 + $0x18] sm:$0xff]
    %v745 = vmul.f32 %v697, %v741
    %v746 = vmul.f32 %v703, %v742
    %v747 = vmul.f32 %v709, %v743
    %v748 = vmul.f32 %v715, %v744
    %v749 = vmul.f32 %v722, %v741
    %v750 = vmul.f32 %v728, %v742
    %v751 = vmul.f32 %v734, %v743
    %v752 = vmul.f32 %v740, %v744
    %v754 = vrot.slane %v169, 1
    %v755 = vperm.slane %v169, 0
    %v756 = vperm.slane %v754, 0
    %v759 = vmul.f32 %v745, %v755
    %v760 = vmul.f32 %v746, %v755
    %v761 = vmul.f32 %v747, %v755
    %v762 = vmul.f32 %v748, %v755
    %v763 = vmul.f32 %v749, %v756
    %v764 = vmul.f32 %v750, %v756
    %v765 = vmul.f32 %v751, %v756
    %v766 = vmul.f32 %v752, %v756
    %767 = vst.msk [vmem:[%s17] sm:$0xff] %vm206, %v759
    %768 = vst.msk [vmem:[%s17 + $0x8] sm:$0xff] %vm206, %v760
    %769 = vst.msk [vmem:[%s17 + $0x10] sm:$0xff] %vm206, %v761
    %770 = vst.msk [vmem:[%s17 + $0x18] sm:$0xff] %vm206, %v762
    %771 = vst.msk [vmem:[%s17 + $0x20] sm:$0xff] %vm206, %v763
    %772 = vst.msk [vmem:[%s17 + $0x28] sm:$0xff] %vm206, %v764
    %773 = vst.msk [vmem:[%s17 + $0x30] sm:$0xff] %vm206, %v765
    %774 = vst.msk [vmem:[%s17 + $0x38] sm:$0xff] %vm206, %v766
    %s775 = scalar_lea.vmem [#allocation6], 32
    %v776 = vld [vmem:[%s775] sm:$0xff]
    %v777 = vld [vmem:[%s775 + $0x8] sm:$0xff]
    %v778 = vld [vmem:[%s775 + $0x10] sm:$0xff]
    %v779 = vld [vmem:[%s775 + $0x18] sm:$0xff]
    %v780 = vmul.f32 %v697, %v776
    %v781 = vmul.f32 %v703, %v777
    %v782 = vmul.f32 %v709, %v778
    %v783 = vmul.f32 %v715, %v779
    %v784 = vmul.f32 %v722, %v776
    %v785 = vmul.f32 %v728, %v777
    %v786 = vmul.f32 %v734, %v778
    %v787 = vmul.f32 %v740, %v779
    %v789 = vrot.slane %v201, 1
    %v790 = vperm.slane %v201, 0
    %v791 = vperm.slane %v789, 0
    %v794 = vmul.f32 %v780, %v790
    %v795 = vmul.f32 %v781, %v790
    %v796 = vmul.f32 %v782, %v790
    %v797 = vmul.f32 %v783, %v790
    %v798 = vmul.f32 %v784, %v791
    %v799 = vmul.f32 %v785, %v791
    %v800 = vmul.f32 %v786, %v791
    %v801 = vmul.f32 %v787, %v791
    %s802 = scalar_lea.vmem %s17, 64
    %803 = vst.msk [vmem:[%s802] sm:$0xff] %vm206, %v794
    %804 = vst.msk [vmem:[%s802 + $0x8] sm:$0xff] %vm206, %v795
    %805 = vst.msk [vmem:[%s802 + $0x10] sm:$0xff] %vm206, %v796
    %806 = vst.msk [vmem:[%s802 + $0x18] sm:$0xff] %vm206, %v797
    %807 = vst.msk [vmem:[%s802 + $0x20] sm:$0xff] %vm206, %v798
    %808 = vst.msk [vmem:[%s802 + $0x28] sm:$0xff] %vm206, %v799
    %809 = vst.msk [vmem:[%s802 + $0x30] sm:$0xff] %vm206, %v800
    %810 = vst.msk [vmem:[%s802 + $0x38] sm:$0xff] %vm206, %v801
    %s811 = scalar_lea.vmem [#allocation6], 64
    %v812 = vld [vmem:[%s811] sm:$0xff]
    %v813 = vld [vmem:[%s811 + $0x8] sm:$0xff]
    %v814 = vld [vmem:[%s811 + $0x10] sm:$0xff]
    %v815 = vld [vmem:[%s811 + $0x18] sm:$0xff]
    %v816 = vmul.f32 %v697, %v812
    %v817 = vmul.f32 %v703, %v813
    %v818 = vmul.f32 %v709, %v814
    %v819 = vmul.f32 %v715, %v815
    %v820 = vmul.f32 %v722, %v812
    %v821 = vmul.f32 %v728, %v813
    %v822 = vmul.f32 %v734, %v814
    %v823 = vmul.f32 %v740, %v815
    %v825 = vrot.slane %v288, 1
    %v826 = vperm.slane %v288, 0
    %v827 = vperm.slane %v825, 0
    %v830 = vmul.f32 %v816, %v826
    %v831 = vmul.f32 %v817, %v826
    %v832 = vmul.f32 %v818, %v826
    %v833 = vmul.f32 %v819, %v826
    %v834 = vmul.f32 %v820, %v827
    %v835 = vmul.f32 %v821, %v827
    %v836 = vmul.f32 %v822, %v827
    %v837 = vmul.f32 %v823, %v827
    %s838 = scalar_lea.vmem %s17, 128
    %839 = vst.msk [vmem:[%s838] sm:$0xff] %vm206, %v830
    %840 = vst.msk [vmem:[%s838 + $0x8] sm:$0xff] %vm206, %v831
    %841 = vst.msk [vmem:[%s838 + $0x10] sm:$0xff] %vm206, %v832
    %842 = vst.msk [vmem:[%s838 + $0x18] sm:$0xff] %vm206, %v833
    %843 = vst.msk [vmem:[%s838 + $0x20] sm:$0xff] %vm206, %v834
    %844 = vst.msk [vmem:[%s838 + $0x28] sm:$0xff] %vm206, %v835
    %845 = vst.msk [vmem:[%s838 + $0x30] sm:$0xff] %vm206, %v836
    %846 = vst.msk [vmem:[%s838 + $0x38] sm:$0xff] %vm206, %v837
    %s847 = scalar_lea.vmem [#allocation6], 96
    %v848 = vld [vmem:[%s847] sm:$0xff]
    %v849 = vld [vmem:[%s847 + $0x8] sm:$0xff]
    %v850 = vld [vmem:[%s847 + $0x10] sm:$0xff]
    %v851 = vld [vmem:[%s847 + $0x18] sm:$0xff]
    %v852 = vmul.f32 %v697, %v848
    %v853 = vmul.f32 %v703, %v849
    %v854 = vmul.f32 %v709, %v850
    %v855 = vmul.f32 %v715, %v851
    %v856 = vmul.f32 %v722, %v848
    %v857 = vmul.f32 %v728, %v849
    %v858 = vmul.f32 %v734, %v850
    %v859 = vmul.f32 %v740, %v851
    %v861 = vrot.slane %v348, 1
    %v862 = vperm.slane %v348, 0
    %v863 = vperm.slane %v861, 0
    %v866 = vmul.f32 %v852, %v862
    %v867 = vmul.f32 %v853, %v862
    %v868 = vmul.f32 %v854, %v862
    %v869 = vmul.f32 %v855, %v862
    %v870 = vmul.f32 %v856, %v863
    %v871 = vmul.f32 %v857, %v863
    %v872 = vmul.f32 %v858, %v863
    %v873 = vmul.f32 %v859, %v863
    %s874 = scalar_lea.vmem %s17, 192
    %875 = vst.msk [vmem:[%s874] sm:$0xff] %vm206, %v866
    %876 = vst.msk [vmem:[%s874 + $0x8] sm:$0xff] %vm206, %v867
    %877 = vst.msk [vmem:[%s874 + $0x10] sm:$0xff] %vm206, %v868
    %878 = vst.msk [vmem:[%s874 + $0x18] sm:$0xff] %vm206, %v869
    %879 = vst.msk [vmem:[%s874 + $0x20] sm:$0xff] %vm206, %v870
    %880 = vst.msk [vmem:[%s874 + $0x28] sm:$0xff] %vm206, %v871
    %881 = vst.msk [vmem:[%s874 + $0x30] sm:$0xff] %vm206, %v872
    %882 = vst.msk [vmem:[%s874 + $0x38] sm:$0xff] %vm206, %v873
    %s883 = scalar_lea.vmem [#allocation6], 128
    %v884 = vld [vmem:[%s883] sm:$0xff]
    %v885 = vld [vmem:[%s883 + $0x8] sm:$0xff]
    %v886 = vld [vmem:[%s883 + $0x10] sm:$0xff]
    %v887 = vld [vmem:[%s883 + $0x18] sm:$0xff]
    %v888 = vmul.f32 %v697, %v884
    %v889 = vmul.f32 %v703, %v885
    %v890 = vmul.f32 %v709, %v886
    %v891 = vmul.f32 %v715, %v887
    %v892 = vmul.f32 %v722, %v884
    %v893 = vmul.f32 %v728, %v885
    %v894 = vmul.f32 %v734, %v886
    %v895 = vmul.f32 %v740, %v887
    %v897 = vrot.slane %v408, 1
    %v898 = vperm.slane %v408, 0
    %v899 = vperm.slane %v897, 0
    %v902 = vmul.f32 %v888, %v898
    %v903 = vmul.f32 %v889, %v898
    %v904 = vmul.f32 %v890, %v898
    %v905 = vmul.f32 %v891, %v898
    %v906 = vmul.f32 %v892, %v899
    %v907 = vmul.f32 %v893, %v899
    %v908 = vmul.f32 %v894, %v899
    %v909 = vmul.f32 %v895, %v899
    %s910 = scalar_lea.vmem %s17, 256
    %911 = vst.msk [vmem:[%s910] sm:$0xff] %vm206, %v902
    %912 = vst.msk [vmem:[%s910 + $0x8] sm:$0xff] %vm206, %v903
    %913 = vst.msk [vmem:[%s910 + $0x10] sm:$0xff] %vm206, %v904
    %914 = vst.msk [vmem:[%s910 + $0x18] sm:$0xff] %vm206, %v905
    %915 = vst.msk [vmem:[%s910 + $0x20] sm:$0xff] %vm206, %v906
    %916 = vst.msk [vmem:[%s910 + $0x28] sm:$0xff] %vm206, %v907
    %917 = vst.msk [vmem:[%s910 + $0x30] sm:$0xff] %vm206, %v908
    %918 = vst.msk [vmem:[%s910 + $0x38] sm:$0xff] %vm206, %v909
    %s919 = scalar_lea.vmem [#allocation6], 160
    %v920 = vld [vmem:[%s919] sm:$0xff]
    %v921 = vld [vmem:[%s919 + $0x8] sm:$0xff]
    %v922 = vld [vmem:[%s919 + $0x10] sm:$0xff]
    %v923 = vld [vmem:[%s919 + $0x18] sm:$0xff]
    %v924 = vmul.f32 %v697, %v920
    %v925 = vmul.f32 %v703, %v921
    %v926 = vmul.f32 %v709, %v922
    %v927 = vmul.f32 %v715, %v923
    %v928 = vmul.f32 %v722, %v920
    %v929 = vmul.f32 %v728, %v921
    %v930 = vmul.f32 %v734, %v922
    %v931 = vmul.f32 %v740, %v923
    %v933 = vrot.slane %v468, 1
    %v934 = vperm.slane %v468, 0
    %v935 = vperm.slane %v933, 0
    %v938 = vmul.f32 %v924, %v934
    %v939 = vmul.f32 %v925, %v934
    %v940 = vmul.f32 %v926, %v934
    %v941 = vmul.f32 %v927, %v934
    %v942 = vmul.f32 %v928, %v935
    %v943 = vmul.f32 %v929, %v935
    %v944 = vmul.f32 %v930, %v935
    %v945 = vmul.f32 %v931, %v935
    %s946 = scalar_lea.vmem %s17, 320
    %947 = vst.msk [vmem:[%s946] sm:$0xff] %vm206, %v938
    %948 = vst.msk [vmem:[%s946 + $0x8] sm:$0xff] %vm206, %v939
    %949 = vst.msk [vmem:[%s946 + $0x10] sm:$0xff] %vm206, %v940
    %950 = vst.msk [vmem:[%s946 + $0x18] sm:$0xff] %vm206, %v941
    %951 = vst.msk [vmem:[%s946 + $0x20] sm:$0xff] %vm206, %v942
    %952 = vst.msk [vmem:[%s946 + $0x28] sm:$0xff] %vm206, %v943
    %953 = vst.msk [vmem:[%s946 + $0x30] sm:$0xff] %vm206, %v944
    %954 = vst.msk [vmem:[%s946 + $0x38] sm:$0xff] %vm206, %v945
    %s955 = scalar_lea.vmem [#allocation6], 192
    %v956 = vld [vmem:[%s955] sm:$0xff]
    %v957 = vld [vmem:[%s955 + $0x8] sm:$0xff]
    %v958 = vld [vmem:[%s955 + $0x10] sm:$0xff]
    %v959 = vld [vmem:[%s955 + $0x18] sm:$0xff]
    %v960 = vmul.f32 %v697, %v956
    %v961 = vmul.f32 %v703, %v957
    %v962 = vmul.f32 %v709, %v958
    %v963 = vmul.f32 %v715, %v959
    %v964 = vmul.f32 %v722, %v956
    %v965 = vmul.f32 %v728, %v957
    %v966 = vmul.f32 %v734, %v958
    %v967 = vmul.f32 %v740, %v959
    %v969 = vrot.slane %v528, 1
    %v970 = vperm.slane %v528, 0
    %v971 = vperm.slane %v969, 0
    %v974 = vmul.f32 %v960, %v970
    %v975 = vmul.f32 %v961, %v970
    %v976 = vmul.f32 %v962, %v970
    %v977 = vmul.f32 %v963, %v970
    %v978 = vmul.f32 %v964, %v971
    %v979 = vmul.f32 %v965, %v971
    %v980 = vmul.f32 %v966, %v971
    %v981 = vmul.f32 %v967, %v971
    %s982 = scalar_lea.vmem %s17, 384
    %983 = vst.msk [vmem:[%s982] sm:$0xff] %vm206, %v974
    %984 = vst.msk [vmem:[%s982 + $0x8] sm:$0xff] %vm206, %v975
    %985 = vst.msk [vmem:[%s982 + $0x10] sm:$0xff] %vm206, %v976
    %986 = vst.msk [vmem:[%s982 + $0x18] sm:$0xff] %vm206, %v977
    %987 = vst.msk [vmem:[%s982 + $0x20] sm:$0xff] %vm206, %v978
    %988 = vst.msk [vmem:[%s982 + $0x28] sm:$0xff] %vm206, %v979
    %989 = vst.msk [vmem:[%s982 + $0x30] sm:$0xff] %vm206, %v980
    %990 = vst.msk [vmem:[%s982 + $0x38] sm:$0xff] %vm206, %v981
    %s991 = scalar_lea.vmem [#allocation6], 224
    %v992 = vld [vmem:[%s991] sm:$0xff]
    %v993 = vld [vmem:[%s991 + $0x8] sm:$0xff]
    %v994 = vld [vmem:[%s991 + $0x10] sm:$0xff]
    %v995 = vld [vmem:[%s991 + $0x18] sm:$0xff]
    %v996 = vmul.f32 %v697, %v992
    %v997 = vmul.f32 %v703, %v993
    %v998 = vmul.f32 %v709, %v994
    %v999 = vmul.f32 %v715, %v995
    %v1000 = vmul.f32 %v722, %v992
    %v1001 = vmul.f32 %v728, %v993
    %v1002 = vmul.f32 %v734, %v994
    %v1003 = vmul.f32 %v740, %v995
    %v1005 = vrot.slane %v588, 1
    %v1006 = vperm.slane %v588, 0
    %v1007 = vperm.slane %v1005, 0
    %v1010 = vmul.f32 %v996, %v1006
    %v1011 = vmul.f32 %v997, %v1006
    %v1012 = vmul.f32 %v998, %v1006
    %v1013 = vmul.f32 %v999, %v1006
    %v1014 = vmul.f32 %v1000, %v1007
    %v1015 = vmul.f32 %v1001, %v1007
    %v1016 = vmul.f32 %v1002, %v1007
    %v1017 = vmul.f32 %v1003, %v1007
    %s1018 = scalar_lea.vmem %s17, 448
    %1019 = vst.msk [vmem:[%s1018] sm:$0xff] %vm206, %v1010
    %1020 = vst.msk [vmem:[%s1018 + $0x8] sm:$0xff] %vm206, %v1011
    %1021 = vst.msk [vmem:[%s1018 + $0x10] sm:$0xff] %vm206, %v1012
    %1022 = vst.msk [vmem:[%s1018 + $0x18] sm:$0xff] %vm206, %v1013
    %1023 = vst.msk [vmem:[%s1018 + $0x20] sm:$0xff] %vm206, %v1014
    %1024 = vst.msk [vmem:[%s1018 + $0x28] sm:$0xff] %vm206, %v1015
    %1025 = vst.msk [vmem:[%s1018 + $0x30] sm:$0xff] %vm206, %v1016
    %1026 = vst.msk [vmem:[%s1018 + $0x38] sm:$0xff] %vm206, %v1017
    %s1027 = scalar_lea.vmem [#allocation6], 256
    %v1028 = vld [vmem:[%s1027] sm:$0xff]
    %v1029 = vld [vmem:[%s1027 + $0x8] sm:$0xff]
    %v1030 = vld [vmem:[%s1027 + $0x10] sm:$0xff]
    %v1031 = vld [vmem:[%s1027 + $0x18] sm:$0xff]
    %v1032 = vmul.f32 %v697, %v1028
    %v1033 = vmul.f32 %v703, %v1029
    %v1034 = vmul.f32 %v709, %v1030
    %v1035 = vmul.f32 %v715, %v1031
    %v1036 = vmul.f32 %v722, %v1028
    %v1037 = vmul.f32 %v728, %v1029
    %v1038 = vmul.f32 %v734, %v1030
    %v1039 = vmul.f32 %v740, %v1031
    %v1041 = vrot.slane %v648, 1
    %v1042 = vperm.slane %v648, 0
    %v1043 = vperm.slane %v1041, 0
    %v1046 = vmul.f32 %v1032, %v1042
    %v1047 = vmul.f32 %v1033, %v1042
    %v1048 = vmul.f32 %v1034, %v1042
    %v1049 = vmul.f32 %v1035, %v1042
    %v1050 = vmul.f32 %v1036, %v1043
    %v1051 = vmul.f32 %v1037, %v1043
    %v1052 = vmul.f32 %v1038, %v1043
    %v1053 = vmul.f32 %v1039, %v1043
    %s1054 = scalar_lea.vmem %s17, 512
    %1055 = vst.msk [vmem:[%s1054] sm:$0xff] %vm206, %v1046
    %1056 = vst.msk [vmem:[%s1054 + $0x8] sm:$0xff] %vm206, %v1047
    %1057 = vst.msk [vmem:[%s1054 + $0x10] sm:$0xff] %vm206, %v1048
    %1058 = vst.msk [vmem:[%s1054 + $0x18] sm:$0xff] %vm206, %v1049
    %1059 = vst.msk [vmem:[%s1054 + $0x20] sm:$0xff] %vm206, %v1050
    %1060 = vst.msk [vmem:[%s1054 + $0x28] sm:$0xff] %vm206, %v1051
    %1061 = vst.msk [vmem:[%s1054 + $0x30] sm:$0xff] %vm206, %v1052
    %1062 = vst.msk [vmem:[%s1054 + $0x38] sm:$0xff] %vm206, %v1053
    %s1063 = scalar_lea.vmem [#allocation2], 2
    %v1064 = vld [vmem:[%s1063] sm:$0x3]
    %v1065 = vld [vmem:[#allocation7] sm:$0xff]
    %v1066 = vld [vmem:[#allocation7 + $0x8] sm:$0xff]
    %v1067 = vld [vmem:[#allocation7 + $0x10] sm:$0xff]
    %v1068 = vld [vmem:[#allocation7 + $0x18] sm:$0xff]
    %v1069 = vld [vmem:[%s6] sm:$0x1]
    %v1071 = vperm.slane %v1069, 0
    %v1074 = vsel %vm147, %v1064, 0
    %1076 = vmatpush.msra.mxu0 0.0
    %1077 = vmatpush.msra.mxu0 0.0
    %1078 = vmatpush.msra.mxu0 0.0
    %1079 = vmatpush.msra.mxu0 0.0
    %1080 = vmatpush.msra.mxu0 0.0
    %1081 = vmatpush.msra.mxu0 0.0
    %1082 = vmatpush.msra.mxu0 0.0
    %1083 = vmatpush.msra.mxu0 0.0
    %1084 = vmatpush.msra.mxu0 0.0
    %1085 = vmatpush.msra.mxu0 0.0
    %1086 = vmatpush.msra.mxu0 0.0
    %1087 = vmatpush.msra.mxu0 0.0
    %1088 = vmatpush.msra.mxu0 %v1068
    %1089 = vmatpush.msra.mxu0 %v1067
    %1090 = vmatpush.msra.mxu0 %v1066
    %1091 = vmatpush.msra.mxu0 %v1065
    %1092 = vmatmul.f32.gmra.mxu0 %v1074
    %v1093 = vpop.f32.mrf.mxu0
    %v1094 = vadd.f32 %v1071, %v1093
    %1095 = vdwg.mxu0
    %v1096 = vmul.f32 %v1094, %v1094
    %v1097 = vld [vmem:[%s8] sm:$0xff]
    %v1098 = vld [vmem:[%s8 + $0x8] sm:$0xff]
    %v1099 = vld [vmem:[%s8 + $0x10] sm:$0xff]
    %v1100 = vld [vmem:[%s8 + $0x18] sm:$0xff]
    %v1102 = vsel %vm147, %v1096, 0
    %1104 = vmatpush.msra.mxu0 0.0
    %1105 = vmatpush.msra.mxu0 0.0
    %1106 = vmatpush.msra.mxu0 0.0
    %1107 = vmatpush.msra.mxu0 0.0
    %1108 = vmatpush.msra.mxu0 0.0
    %1109 = vmatpush.msra.mxu0 0.0
    %1110 = vmatpush.msra.mxu0 0.0
    %1111 = vmatpush.msra.mxu0 0.0
    %1112 = vmatpush.msra.mxu0 0.0
    %1113 = vmatpush.msra.mxu0 0.0
    %1114 = vmatpush.msra.mxu0 0.0
    %1115 = vmatpush.msra.mxu0 0.0
    %1116 = vmatpush.msra.mxu0 %v1100
    %1117 = vmatpush.msra.mxu0 %v1099
    %1118 = vmatpush.msra.mxu0 %v1098
    %1119 = vmatpush.msra.mxu0 %v1097
    %1120 = vmatmul.f32.gmra.mxu0 %v1102
    %v1121 = vpop.f32.mrf.mxu0
    %v1122 = vadd.f32 1e-08, %v1121
    %1123 = vdwg.mxu0
    %v1124 = vrsqrt.pop %v1122
    %v1125 = vmul.f32 %v1124, %v1122
    %v1126 = vmul.f32 %v1125, %v1124
    %v1127 = vmul.f32 0.5, %v1126
    %v1128 = vsub.f32 1.5, %v1127
    %v1129 = vmul.f32 %v1124, %v1128
    %vm1130 = vweird.f32 %v1122
    %vm1131 = vweird.f32 %v1124
    %vm1132 = vmor %vm1130, %vm1131
    %v1133 = vsel %vm1132, %v1124, %v1129
    %v1134 = vperm.slane %v1133, 0
    %v1135 = vlaneseq
    %v1136 = vshrl.u32 %v1135, 7
    %1138 = vset.pattern.permute.xlu0 %v1136
    %1139 = vperm.xlu0 %1138, %v1134
    %v1140 = vpop.permute.xlu0 %1139
    %v1141 = vlaneseq
    %v1142 = vshrl.u32 %v1141, 7
    %v1143 = vadd.s32 %v1142, 8
    %1144 = vset.pattern.permute.xlu0 %v1143
    %1145 = vperm.xlu0 %1144, %v1134
    %v1146 = vpop.permute.xlu0 %1145
    %v1147 = vlaneseq
    %v1148 = vshrl.u32 %v1147, 7
    %v1149 = vadd.s32 %v1148, 16
    %1150 = vset.pattern.permute.xlu0 %v1149
    %1151 = vperm.xlu0 %1150, %v1134
    %v1152 = vpop.permute.xlu0 %1151
    %v1153 = vlaneseq
    %v1154 = vshrl.u32 %v1153, 7
    %v1155 = vadd.s32 %v1154, 24
    %1156 = vset.pattern.permute.xlu0 %v1155
    %1157 = vperm.xlu0 %1156, %v1134
    %v1158 = vpop.permute.xlu0 %1157
    %v1159 = vperm.slane %v1133, 1
    %v1160 = vlaneseq
    %v1161 = vshrl.u32 %v1160, 7
    %1163 = vset.pattern.permute.xlu0 %v1161
    %1164 = vperm.xlu0 %1163, %v1159
    %v1165 = vpop.permute.xlu0 %1164
    %v1166 = vlaneseq
    %v1167 = vshrl.u32 %v1166, 7
    %v1168 = vadd.s32 %v1167, 8
    %1169 = vset.pattern.permute.xlu0 %v1168
    %1170 = vperm.xlu0 %1169, %v1159
    %v1171 = vpop.permute.xlu0 %1170
    %v1172 = vlaneseq
    %v1173 = vshrl.u32 %v1172, 7
    %v1174 = vadd.s32 %v1173, 16
    %1175 = vset.pattern.permute.xlu0 %v1174
    %1176 = vperm.xlu0 %1175, %v1159
    %v1177 = vpop.permute.xlu0 %1176
    %v1178 = vlaneseq
    %v1179 = vshrl.u32 %v1178, 7
    %v1180 = vadd.s32 %v1179, 24
    %1181 = vset.pattern.permute.xlu0 %v1180
    %1182 = vperm.xlu0 %1181, %v1159
    %v1183 = vpop.permute.xlu0 %1182
    %v1184 = vld [vmem:[#allocation9] sm:$0xff]
    %v1185 = vld [vmem:[#allocation9 + $0x8] sm:$0xff]
    %v1186 = vld [vmem:[#allocation9 + $0x10] sm:$0xff]
    %v1187 = vld [vmem:[#allocation9 + $0x18] sm:$0xff]
    %v1188 = vmul.f32 %v1140, %v1184
    %v1189 = vmul.f32 %v1146, %v1185
    %v1190 = vmul.f32 %v1152, %v1186
    %v1191 = vmul.f32 %v1158, %v1187
    %v1192 = vmul.f32 %v1165, %v1184
    %v1193 = vmul.f32 %v1171, %v1185
    %v1194 = vmul.f32 %v1177, %v1186
    %v1195 = vmul.f32 %v1183, %v1187
    %v1197 = vrot.slane %v1094, 1
    %v1198 = vperm.slane %v1094, 0
    %v1199 = vperm.slane %v1197, 0
    %v1202 = vmul.f32 %v1188, %v1198
    %v1203 = vmul.f32 %v1189, %v1198
    %v1204 = vmul.f32 %v1190, %v1198
    %v1205 = vmul.f32 %v1191, %v1198
    %v1206 = vmul.f32 %v1192, %v1199
    %v1207 = vmul.f32 %v1193, %v1199
    %v1208 = vmul.f32 %v1194, %v1199
    %v1209 = vmul.f32 %v1195, %v1199
    %v1210 = vmul.f32 %v1202, 1.4142135
    %v1211 = vmul.f32 %v1203, 1.4142135
    %v1212 = vmul.f32 %v1204, 1.4142135
    %v1213 = vmul.f32 %v1205, 1.4142135
    %v1214 = vmul.f32 %v1206, 1.4142135
    %v1215 = vmul.f32 %v1207, 1.4142135
    %v1216 = vmul.f32 %v1208, 1.4142135
    %v1217 = vmul.f32 %v1209, 1.4142135
    %1218 = vst.msk [vmem:[%s18] sm:$0xff] %vm147, %v1210
    %1219 = vst.msk [vmem:[%s18 + $0x8] sm:$0xff] %vm147, %v1211
    %1220 = vst.msk [vmem:[%s18 + $0x10] sm:$0xff] %vm147, %v1212
    %1221 = vst.msk [vmem:[%s18 + $0x18] sm:$0xff] %vm147, %v1213
    %1222 = vst.msk [vmem:[%s18 + $0x20] sm:$0xff] %vm147, %v1214
    %1223 = vst.msk [vmem:[%s18 + $0x28] sm:$0xff] %vm147, %v1215
    %1224 = vst.msk [vmem:[%s18 + $0x30] sm:$0xff] %vm147, %v1216
    %1225 = vst.msk [vmem:[%s18 + $0x38] sm:$0xff] %vm147, %v1217
    %s1226 = scalar_lea.vmem [#allocation2], 4
    %v1227 = vld [vmem:[%s1226] sm:$0x3]
    %v1228 = vld [vmem:[%s9] sm:$0xff]
    %v1229 = vld [vmem:[%s9 + $0x8] sm:$0xff]
    %v1230 = vld [vmem:[%s9 + $0x10] sm:$0xff]
    %v1231 = vld [vmem:[%s9 + $0x18] sm:$0xff]
    %v1232 = vld [vmem:[%s10] sm:$0x1]
    %v1234 = vperm.slane %v1232, 0
    %v1237 = vsel %vm147, %v1227, 0
    %1239 = vmatpush.msra.mxu0 0.0
    %1240 = vmatpush.msra.mxu0 0.0
    %1241 = vmatpush.msra.mxu0 0.0
    %1242 = vmatpush.msra.mxu0 0.0
    %1243 = vmatpush.msra.mxu0 0.0
    %1244 = vmatpush.msra.mxu0 0.0
    %1245 = vmatpush.msra.mxu0 0.0
    %1246 = vmatpush.msra.mxu0 0.0
    %1247 = vmatpush.msra.mxu0 0.0
    %1248 = vmatpush.msra.mxu0 0.0
    %1249 = vmatpush.msra.mxu0 0.0
    %1250 = vmatpush.msra.mxu0 0.0
    %1251 = vmatpush.msra.mxu0 %v1231
    %1252 = vmatpush.msra.mxu0 %v1230
    %1253 = vmatpush.msra.mxu0 %v1229
    %1254 = vmatpush.msra.mxu0 %v1228
    %1255 = vmatmul.f32.gmra.mxu0 %v1237
    %v1256 = vpop.f32.mrf.mxu0
    %v1257 = vadd.f32 %v1234, %v1256
    %1258 = vdwg.mxu0
    %v1259 = vld [vmem:[%s13] sm:$0xff]
    %v1260 = vld [vmem:[%s13 + $0x8] sm:$0xff]
    %v1261 = vld [vmem:[%s13 + $0x10] sm:$0xff]
    %v1262 = vld [vmem:[%s13 + $0x18] sm:$0xff]
    %v1263 = vld [vmem:[%s14] sm:$0x1]
    %v1265 = vperm.slane %v1263, 0
    %1267 = vmatpush.msra.mxu0 0.0
    %1268 = vmatpush.msra.mxu0 0.0
    %1269 = vmatpush.msra.mxu0 0.0
    %1270 = vmatpush.msra.mxu0 0.0
    %1271 = vmatpush.msra.mxu0 0.0
    %1272 = vmatpush.msra.mxu0 0.0
    %1273 = vmatpush.msra.mxu0 0.0
    %1274 = vmatpush.msra.mxu0 0.0
    %1275 = vmatpush.msra.mxu0 0.0
    %1276 = vmatpush.msra.mxu0 0.0
    %1277 = vmatpush.msra.mxu0 0.0
    %1278 = vmatpush.msra.mxu0 0.0
    %1279 = vmatpush.msra.mxu0 %v1262
    %1280 = vmatpush.msra.mxu0 %v1261
    %1281 = vmatpush.msra.mxu0 %v1260
    %1282 = vmatpush.msra.mxu0 %v1259
    %1283 = vmatmul.f32.gmra.mxu0 %v1237
    %v1284 = vpop.f32.mrf.mxu0
    %v1285 = vadd.f32 %v1265, %v1284
    %1286 = vdwg.mxu0
    %v1287 = vmul.f32 %v1257, %v1257
    %v1288 = vld [vmem:[%s12] sm:$0xff]
    %v1289 = vld [vmem:[%s12 + $0x8] sm:$0xff]
    %v1290 = vld [vmem:[%s12 + $0x10] sm:$0xff]
    %v1291 = vld [vmem:[%s12 + $0x18] sm:$0xff]
    %v1292 = vmul.f32 %v1285, %v1285
    %v1293 = vld [vmem:[%s16] sm:$0x7]
    %v1295 = vsel %vm206, %v1292, 0
    %v1298 = vsel %vm210, %v1293, 0
    %1300 = vmatpush.msra.mxu0 0.0
    %1301 = vmatpush.msra.mxu0 0.0
    %1302 = vmatpush.msra.mxu0 0.0
    %1303 = vmatpush.msra.mxu0 0.0
    %1304 = vmatpush.msra.mxu0 0.0
    %1305 = vmatpush.msra.mxu0 0.0
    %1306 = vmatpush.msra.mxu0 0.0
    %1307 = vmatpush.msra.mxu0 0.0
    %1308 = vmatpush.msra.mxu0 0.0
    %1309 = vmatpush.msra.mxu0 0.0
    %1310 = vmatpush.msra.mxu0 0.0
    %1311 = vmatpush.msra.mxu0 0.0
    %1312 = vmatpush.msra.mxu0 0.0
    %1313 = vmatpush.msra.mxu0 0.0
    %1314 = vmatpush.msra.mxu0 0.0
    %1315 = vmatpush.msra.mxu0 %v1298
    %1316 = vmatmul.f32.gmra.mxu0 %v1295
    %v1317 = vpop.f32.mrf.mxu0
    %v1318 = vadd.f32 0.0, %v1317
    %1319 = vdwg.mxu0
    %v1321 = vsel %vm147, %v1287, 0
    %1323 = vmatpush.msra.mxu0 0.0
    %1324 = vmatpush.msra.mxu0 0.0
    %1325 = vmatpush.msra.mxu0 0.0
    %1326 = vmatpush.msra.mxu0 0.0
    %1327 = vmatpush.msra.mxu0 0.0
    %1328 = vmatpush.msra.mxu0 0.0
    %1329 = vmatpush.msra.mxu0 0.0
    %1330 = vmatpush.msra.mxu0 0.0
    %1331 = vmatpush.msra.mxu0 0.0
    %1332 = vmatpush.msra.mxu0 0.0
    %1333 = vmatpush.msra.mxu0 0.0
    %1334 = vmatpush.msra.mxu0 0.0
    %1335 = vmatpush.msra.mxu0 %v1291
    %1336 = vmatpush.msra.mxu0 %v1290
    %1337 = vmatpush.msra.mxu0 %v1289
    %1338 = vmatpush.msra.mxu0 %v1288
    %1339 = vmatmul.f32.gmra.mxu0 %v1321
    %v1340 = vpop.f32.mrf.mxu0
    %v1341 = vadd.f32 %v1318, %v1340
    %1342 = vdwg.mxu0
    %v1343 = vadd.f32 %v1341, 1e-08
    %v1344 = vrsqrt.pop %v1343
    %v1345 = vmul.f32 %v1344, %v1343
    %v1346 = vmul.f32 %v1345, %v1344
    %v1347 = vmul.f32 0.5, %v1346
    %v1348 = vsub.f32 1.5, %v1347
    %v1349 = vmul.f32 %v1344, %v1348
    %vm1350 = vweird.f32 %v1343
    %vm1351 = vweird.f32 %v1344
    %vm1352 = vmor %vm1350, %vm1351
    %v1353 = vsel %vm1352, %v1344, %v1349
    %v1354 = vperm.slane %v1353, 0
    %v1355 = vlaneseq
    %v1356 = vshrl.u32 %v1355, 7
    %1358 = vset.pattern.permute.xlu0 %v1356
    %1359 = vperm.xlu0 %1358, %v1354
    %v1360 = vpop.permute.xlu0 %1359
    %v1361 = vlaneseq
    %v1362 = vshrl.u32 %v1361, 7
    %v1363 = vadd.s32 %v1362, 8
    %1364 = vset.pattern.permute.xlu0 %v1363
    %1365 = vperm.xlu0 %1364, %v1354
    %v1366 = vpop.permute.xlu0 %1365
    %v1367 = vlaneseq
    %v1368 = vshrl.u32 %v1367, 7
    %v1369 = vadd.s32 %v1368, 16
    %1370 = vset.pattern.permute.xlu0 %v1369
    %1371 = vperm.xlu0 %1370, %v1354
    %v1372 = vpop.permute.xlu0 %1371
    %v1373 = vlaneseq
    %v1374 = vshrl.u32 %v1373, 7
    %v1375 = vadd.s32 %v1374, 24
    %1376 = vset.pattern.permute.xlu0 %v1375
    %1377 = vperm.xlu0 %1376, %v1354
    %v1378 = vpop.permute.xlu0 %1377
    %v1379 = vperm.slane %v1353, 1
    %v1380 = vlaneseq
    %v1381 = vshrl.u32 %v1380, 7
    %1383 = vset.pattern.permute.xlu0 %v1381
    %1384 = vperm.xlu0 %1383, %v1379
    %v1385 = vpop.permute.xlu0 %1384
    %v1386 = vlaneseq
    %v1387 = vshrl.u32 %v1386, 7
    %v1388 = vadd.s32 %v1387, 8
    %1389 = vset.pattern.permute.xlu0 %v1388
    %1390 = vperm.xlu0 %1389, %v1379
    %v1391 = vpop.permute.xlu0 %1390
    %v1392 = vlaneseq
    %v1393 = vshrl.u32 %v1392, 7
    %v1394 = vadd.s32 %v1393, 16
    %1395 = vset.pattern.permute.xlu0 %v1394
    %1396 = vperm.xlu0 %1395, %v1379
    %v1397 = vpop.permute.xlu0 %1396
    %v1398 = vlaneseq
    %v1399 = vshrl.u32 %v1398, 7
    %v1400 = vadd.s32 %v1399, 24
    %1401 = vset.pattern.permute.xlu0 %v1400
    %1402 = vperm.xlu0 %1401, %v1379
    %v1403 = vpop.permute.xlu0 %1402
    %v1404 = vld [vmem:[%s11] sm:$0xff]
    %v1405 = vld [vmem:[%s11 + $0x8] sm:$0xff]
    %v1406 = vld [vmem:[%s11 + $0x10] sm:$0xff]
    %v1407 = vld [vmem:[%s11 + $0x18] sm:$0xff]
    %v1408 = vmul.f32 %v1360, %v1404
    %v1409 = vmul.f32 %v1366, %v1405
    %v1410 = vmul.f32 %v1372, %v1406
    %v1411 = vmul.f32 %v1378, %v1407
    %v1412 = vmul.f32 %v1385, %v1404
    %v1413 = vmul.f32 %v1391, %v1405
    %v1414 = vmul.f32 %v1397, %v1406
    %v1415 = vmul.f32 %v1403, %v1407
    %v1417 = vrot.slane %v1257, 1
    %v1418 = vperm.slane %v1257, 0
    %v1419 = vperm.slane %v1417, 0
    %v1422 = vmul.f32 %v1408, %v1418
    %v1423 = vmul.f32 %v1409, %v1418
    %v1424 = vmul.f32 %v1410, %v1418
    %v1425 = vmul.f32 %v1411, %v1418
    %v1426 = vmul.f32 %v1412, %v1419
    %v1427 = vmul.f32 %v1413, %v1419
    %v1428 = vmul.f32 %v1414, %v1419
    %v1429 = vmul.f32 %v1415, %v1419
    %v1430 = vmul.f32 %v1422, 1.4142135
    %v1431 = vmul.f32 %v1423, 1.4142135
    %v1432 = vmul.f32 %v1424, 1.4142135
    %v1433 = vmul.f32 %v1425, 1.4142135
    %v1434 = vmul.f32 %v1426, 1.4142135
    %v1435 = vmul.f32 %v1427, 1.4142135
    %v1436 = vmul.f32 %v1428, 1.4142135
    %v1437 = vmul.f32 %v1429, 1.4142135
    %1438 = vst.msk [vmem:[%s19] sm:$0xff] %vm147, %v1430
    %1439 = vst.msk [vmem:[%s19 + $0x8] sm:$0xff] %vm147, %v1431
    %1440 = vst.msk [vmem:[%s19 + $0x10] sm:$0xff] %vm147, %v1432
    %1441 = vst.msk [vmem:[%s19 + $0x18] sm:$0xff] %vm147, %v1433
    %1442 = vst.msk [vmem:[%s19 + $0x20] sm:$0xff] %vm147, %v1434
    %1443 = vst.msk [vmem:[%s19 + $0x28] sm:$0xff] %vm147, %v1435
    %1444 = vst.msk [vmem:[%s19 + $0x30] sm:$0xff] %vm147, %v1436
    %1445 = vst.msk [vmem:[%s19 + $0x38] sm:$0xff] %vm147, %v1437
    %v1446 = vld [vmem:[%s15] sm:$0xff]
    %v1447 = vld [vmem:[%s15 + $0x8] sm:$0xff]
    %v1448 = vld [vmem:[%s15 + $0x10] sm:$0xff]
    %v1449 = vld [vmem:[%s15 + $0x18] sm:$0xff]
    %v1450 = vmul.f32 %v1360, %v1446
    %v1451 = vmul.f32 %v1366, %v1447
    %v1452 = vmul.f32 %v1372, %v1448
    %v1453 = vmul.f32 %v1378, %v1449
    %v1454 = vmul.f32 %v1385, %v1446
    %v1455 = vmul.f32 %v1391, %v1447
    %v1456 = vmul.f32 %v1397, %v1448
    %v1457 = vmul.f32 %v1403, %v1449
    %v1459 = vrot.slane %v1285, 1
    %v1460 = vperm.slane %v1285, 0
    %v1461 = vperm.slane %v1459, 0
    %v1464 = vmul.f32 %v1450, %v1460
    %v1465 = vmul.f32 %v1451, %v1460
    %v1466 = vmul.f32 %v1452, %v1460
    %v1467 = vmul.f32 %v1453, %v1460
    %v1468 = vmul.f32 %v1454, %v1461
    %v1469 = vmul.f32 %v1455, %v1461
    %v1470 = vmul.f32 %v1456, %v1461
    %v1471 = vmul.f32 %v1457, %v1461
    %1472 = vst.msk [vmem:[%s20] sm:$0xff] %vm206, %v1464
    %1473 = vst.msk [vmem:[%s20 + $0x8] sm:$0xff] %vm206, %v1465
    %1474 = vst.msk [vmem:[%s20 + $0x10] sm:$0xff] %vm206, %v1466
    %1475 = vst.msk [vmem:[%s20 + $0x18] sm:$0xff] %vm206, %v1467
    %1476 = vst.msk [vmem:[%s20 + $0x20] sm:$0xff] %vm206, %v1468
    %1477 = vst.msk [vmem:[%s20 + $0x28] sm:$0xff] %vm206, %v1469
    %1478 = vst.msk [vmem:[%s20 + $0x30] sm:$0xff] %vm206, %v1470
    %1479 = vst.msk [vmem:[%s20 + $0x38] sm:$0xff] %vm206, %v1471
    // Predicated region
    $region90: #{_lambda_.2} parent=1 // pred_check
      _
    $region91: #{_lambda_.2} parent=1 // pred_check_branch
      %1481 = sbr.rel (0) target = $region93
    $region92: #{_lambda_.2} parent=1 // pred_region
      _
    $region93: #{_lambda_.2} parent=1 // pred_fallthru
      _
    // Predicated region
    $region94: #{_lambda_.2} parent=1 // pred_check
      _
    $region95: #{_lambda_.2} parent=1 // pred_check_branch
      %1483 = sbr.rel (0) target = $region97
    $region96: #{_lambda_.2} parent=1 // pred_region
      _
    $region97: #{_lambda_.2} parent=1 // pred_fallthru
      _
    // Predicated region
    $region98: #{_lambda_.2} parent=1 // pred_check
      _
    $region99: #{_lambda_.2} parent=1 // pred_check_branch
      %1485 = sbr.rel (0) target = $region101
    $region100: #{_lambda_.2} parent=1 // pred_region
      _
    $region101: #{_lambda_.2} parent=1 // pred_fallthru
      _
    // Predicated region
    $region102: #{_lambda_.2} parent=1 // pred_check
      _
    $region103: #{_lambda_.2} parent=1 // pred_check_branch
      %1487 = sbr.rel (0) target = $region105
    $region104: #{_lambda_.2} parent=1 // pred_region
      _
    $region105: #{_lambda_.2} parent=1 // pred_fallthru
      _
    // Predicated region
    $region106: #{_lambda_.2} parent=1 // pred_check
      _
    $region107: #{_lambda_.2} parent=1 // pred_check_branch
      %1489 = sbr.rel (0) target = $region109
    $region108: #{_lambda_.2} parent=1 // pred_region
      _
    $region109: #{_lambda_.2} parent=1 // pred_fallthru
      _
    // Predicated region
    $region110: #{_lambda_.2} parent=1 // pred_check
      _
    $region111: #{_lambda_.2} parent=1 // pred_check_branch
      %1491 = sbr.rel (0) target = $region113
    $region112: #{_lambda_.2} parent=1 // pred_region
      _
    $region113: #{_lambda_.2} parent=1 // pred_fallthru
      _
    // Predicated region
    $region114: #{_lambda_.2} parent=1 // pred_check
      _
    $region115: #{_lambda_.2} parent=1 // pred_check_branch
      %1493 = sbr.rel (0) target = $region117
    $region116: #{_lambda_.2} parent=1 // pred_region
      _
    $region117: #{_lambda_.2} parent=1 // pred_fallthru
      _
    // Predicated region
    $region118: #{_lambda_.2} parent=1 // pred_check
      _
    $region119: #{_lambda_.2} parent=1 // pred_check_branch
      %1495 = sbr.rel (0) target = $region121
    $region120: #{_lambda_.2} parent=1 // pred_region
      _
    $region121: #{_lambda_.2} parent=1 // pred_fallthru
      _
    %1496 = vsyncpa [#allocation3], 1
    %1497 = vsyncpa [#allocation5], 1
    %1498 = vsyncpa [#allocation8], 1

// kernel: _lambda_.3
$region0: #{_lambda_.3}
  #allocation0 [shape = 'u32[]', space=smem, size = 0x4, offset = 0x4, fixed_abs, tag = 'smem constant byte address 0x4 - core index']
  #allocation1 [shape = 'u32[72,128]{1,0:T(1,128)}', space=vmem, size = 0x9000, scoped, tag = 'internal scratch']
  #allocation2 [shape = 'f32[1,1]{1,0:T(1,128)S(1)}', space=vmem, size = 0x200, scoped, tag = 'scoped memory for _lambda_.3']
  %s0 = inlined_call_operand.vmem [shape: f32[2,3,256], index: 0, kind: input, shape index: {}]
  %s1 = inlined_call_operand.vmem [shape: f32[2,3,256], index: 1, kind: input, shape index: {}]
  %s2 = inlined_call_operand.vmem [shape: f32[9,2,32,3], index: 2, kind: input, shape index: {}]
  %s3 = inlined_call_operand.vmem [shape: f32[32,1], index: 3, kind: input, shape index: {}, may-alias: {3,5,8}]
  %s4 = inlined_call_operand.vmem [shape: f32[2,32,32], index: 4, kind: input, shape index: {}]
  %s5 = inlined_call_operand.vmem [shape: f32[32,1], index: 5, kind: input, shape index: {}, may-alias: {3,5,8}]
  %s6 = inlined_call_operand.vmem [shape: f32[2,32,32], index: 6, kind: input, shape index: {}]
  %s7 = inlined_call_operand.vmem [shape: f32[2,32,3], index: 7, kind: input, shape index: {}]
  %s8 = inlined_call_operand.vmem [shape: f32[32,1], index: 8, kind: input, shape index: {}, may-alias: {3,5,8}]
  %s9 = inlined_call_operand.vmem [shape: f32[1,32], index: 9, kind: input, shape index: {}]
  %s10 = inlined_call_operand.<no memory space> [shape: f32[1,1], index: 10, kind: input, shape index: {}]
  %s11 = inlined_call_operand.vmem [shape: f32[3,32], index: 11, kind: input, shape index: {}]
  %s12 = inlined_call_operand.vmem [shape: f32[3,1], index: 12, kind: input, shape index: {}]
  %s13 = inlined_call_operand.vmem [shape: f32[2,1,256], index: 13, kind: output, shape index: {0}]
  %s14 = inlined_call_operand.vmem [shape: f32[2,3,256], index: 14, kind: output, shape index: {1}]
  %15 = xla_tuple %s13, %s14
  %s16 = sld [smem:[#allocation0]]
  $region131: #{_lambda_.3} parent=0
    _
  %s18 = ssub.s32 1, %s16
  %s19 = scalar_select 0, %s18, %s16
  %v20 = vstv %s10
  %21 = vst [vmem:[#allocation2] sm:$0x1] %v20
  $region1: #{_lambda_.3} parent=0
    #allocation3 [shape = 'u8[294912]{0}', space=vmem, size = 0x48000, scoped, tag = 'input window, operand 2']
    loop: start=0, step=1, limit=4
    $region2: #{_lambda_.3} parent=1 // loop_pre_header
      _
    $region3: #{_lambda_.3} parent=1 // loop_header
      %s23 = sphi 0, %s27
      %p24 = scmp.ge.s32.totalorder %s23, 4
      %s30 = sphi 0, %s42
      %s31 = sphi 0, %s38
      %s32 = sphi 0, %s30
      %s33 = sphi 0, %s31
      %s34 = sphi 0, %s32
      %s35 = sphi 0, %s33
      %s47 = sphi 0, %s49
      %s50 = sphi 0, %s47
      %s51 = sphi 0, %s50
      %s67 = sphi 0, %s51
      %s75 = sphi 0, %s77
      %s78 = sphi 0, %s75
      %s79 = sphi 0, %s78
      %s95 = sphi 0, %s79
      %s101 = sphi 0, %s103
      %s104 = sphi 0, %s101
      %s105 = sphi 0, %s104
      %s121 = sphi 0, %s105
      %s125 = sphi 0, %s125
      %s127 = sphi 0, %s125
      %s128 = sphi 0, %s127
      %s142 = sphi 0, %s128
      %s148 = sphi 0, %s150
      %s151 = sphi 0, %s148
      %s152 = sphi 0, %s151
      %s168 = sphi 0, %s152
      %s172 = sphi 0, %s172
      %s174 = sphi 0, %s172
      %s175 = sphi 0, %s174
      %s189 = sphi 0, %s175
      %s195 = sphi 0, %s197
      %s198 = sphi 0, %s195
      %s199 = sphi 0, %s198
      %s215 = sphi 0, %s199
      %s221 = sphi 0, %s223
      %s224 = sphi 0, %s221
      %s225 = sphi 0, %s224
      %s241 = sphi 0, %s225
      %s245 = sphi 0, %s245
      %s247 = sphi 0, %s245
      %s248 = sphi 0, %s247
      %s262 = sphi 0, %s248
      %s266 = sphi 0, %s266
      %s268 = sphi 0, %s266
      %s269 = sphi 0, %s268
      %s283 = sphi 0, %s269
      %s287 = sphi 0, %s287
      %s289 = sphi 0, %s287
      %s290 = sphi 0, %s289
      %s304 = sphi 0, %s290
      %s308 = sphi 0, %s308
      %s310 = sphi 0, %s308
      %s311 = sphi 0, %s310
      %s325 = sphi 0, %s311
      %s329 = sphi 0, %s329
      %s331 = sphi 0, %s329
      %s332 = sphi 0, %s331
      %s346 = sphi 0, %s332
      %s354 = sphi 0, %s356
      %s357 = sphi 0, %s354
      %s358 = sphi 0, %s357
      %s374 = sphi 0, %s358
      %s382 = sphi 0, %s384
      %s385 = sphi 0, %s382
      %s386 = sphi 0, %s385
      %s402 = sphi 0, %s386
    $region4: #{_lambda_.3} parent=1 // loop_header_branch
      %26 = sbr.rel (%p24) target = $region8
    $region5: #{_lambda_.3} parent=1 // loop_body
      %s28 = ssub.s32 %s23, 1
      %s29 = ssub.s32 %s23, 2
      %s36 = sadd.s32 1, %s31
      %p37 = scmp.ge.s32.totalorder %s36, 1
      %s38 = scalar_select %p37, 0, %s36
      %s39 = sadd.s32 1, %s30
      %s40 = scalar_select %p37, %s39, %s30
      %p41 = scmp.ge.s32.totalorder %s40, 2
      %s42 = scalar_select %p41, 0, %s40
      %s43 = ssub.s32 %s30, %s42
      %s44 = ssub.s32 %s31, %s38
      %s45 = sor.u32 %s43, %s44
      %p46 = scmp.eq.s32.totalorder %s45, 0
      %s48 = sadd.s32 %s47, 1
      %s49 = scalar_select %p46, %s47, %s48
      %p52 = pneg %p46
      %p53 = scmp.eq.s32.totalorder %s23, 1
      %p54 = por %p52, %p53
      %p55 = scmp.ne.s32.totalorder %s47, %s50
      %p56 = scmp.eq.s32.totalorder %s23, 0
      %p57 = por %p55, %p56
      %p58 = scmp.ne.s32.totalorder %s47, %s50
      %p59 = scmp.eq.s32.totalorder %s28, 1
      %p60 = por %p58, %p59
      %p61 = scmp.ne.s32.totalorder %s50, %s51
      %p62 = scmp.eq.s32.totalorder %s28, 0
      %p63 = por %p61, %p62
      %p64 = scmp.ne.s32.totalorder %s50, %s51
      %p65 = scmp.eq.s32.totalorder %s29, 1
      %p66 = por %p64, %p65
      %p68 = scmp.ne.s32.totalorder %s51, %s67
      %p69 = scmp.eq.s32.totalorder %s29, 0
      %p70 = por %p68, %p69
      %s71 = ssub.s32 %s30, %s42
      %s72 = ssub.s32 %s31, %s38
      %s73 = sor.u32 %s71, %s72
      %p74 = scmp.eq.s32.totalorder %s73, 0
      %s76 = sadd.s32 %s75, 1
      %s77 = scalar_select %p74, %s75, %s76
      %p80 = pneg %p74
      %p81 = scmp.eq.s32.totalorder %s23, 1
      %p82 = por %p80, %p81
      %p83 = scmp.ne.s32.totalorder %s75, %s78
      %p84 = scmp.eq.s32.totalorder %s23, 0
      %p85 = por %p83, %p84
      %p86 = scmp.ne.s32.totalorder %s75, %s78
      %p87 = scmp.eq.s32.totalorder %s28, 1
      %p88 = por %p86, %p87
      %p89 = scmp.ne.s32.totalorder %s78, %s79
      %p90 = scmp.eq.s32.totalorder %s28, 0
      %p91 = por %p89, %p90
      %p92 = scmp.ne.s32.totalorder %s78, %s79
      %p93 = scmp.eq.s32.totalorder %s29, 1
      %p94 = por %p92, %p93
      %p96 = scmp.ne.s32.totalorder %s79, %s95
      %p97 = scmp.eq.s32.totalorder %s29, 0
      %p98 = por %p96, %p97
      %s99 = ssub.s32 %s30, %s42
      %p100 = scmp.eq.s32.totalorder %s99, 0
      %s102 = sadd.s32 %s101, 1
      %s103 = scalar_select %p100, %s101, %s102
      %p106 = pneg %p100
      %p107 = scmp.eq.s32.totalorder %s23, 1
      %p108 = por %p106, %p107
      %p109 = scmp.ne.s32.totalorder %s101, %s104
      %p110 = scmp.eq.s32.totalorder %s23, 0
      %p111 = por %p109, %p110
      %p112 = scmp.ne.s32.totalorder %s101, %s104
      %p113 = scmp.eq.s32.totalorder %s28, 1
      %p114 = por %p112, %p113
      %p115 = scmp.ne.s32.totalorder %s104, %s105
      %p116 = scmp.eq.s32.totalorder %s28, 0
      %p117 = por %p115, %p116
      %p118 = scmp.ne.s32.totalorder %s104, %s105
      %p119 = scmp.eq.s32.totalorder %s29, 1
      %p120 = por %p118, %p119
      %p122 = scmp.ne.s32.totalorder %s105, %s121
      %p123 = scmp.eq.s32.totalorder %s29, 0
      %p124 = por %p122, %p123
      %s126 = sadd.s32 %s125, 1
      %p129 = scmp.eq.s32.totalorder %s23, 1
      %p130 = scmp.ne.s32.totalorder %s125, %s127
      %p131 = scmp.eq.s32.totalorder %s23, 0
      %p132 = por %p130, %p131
      %p133 = scmp.ne.s32.totalorder %s125, %s127
      %p134 = scmp.eq.s32.totalorder %s28, 1
      %p135 = por %p133, %p134
      %p136 = scmp.ne.s32.totalorder %s127, %s128
      %p137 = scmp.eq.s32.totalorder %s28, 0
      %p138 = por %p136, %p137
      %p139 = scmp.ne.s32.totalorder %s127, %s128
      %p140 = scmp.eq.s32.totalorder %s29, 1
      %p141 = por %p139, %p140
      %p143 = scmp.ne.s32.totalorder %s128, %s142
      %p144 = scmp.eq.s32.totalorder %s29, 0
      %p145 = por %p143, %p144
      %s146 = ssub.s32 %s30, %s42
      %p147 = scmp.eq.s32.totalorder %s146, 0
      %s149 = sadd.s32 %s148, 1
      %s150 = scalar_select %p147, %s148, %s149
      %p153 = pneg %p147
      %p154 = scmp.eq.s32.totalorder %s23, 1
      %p155 = por %p153, %p154
      %p156 = scmp.ne.s32.totalorder %s148, %s151
      %p157 = scmp.eq.s32.totalorder %s23, 0
      %p158 = por %p156, %p157
      %p159 = scmp.ne.s32.totalorder %s148, %s151
      %p160 = scmp.eq.s32.totalorder %s28, 1
      %p161 = por %p159, %p160
      %p162 = scmp.ne.s32.totalorder %s151, %s152
      %p163 = scmp.eq.s32.totalorder %s28, 0
      %p164 = por %p162, %p163
      %p165 = scmp.ne.s32.totalorder %s151, %s152
      %p166 = scmp.eq.s32.totalorder %s29, 1
      %p167 = por %p165, %p166
      %p169 = scmp.ne.s32.totalorder %s152, %s168
      %p170 = scmp.eq.s32.totalorder %s29, 0
      %p171 = por %p169, %p170
      %s173 = sadd.s32 %s172, 1
      %p176 = scmp.eq.s32.totalorder %s23, 1
      %p177 = scmp.ne.s32.totalorder %s172, %s174
      %p178 = scmp.eq.s32.totalorder %s23, 0
      %p179 = por %p177, %p178
      %p180 = scmp.ne.s32.totalorder %s172, %s174
      %p181 = scmp.eq.s32.totalorder %s28, 1
      %p182 = por %p180, %p181
      %p183 = scmp.ne.s32.totalorder %s174, %s175
      %p184 = scmp.eq.s32.totalorder %s28, 0
      %p185 = por %p183, %p184
      %p186 = scmp.ne.s32.totalorder %s174, %s175
      %p187 = scmp.eq.s32.totalorder %s29, 1
      %p188 = por %p186, %p187
      %p190 = scmp.ne.s32.totalorder %s175, %s189
      %p191 = scmp.eq.s32.totalorder %s29, 0
      %p192 = por %p190, %p191
      %s193 = ssub.s32 %s30, %s42
      %p194 = scmp.eq.s32.totalorder %s193, 0
      %s196 = sadd.s32 %s195, 1
      %s197 = scalar_select %p194, %s195, %s196
      %p200 = pneg %p194
      %p201 = scmp.eq.s32.totalorder %s23, 1
      %p202 = por %p200, %p201
      %p203 = scmp.ne.s32.totalorder %s195, %s198
      %p204 = scmp.eq.s32.totalorder %s23, 0
      %p205 = por %p203, %p204
      %p206 = scmp.ne.s32.totalorder %s195, %s198
      %p207 = scmp.eq.s32.totalorder %s28, 1
      %p208 = por %p206, %p207
      %p209 = scmp.ne.s32.totalorder %s198, %s199
      %p210 = scmp.eq.s32.totalorder %s28, 0
      %p211 = por %p209, %p210
      %p212 = scmp.ne.s32.totalorder %s198, %s199
      %p213 = scmp.eq.s32.totalorder %s29, 1
      %p214 = por %p212, %p213
      %p216 = scmp.ne.s32.totalorder %s199, %s215
      %p217 = scmp.eq.s32.totalorder %s29, 0
      %p218 = por %p216, %p217
      %s219 = ssub.s32 %s30, %s42
      %p220 = scmp.eq.s32.totalorder %s219, 0
      %s222 = sadd.s32 %s221, 1
      %s223 = scalar_select %p220, %s221, %s222
      %p226 = pneg %p220
      %p227 = scmp.eq.s32.totalorder %s23, 1
      %p228 = por %p226, %p227
      %p229 = scmp.ne.s32.totalorder %s221, %s224
      %p230 = scmp.eq.s32.totalorder %s23, 0
      %p231 = por %p229, %p230
      %p232 = scmp.ne.s32.totalorder %s221, %s224
      %p233 = scmp.eq.s32.totalorder %s28, 1
      %p234 = por %p232, %p233
      %p235 = scmp.ne.s32.totalorder %s224, %s225
      %p236 = scmp.eq.s32.totalorder %s28, 0
      %p237 = por %p235, %p236
      %p238 = scmp.ne.s32.totalorder %s224, %s225
      %p239 = scmp.eq.s32.totalorder %s29, 1
      %p240 = por %p238, %p239
      %p242 = scmp.ne.s32.totalorder %s225, %s241
      %p243 = scmp.eq.s32.totalorder %s29, 0
      %p244 = por %p242, %p243
      %s246 = sadd.s32 %s245, 1
      %p249 = scmp.eq.s32.totalorder %s23, 1
      %p250 = scmp.ne.s32.totalorder %s245, %s247
      %p251 = scmp.eq.s32.totalorder %s23, 0
      %p252 = por %p250, %p251
      %p253 = scmp.ne.s32.totalorder %s245, %s247
      %p254 = scmp.eq.s32.totalorder %s28, 1
      %p255 = por %p253, %p254
      %p256 = scmp.ne.s32.totalorder %s247, %s248
      %p257 = scmp.eq.s32.totalorder %s28, 0
      %p258 = por %p256, %p257
      %p259 = scmp.ne.s32.totalorder %s247, %s248
      %p260 = scmp.eq.s32.totalorder %s29, 1
      %p261 = por %p259, %p260
      %p263 = scmp.ne.s32.totalorder %s248, %s262
      %p264 = scmp.eq.s32.totalorder %s29, 0
      %p265 = por %p263, %p264
      %s267 = sadd.s32 %s266, 1
      %p270 = scmp.eq.s32.totalorder %s23, 1
      %p271 = scmp.ne.s32.totalorder %s266, %s268
      %p272 = scmp.eq.s32.totalorder %s23, 0
      %p273 = por %p271, %p272
      %p274 = scmp.ne.s32.totalorder %s266, %s268
      %p275 = scmp.eq.s32.totalorder %s28, 1
      %p276 = por %p274, %p275
      %p277 = scmp.ne.s32.totalorder %s268, %s269
      %p278 = scmp.eq.s32.totalorder %s28, 0
      %p279 = por %p277, %p278
      %p280 = scmp.ne.s32.totalorder %s268, %s269
      %p281 = scmp.eq.s32.totalorder %s29, 1
      %p282 = por %p280, %p281
      %p284 = scmp.ne.s32.totalorder %s269, %s283
      %p285 = scmp.eq.s32.totalorder %s29, 0
      %p286 = por %p284, %p285
      %s288 = sadd.s32 %s287, 1
      %p291 = scmp.eq.s32.totalorder %s23, 1
      %p292 = scmp.ne.s32.totalorder %s287, %s289
      %p293 = scmp.eq.s32.totalorder %s23, 0
      %p294 = por %p292, %p293
      %p295 = scmp.ne.s32.totalorder %s287, %s289
      %p296 = scmp.eq.s32.totalorder %s28, 1
      %p297 = por %p295, %p296
      %p298 = scmp.ne.s32.totalorder %s289, %s290
      %p299 = scmp.eq.s32.totalorder %s28, 0
      %p300 = por %p298, %p299
      %p301 = scmp.ne.s32.totalorder %s289, %s290
      %p302 = scmp.eq.s32.totalorder %s29, 1
      %p303 = por %p301, %p302
      %p305 = scmp.ne.s32.totalorder %s290, %s304
      %p306 = scmp.eq.s32.totalorder %s29, 0
      %p307 = por %p305, %p306
      %s309 = sadd.s32 %s308, 1
      %p312 = scmp.eq.s32.totalorder %s23, 1
      %p313 = scmp.ne.s32.totalorder %s308, %s310
      %p314 = scmp.eq.s32.totalorder %s23, 0
      %p315 = por %p313, %p314
      %p316 = scmp.ne.s32.totalorder %s308, %s310
      %p317 = scmp.eq.s32.totalorder %s28, 1
      %p318 = por %p316, %p317
      %p319 = scmp.ne.s32.totalorder %s310, %s311
      %p320 = scmp.eq.s32.totalorder %s28, 0
      %p321 = por %p319, %p320
      %p322 = scmp.ne.s32.totalorder %s310, %s311
      %p323 = scmp.eq.s32.totalorder %s29, 1
      %p324 = por %p322, %p323
      %p326 = scmp.ne.s32.totalorder %s311, %s325
      %p327 = scmp.eq.s32.totalorder %s29, 0
      %p328 = por %p326, %p327
      %s330 = sadd.s32 %s329, 1
      %p333 = scmp.eq.s32.totalorder %s23, 1
      %p334 = scmp.ne.s32.totalorder %s329, %s331
      %p335 = scmp.eq.s32.totalorder %s23, 0
      %p336 = por %p334, %p335
      %p337 = scmp.ne.s32.totalorder %s329, %s331
      %p338 = scmp.eq.s32.totalorder %s28, 1
      %p339 = por %p337, %p338
      %p340 = scmp.ne.s32.totalorder %s331, %s332
      %p341 = scmp.eq.s32.totalorder %s28, 0
      %p342 = por %p340, %p341
      %p343 = scmp.ne.s32.totalorder %s331, %s332
      %p344 = scmp.eq.s32.totalorder %s29, 1
      %p345 = por %p343, %p344
      %p347 = scmp.ne.s32.totalorder %s332, %s346
      %p348 = scmp.eq.s32.totalorder %s29, 0
      %p349 = por %p347, %p348
      %s350 = ssub.s32 %s30, %s42
      %s351 = ssub.s32 %s31, %s38
      %s352 = sor.u32 %s350, %s351
      %p353 = scmp.eq.s32.totalorder %s352, 0
      %s355 = sadd.s32 %s354, 1
      %s356 = scalar_select %p353, %s354, %s355
      %p359 = pneg %p353
      %p360 = scmp.eq.s32.totalorder %s23, 1
      %p361 = por %p359, %p360
      %p362 = scmp.ne.s32.totalorder %s354, %s357
      %p363 = scmp.eq.s32.totalorder %s23, 0
      %p364 = por %p362, %p363
      %p365 = scmp.ne.s32.totalorder %s354, %s357
      %p366 = scmp.eq.s32.totalorder %s28, 1
      %p367 = por %p365, %p366
      %p368 = scmp.ne.s32.totalorder %s357, %s358
      %p369 = scmp.eq.s32.totalorder %s28, 0
      %p370 = por %p368, %p369
      %p371 = scmp.ne.s32.totalorder %s357, %s358
      %p372 = scmp.eq.s32.totalorder %s29, 1
      %p373 = por %p371, %p372
      %p375 = scmp.ne.s32.totalorder %s358, %s374
      %p376 = scmp.eq.s32.totalorder %s29, 0
      %p377 = por %p375, %p376
      %s378 = ssub.s32 %s30, %s42
      %s379 = ssub.s32 %s31, %s38
      %s380 = sor.u32 %s378, %s379
      %p381 = scmp.eq.s32.totalorder %s380, 0
      %s383 = sadd.s32 %s382, 1
      %s384 = scalar_select %p381, %s382, %s383
      %p387 = pneg %p381
      %p388 = scmp.eq.s32.totalorder %s23, 1
      %p389 = por %p387, %p388
      %p390 = scmp.ne.s32.totalorder %s382, %s385
      %p391 = scmp.eq.s32.totalorder %s23, 0
      %p392 = por %p390, %p391
      %p393 = scmp.ne.s32.totalorder %s382, %s385
      %p394 = scmp.eq.s32.totalorder %s28, 1
      %p395 = por %p393, %p394
      %p396 = scmp.ne.s32.totalorder %s385, %s386
      %p397 = scmp.eq.s32.totalorder %s28, 0
      %p398 = por %p396, %p397
      %p399 = scmp.ne.s32.totalorder %s385, %s386
      %p400 = scmp.eq.s32.totalorder %s29, 1
      %p401 = por %p399, %p400
      %p403 = scmp.ne.s32.totalorder %s386, %s402
      %p404 = scmp.eq.s32.totalorder %s29, 0
      %p405 = por %p403, %p404
      %p406 = scmp.le.s32.totalorder 1, %s23
      %p407 = scmp.lt.s32.totalorder %s23, 3
      %p408 = pnand %p406, %p407
      %p409 = pneg %p408
      // Predicated region
      $region9: #{_lambda_.3} parent=5 // pred_check
        _
      $region10: #{_lambda_.3} parent=5 // pred_check_branch
        %411 = sbr.rel (%p408) target = $region12
      $region11: #{_lambda_.3} parent=5 // pred_region
        %s412 = ssub.s32 %s23, 1
        // Predicated region
        $region13: #{_lambda_.3} parent=11 // pred_check
          %p413 = pneg %p138
        $region14: #{_lambda_.3} parent=11 // pred_check_branch
          %415 = sbr.rel (%p413) target = $region16
        $region15: #{_lambda_.3} parent=11 // pred_region
          _
        $region16: #{_lambda_.3} parent=11 // pred_fallthru
          _
        // Predicated region
        $region17: #{_lambda_.3} parent=11 // pred_check
          %p416 = pneg %p185
        $region18: #{_lambda_.3} parent=11 // pred_check_branch
          %418 = sbr.rel (%p416) target = $region20
        $region19: #{_lambda_.3} parent=11 // pred_region
          _
        $region20: #{_lambda_.3} parent=11 // pred_fallthru
          _
        // Predicated region
        $region21: #{_lambda_.3} parent=11 // pred_check
          %p419 = pneg %p258
        $region22: #{_lambda_.3} parent=11 // pred_check_branch
          %421 = sbr.rel (%p419) target = $region24
        $region23: #{_lambda_.3} parent=11 // pred_region
          _
        $region24: #{_lambda_.3} parent=11 // pred_fallthru
          _
        // Predicated region
        $region25: #{_lambda_.3} parent=11 // pred_check
          %p422 = pneg %p279
        $region26: #{_lambda_.3} parent=11 // pred_check_branch
          %424 = sbr.rel (%p422) target = $region28
        $region27: #{_lambda_.3} parent=11 // pred_region
          _
        $region28: #{_lambda_.3} parent=11 // pred_fallthru
          _
        // Predicated region
        $region29: #{_lambda_.3} parent=11 // pred_check
          %p425 = pneg %p300
        $region30: #{_lambda_.3} parent=11 // pred_check_branch
          %427 = sbr.rel (%p425) target = $region32
        $region31: #{_lambda_.3} parent=11 // pred_region
          _
        $region32: #{_lambda_.3} parent=11 // pred_fallthru
          _
        // Predicated region
        $region33: #{_lambda_.3} parent=11 // pred_check
          %p428 = pneg %p321
        $region34: #{_lambda_.3} parent=11 // pred_check_branch
          %430 = sbr.rel (%p428) target = $region36
        $region35: #{_lambda_.3} parent=11 // pred_region
          _
        $region36: #{_lambda_.3} parent=11 // pred_fallthru
          _
        // Predicated region
        $region37: #{_lambda_.3} parent=11 // pred_check
          %p431 = pneg %p342
        $region38: #{_lambda_.3} parent=11 // pred_check_branch
          %433 = sbr.rel (%p431) target = $region40
        $region39: #{_lambda_.3} parent=11 // pred_region
          _
        $region40: #{_lambda_.3} parent=11 // pred_fallthru
          _
      $region12: #{_lambda_.3} parent=5 // pred_fallthru
        _
      %p434 = scmp.lt.s32.totalorder %s23, 2
      // Predicated region
      $region41: #{_lambda_.3} parent=5 // pred_check
        %p435 = pneg %p434
      $region42: #{_lambda_.3} parent=5 // pred_check_branch
        %437 = sbr.rel (%p435) target = $region44
      $region43: #{_lambda_.3} parent=5 // pred_region
        // Predicated region
        $region45: #{_lambda_.3} parent=43 // pred_check
          %p438 = pneg %p57
        $region46: #{_lambda_.3} parent=43 // pred_check_branch
          %440 = sbr.rel (%p438) target = $region48
        $region47: #{_lambda_.3} parent=43 // pred_region
          %s441 = smul.u32 2, %s31
          %p442 = scmp.lt.s32.totalorder %s30, 1
          %s443 = scalar_select %p442, %s30, 1
          %p444 = scmp.lt.s32.totalorder %s441, 1
          %s445 = scalar_select %p444, %s441, 1
          %s446 = smul.addr %s443, 2
          %s447 = sadd.s32 %s445, %s446
          %s448 = smul.addr %s447, 4
          %s449 = scalar_lea.vmem %s0, %s448
          %s450 = smul.u32 2, %s31
        $region48: #{_lambda_.3} parent=43 // pred_fallthru
          _
        // Predicated region
        $region49: #{_lambda_.3} parent=43 // pred_check
          %p451 = pneg %p85
        $region50: #{_lambda_.3} parent=43 // pred_check_branch
          %453 = sbr.rel (%p451) target = $region52
        $region51: #{_lambda_.3} parent=43 // pred_region
          %s454 = smul.u32 2, %s31
          %p455 = scmp.lt.s32.totalorder %s30, 1
          %s456 = scalar_select %p455, %s30, 1
          %p457 = scmp.lt.s32.totalorder %s454, 1
          %s458 = scalar_select %p457, %s454, 1
          %s459 = smul.addr %s456, 2
          %s460 = sadd.s32 %s458, %s459
          %s461 = smul.addr %s460, 4
          %s462 = scalar_lea.vmem %s1, %s461
          %s463 = smul.u32 2, %s31
        $region52: #{_lambda_.3} parent=43 // pred_fallthru
          _
        // Predicated region
        $region53: #{_lambda_.3} parent=43 // pred_check
          %p464 = pneg %p111
        $region54: #{_lambda_.3} parent=43 // pred_check_branch
          %466 = sbr.rel (%p464) target = $region56
        $region55: #{_lambda_.3} parent=43 // pred_region
          %s467 = sand.u32 %s101, 1
          %s468 = sand.u32 %s101, 1
          %s469 = smul.addr %s468, 288
          %s470 = scalar_lea.vmem [#allocation3], %s469
          %s471 = smul.addr %s30, 4
          %s472 = smul.addr %s471, 8
          %s473 = scalar_lea.vmem %s2, %s472
          // Predicated region
          $region57: #{_lambda_.3} parent=55 // pred_check
            _
          $region58: #{_lambda_.3} parent=55 // pred_check_branch
            %475 = sbr.rel (0) target = $region60
          $region59: #{_lambda_.3} parent=55 // pred_region
            // Predicated region
            $region61: #{_lambda_.3} parent=59 // pred_check
              _
            $region62: #{_lambda_.3} parent=59 // pred_check_branch
              %477 = sbr.rel (0) target = $region64
            $region63: #{_lambda_.3} parent=59 // pred_region
              // Predicated region
              $region76: #{_lambda_.3} parent=63 // pred_check
                _
              $region77: #{_lambda_.3} parent=63 // pred_check_branch
                %563 = sbr.rel (0) target = $region79
              $region78: #{_lambda_.3} parent=63 // pred_region
                loop: start=0, step=1, limit=1
                $region80: #{_lambda_.3} parent=78 // loop_pre_header
                  _
                $region81: #{_lambda_.3} parent=78 // loop_header
                  %s565 = sphi 0, %s569
                  %p566 = scmp.ge.s32.totalorder %s565, 1
                  %s570 = sphi %s473, %s473
                  %s571 = sphi %s470, %s470
                $region82: #{_lambda_.3} parent=78 // loop_header_branch
                  %568 = sbr.rel (%p566) target = $region86
                $region83: #{_lambda_.3} parent=78 // loop_body
                  %v572 = vld [vmem:[%s570] sm:$0xff]
                  %573 = vst [vmem:[%s571] sm:$0xff] %v572
                  %v574 = vld [vmem:[%s570 + $0x8] sm:$0xff]
                  %575 = vst [vmem:[%s571 + $0x8] sm:$0xff] %v574
                  %v576 = vld [vmem:[%s570 + $0x10] sm:$0xff]
                  %577 = vst [vmem:[%s571 + $0x10] sm:$0xff] %v576
                  %v578 = vld [vmem:[%s570 + $0x18] sm:$0xff]
                  %579 = vst [vmem:[%s571 + $0x18] sm:$0xff] %v578
                  %v580 = vld [vmem:[%s570 + $0x40] sm:$0xff]
                  %581 = vst [vmem:[%s571 + $0x20] sm:$0xff] %v580
                  %v582 = vld [vmem:[%s570 + $0x48] sm:$0xff]
                  %583 = vst [vmem:[%s571 + $0x28] sm:$0xff] %v582
                  %v584 = vld [vmem:[%s570 + $0x50] sm:$0xff]
                  %585 = vst [vmem:[%s571 + $0x30] sm:$0xff] %v584
                  %v586 = vld [vmem:[%s570 + $0x58] sm:$0xff]
                  %587 = vst [vmem:[%s571 + $0x38] sm:$0xff] %v586
                  %v588 = vld [vmem:[%s570 + $0x80] sm:$0xff]
                  %589 = vst [vmem:[%s571 + $0x40] sm:$0xff] %v588
                  %v590 = vld [vmem:[%s570 + $0x88] sm:$0xff]
                  %591 = vst [vmem:[%s571 + $0x48] sm:$0xff] %v590
                  %v592 = vld [vmem:[%s570 + $0x90] sm:$0xff]
                  %593 = vst [vmem:[%s571 + $0x50] sm:$0xff] %v592
                  %v594 = vld [vmem:[%s570 + $0x98] sm:$0xff]
                  %595 = vst [vmem:[%s571 + $0x58] sm:$0xff] %v594
                  %v596 = vld [vmem:[%s570 + $0xc0] sm:$0xff]
                  %597 = vst [vmem:[%s571 + $0x60] sm:$0xff] %v596
                  %v598 = vld [vmem:[%s570 + $0xc8] sm:$0xff]
                  %599 = vst [vmem:[%s571 + $0x68] sm:$0xff] %v598
                  %v600 = vld [vmem:[%s570 + $0xd0] sm:$0xff]
                  %601 = vst [vmem:[%s571 + $0x70] sm:$0xff] %v600
                  %v602 = vld [vmem:[%s570 + $0xd8] sm:$0xff]
                  %603 = vst [vmem:[%s571 + $0x78] sm:$0xff] %v602
                  %v604 = vld [vmem:[%s570 + $0x100] sm:$0xff]
                  %605 = vst [vmem:[%s571 + $0x80] sm:$0xff] %v604
                  %v606 = vld [vmem:[%s570 + $0x108] sm:$0xff]
                  %607 = vst [vmem:[%s571 + $0x88] sm:$0xff] %v606
                  %v608 = vld [vmem:[%s570 + $0x110] sm:$0xff]
                  %609 = vst [vmem:[%s571 + $0x90] sm:$0xff] %v608
                  %v610 = vld [vmem:[%s570 + $0x118] sm:$0xff]
                  %611 = vst [vmem:[%s571 + $0x98] sm:$0xff] %v610
                  %v612 = vld [vmem:[%s570 + $0x140] sm:$0xff]
                  %613 = vst [vmem:[%s571 + $0xa0] sm:$0xff] %v612
                  %v614 = vld [vmem:[%s570 + $0x148] sm:$0xff]
                  %615 = vst [vmem:[%s571 + $0xa8] sm:$0xff] %v614
                  %v616 = vld [vmem:[%s570 + $0x150] sm:$0xff]
                  %617 = vst [vmem:[%s571 + $0xb0] sm:$0xff] %v616
                  %v618 = vld [vmem:[%s570 + $0x158] sm:$0xff]
                  %619 = vst [vmem:[%s571 + $0xb8] sm:$0xff] %v618
                  %v620 = vld [vmem:[%s570 + $0x180] sm:$0xff]
                  %621 = vst [vmem:[%s571 + $0xc0] sm:$0xff] %v620
                  %v622 = vld [vmem:[%s570 + $0x188] sm:$0xff]
                  %623 = vst [vmem:[%s571 + $0xc8] sm:$0xff] %v622
                  %v624 = vld [vmem:[%s570 + $0x190] sm:$0xff]
                  %625 = vst [vmem:[%s571 + $0xd0] sm:$0xff] %v624
                  %v626 = vld [vmem:[%s570 + $0x198] sm:$0xff]
                  %627 = vst [vmem:[%s571 + $0xd8] sm:$0xff] %v626
                  %v628 = vld [vmem:[%s570 + $0x1c0] sm:$0xff]
                  %629 = vst [vmem:[%s571 + $0xe0] sm:$0xff] %v628
                  %v630 = vld [vmem:[%s570 + $0x1c8] sm:$0xff]
                  %631 = vst [vmem:[%s571 + $0xe8] sm:$0xff] %v630
                  %v632 = vld [vmem:[%s570 + $0x1d0] sm:$0xff]
                  %633 = vst [vmem:[%s571 + $0xf0] sm:$0xff] %v632
                  %v634 = vld [vmem:[%s570 + $0x1d8] sm:$0xff]
                  %635 = vst [vmem:[%s571 + $0xf8] sm:$0xff] %v634
                  %v636 = vld [vmem:[%s570 + $0x200] sm:$0xff]
                  %637 = vst [vmem:[%s571 + $0x100] sm:$0xff] %v636
                  %v638 = vld [vmem:[%s570 + $0x208] sm:$0xff]
                  %639 = vst [vmem:[%s571 + $0x108] sm:$0xff] %v638
                  %v640 = vld [vmem:[%s570 + $0x210] sm:$0xff]
                  %641 = vst [vmem:[%s571 + $0x110] sm:$0xff] %v640
                  %v642 = vld [vmem:[%s570 + $0x218] sm:$0xff]
                  %643 = vst [vmem:[%s571 + $0x118] sm:$0xff] %v642
                $region84: #{_lambda_.3} parent=78 // loop_footer
                  %s569 = sadd.s32 1, %s565
                $region85: #{_lambda_.3} parent=78 // loop_footer_branch
                  %564 = sbr.rel target = $region81
                $region86: #{_lambda_.3} parent=78 // loop_exit
                  _
              $region79: #{_lambda_.3} parent=63 // pred_fallthru
                _
              // Predicated region
              $region87: #{_lambda_.3} parent=63 // pred_check
                _
              $region88: #{_lambda_.3} parent=63 // pred_check_branch
                %645 = sbr.rel target = $region90
              $region89: #{_lambda_.3} parent=63 // pred_region
                _
              $region90: #{_lambda_.3} parent=63 // pred_fallthru
                _
            $region64: #{_lambda_.3} parent=59 // pred_fallthru
              _
            // Predicated region
            $region65: #{_lambda_.3} parent=59 // pred_check
              _
            $region66: #{_lambda_.3} parent=59 // pred_check_branch
              %479 = sbr.rel target = $region68
            $region67: #{_lambda_.3} parent=59 // pred_region
              %s481 = ssub.s32 256, 1
              loop: start=0, step=1, limit=1
              $region69: #{_lambda_.3} parent=67 // loop_pre_header
                _
              $region70: #{_lambda_.3} parent=67 // loop_header
                %s483 = sphi 0, %s487
                %p484 = scmp.ge.s32.totalorder %s483, 1
                %s488 = sphi %s473, %s473
                %s489 = sphi %s470, %s470
              $region71: #{_lambda_.3} parent=67 // loop_header_branch
                %486 = sbr.rel (%p484) target = $region75
              $region72: #{_lambda_.3} parent=67 // loop_body
                %v490 = vld [vmem:[%s488] sm:%s481]
                %491 = vst [vmem:[%s489] sm:%s481] %v490
                %v492 = vld [vmem:[%s488 + $0x8] sm:%s481]
                %493 = vst [vmem:[%s489 + $0x8] sm:%s481] %v492
                %v494 = vld [vmem:[%s488 + $0x10] sm:%s481]
                %495 = vst [vmem:[%s489 + $0x10] sm:%s481] %v494
                %v496 = vld [vmem:[%s488 + $0x18] sm:%s481]
                %497 = vst [vmem:[%s489 + $0x18] sm:%s481] %v496
                %v498 = vld [vmem:[%s488 + $0x40] sm:%s481]
                %499 = vst [vmem:[%s489 + $0x20] sm:%s481] %v498
                %v500 = vld [vmem:[%s488 + $0x48] sm:%s481]
                %501 = vst [vmem:[%s489 + $0x28] sm:%s481] %v500
                %v502 = vld [vmem:[%s488 + $0x50] sm:%s481]
                %503 = vst [vmem:[%s489 + $0x30] sm:%s481] %v502
                %v504 = vld [vmem:[%s488 + $0x58] sm:%s481]
                %505 = vst [vmem:[%s489 + $0x38] sm:%s481] %v504
                %v506 = vld [vmem:[%s488 + $0x80] sm:%s481]
                %507 = vst [vmem:[%s489 + $0x40] sm:%s481] %v506
                %v508 = vld [vmem:[%s488 + $0x88] sm:%s481]
                %509 = vst [vmem:[%s489 + $0x48] sm:%s481] %v508
                %v510 = vld [vmem:[%s488 + $0x90] sm:%s481]
                %511 = vst [vmem:[%s489 + $0x50] sm:%s481] %v510
                %v512 = vld [vmem:[%s488 + $0x98] sm:%s481]
                %513 = vst [vmem:[%s489 + $0x58] sm:%s481] %v512
                %v514 = vld [vmem:[%s488 + $0xc0] sm:%s481]
                %515 = vst [vmem:[%s489 + $0x60] sm:%s481] %v514
                %v516 = vld [vmem:[%s488 + $0xc8] sm:%s481]
                %517 = vst [vmem:[%s489 + $0x68] sm:%s481] %v516
                %v518 = vld [vmem:[%s488 + $0xd0] sm:%s481]
                %519 = vst [vmem:[%s489 + $0x70] sm:%s481] %v518
                %v520 = vld [vmem:[%s488 + $0xd8] sm:%s481]
                %521 = vst [vmem:[%s489 + $0x78] sm:%s481] %v520
                %v522 = vld [vmem:[%s488 + $0x100] sm:%s481]
                %523 = vst [vmem:[%s489 + $0x80] sm:%s481] %v522
                %v524 = vld [vmem:[%s488 + $0x108] sm:%s481]
                %525 = vst [vmem:[%s489 + $0x88] sm:%s481] %v524
                %v526 = vld [vmem:[%s488 + $0x110] sm:%s481]
                %527 = vst [vmem:[%s489 + $0x90] sm:%s481] %v526
                %v528 = vld [vmem:[%s488 + $0x118] sm:%s481]
                %529 = vst [vmem:[%s489 + $0x98] sm:%s481] %v528
                %v530 = vld [vmem:[%s488 + $0x140] sm:%s481]
                %531 = vst [vmem:[%s489 + $0xa0] sm:%s481] %v530
                %v532 = vld [vmem:[%s488 + $0x148] sm:%s481]
                %533 = vst [vmem:[%s489 + $0xa8] sm:%s481] %v532
                %v534 = vld [vmem:[%s488 + $0x150] sm:%s481]
                %535 = vst [vmem:[%s489 + $0xb0] sm:%s481] %v534
                %v536 = vld [vmem:[%s488 + $0x158] sm:%s481]
                %537 = vst [vmem:[%s489 + $0xb8] sm:%s481] %v536
                %v538 = vld [vmem:[%s488 + $0x180] sm:%s481]
                %539 = vst [vmem:[%s489 + $0xc0] sm:%s481] %v538
                %v540 = vld [vmem:[%s488 + $0x188] sm:%s481]
                %541 = vst [vmem:[%s489 + $0xc8] sm:%s481] %v540
                %v542 = vld [vmem:[%s488 + $0x190] sm:%s481]
                %543 = vst [vmem:[%s489 + $0xd0] sm:%s481] %v542
                %v544 = vld [vmem:[%s488 + $0x198] sm:%s481]
                %545 = vst [vmem:[%s489 + $0xd8] sm:%s481] %v544
                %v546 = vld [vmem:[%s488 + $0x1c0] sm:%s481]
                %547 = vst [vmem:[%s489 + $0xe0] sm:%s481] %v546
                %v548 = vld [vmem:[%s488 + $0x1c8] sm:%s481]
                %549 = vst [vmem:[%s489 + $0xe8] sm:%s481] %v548
                %v550 = vld [vmem:[%s488 + $0x1d0] sm:%s481]
                %551 = vst [vmem:[%s489 + $0xf0] sm:%s481] %v550
                %v552 = vld [vmem:[%s488 + $0x1d8] sm:%s481]
                %553 = vst [vmem:[%s489 + $0xf8] sm:%s481] %v552
                %v554 = vld [vmem:[%s488 + $0x200] sm:%s481]
                %555 = vst [vmem:[%s489 + $0x100] sm:%s481] %v554
                %v556 = vld [vmem:[%s488 + $0x208] sm:%s481]
                %557 = vst [vmem:[%s489 + $0x108] sm:%s481] %v556
                %v558 = vld [vmem:[%s488 + $0x210] sm:%s481]
                %559 = vst [vmem:[%s489 + $0x110] sm:%s481] %v558
                %v560 = vld [vmem:[%s488 + $0x218] sm:%s481]
                %561 = vst [vmem:[%s489 + $0x118] sm:%s481] %v560
              $region73: #{_lambda_.3} parent=67 // loop_footer
                %s487 = sadd.s32 1, %s483
              $region74: #{_lambda_.3} parent=67 // loop_footer_branch
                %482 = sbr.rel target = $region70
              $region75: #{_lambda_.3} parent=67 // loop_exit
                _
            $region68: #{_lambda_.3} parent=59 // pred_fallthru
              _
          $region60: #{_lambda_.3} parent=55 // pred_fallthru
            _
          %646 = vnop
        $region56: #{_lambda_.3} parent=43 // pred_fallthru
          _
        // Predicated region
        $region91: #{_lambda_.3} parent=43 // pred_check
          %p647 = pneg %p158
        $region92: #{_lambda_.3} parent=43 // pred_check_branch
          %649 = sbr.rel (%p647) target = $region94
        $region93: #{_lambda_.3} parent=43 // pred_region
          %p650 = scmp.lt.s32.totalorder %s30, 1
          %s651 = scalar_select %p650, %s30, 1
          %s652 = smul.addr %s651, 4
          %s653 = smul.addr %s652, 8
          %s654 = scalar_lea.vmem %s4, %s653
        $region94: #{_lambda_.3} parent=43 // pred_fallthru
          _
        // Predicated region
        $region95: #{_lambda_.3} parent=43 // pred_check
          %p655 = pneg %p205
        $region96: #{_lambda_.3} parent=43 // pred_check_branch
          %657 = sbr.rel (%p655) target = $region98
        $region97: #{_lambda_.3} parent=43 // pred_region
          %p658 = scmp.lt.s32.totalorder %s30, 1
          %s659 = scalar_select %p658, %s30, 1
          %s660 = smul.addr %s659, 4
          %s661 = smul.addr %s660, 8
          %s662 = scalar_lea.vmem %s6, %s661
        $region98: #{_lambda_.3} parent=43 // pred_fallthru
          _
        // Predicated region
        $region99: #{_lambda_.3} parent=43 // pred_check
          %p663 = pneg %p231
        $region100: #{_lambda_.3} parent=43 // pred_check_branch
          %665 = sbr.rel (%p663) target = $region102
        $region101: #{_lambda_.3} parent=43 // pred_region
          %p666 = scmp.lt.s32.totalorder %s30, 1
          %s667 = scalar_select %p666, %s30, 1
          %s668 = smul.addr %s667, 4
          %s669 = smul.addr %s668, 8
          %s670 = scalar_lea.vmem %s7, %s669
        $region102: #{_lambda_.3} parent=43 // pred_fallthru
          _
      $region44: #{_lambda_.3} parent=5 // pred_fallthru
        _
      %p671 = scmp.le.s32.totalorder 1, %s23
      %p672 = scmp.lt.s32.totalorder %s23, 3
      %p673 = pnand %p671, %p672
      %p674 = pneg %p673
      // Predicated region
      $region103: #{_lambda_.3} parent=5 // pred_check
        _
      $region104: #{_lambda_.3} parent=5 // pred_check_branch
        %676 = sbr.rel (%p673) target = $region106
      $region105: #{_lambda_.3} parent=5 // pred_region
        %s677 = ssub.s32 %s23, 1
        %s678 = sand.u32 %s104, 1
        %s679 = sand.u32 %s104, 1
        %s680 = smul.addr %s679, 288
        %s681 = scalar_lea.vmem [#allocation3], %s680
        // Predicated region
        $region107: #{_lambda_.3} parent=105 // pred_check
          %p682 = pneg %p117
        $region108: #{_lambda_.3} parent=105 // pred_check_branch
          %684 = sbr.rel (%p682) target = $region110
        $region109: #{_lambda_.3} parent=105 // pred_region
          _
        $region110: #{_lambda_.3} parent=105 // pred_fallthru
          _
        %s685 = smul.u32 2, %s33
        %p686 = scmp.lt.s32.totalorder %s32, 1
        %s687 = scalar_select %p686, %s32, 1
        %p688 = scmp.lt.s32.totalorder %s685, 1
        %s689 = scalar_select %p688, %s685, 1
        %s690 = smul.addr %s687, 2
        %s691 = sadd.s32 %s689, %s690
        %s692 = smul.addr %s691, 4
        %s693 = scalar_lea.vmem %s0, %s692
        %p694 = pneg %p63
        %p695 = pneg %p60
        %s696 = smul.u32 2, %s33
        %p697 = scmp.lt.s32.totalorder %s32, 1
        %s698 = scalar_select %p697, %s32, 1
        %p699 = scmp.lt.s32.totalorder %s696, 1
        %s700 = scalar_select %p699, %s696, 1
        %s701 = smul.addr %s698, 2
        %s702 = sadd.s32 %s700, %s701
        %s703 = smul.addr %s702, 4
        %s704 = scalar_lea.vmem %s1, %s703
        %p705 = pneg %p91
        %p706 = pneg %p88
        %s707 = sand.u32 %s104, 1
        %s708 = sand.u32 %s104, 1
        %s709 = smul.addr %s708, 288
        %s710 = scalar_lea.vmem [#allocation3], %s709
        %p711 = pneg %p117
        %p712 = pneg %p114
        %p713 = pneg %p138
        %p714 = pneg %p135
        %p715 = scmp.lt.s32.totalorder %s32, 1
        %s716 = scalar_select %p715, %s32, 1
        %s717 = smul.addr %s716, 4
        %s718 = smul.addr %s717, 8
        %s719 = scalar_lea.vmem %s4, %s718
        %p720 = pneg %p164
        %p721 = pneg %p161
        %p722 = pneg %p185
        %p723 = pneg %p182
        %p724 = scmp.lt.s32.totalorder %s32, 1
        %s725 = scalar_select %p724, %s32, 1
        %s726 = smul.addr %s725, 4
        %s727 = smul.addr %s726, 8
        %s728 = scalar_lea.vmem %s6, %s727
        %p729 = pneg %p211
        %p730 = pneg %p208
        %p731 = scmp.lt.s32.totalorder %s32, 1
        %s732 = scalar_select %p731, %s32, 1
        %s733 = smul.addr %s732, 4
        %s734 = smul.addr %s733, 8
        %s735 = scalar_lea.vmem %s7, %s734
        %p736 = pneg %p237
        %p737 = pneg %p234
        %p738 = pneg %p258
        %p739 = pneg %p255
        %p740 = pneg %p279
        %p741 = pneg %p276
        %p742 = pneg %p300
        %p743 = pneg %p297
        %p744 = pneg %p321
        %p745 = pneg %p318
        %p746 = pneg %p342
        %p747 = pneg %p339
        %p748 = pneg %p370
        %p749 = pneg %p367
        %s750 = smul.u32 2, %s33
        %p751 = scmp.lt.s32.totalorder %s32, 1
        %s752 = scalar_select %p751, %s32, 1
        %p753 = scmp.lt.s32.totalorder %s750, 1
        %s754 = scalar_select %p753, %s750, 1
        %s755 = smul.addr %s752, 2
        %s756 = sadd.s32 %s754, %s755
        %s757 = scalar_lea.vmem %s13, %s756
        %p758 = pneg %p398
        %p759 = pneg %p395
        %s760 = smul.u32 2, %s33
        %p761 = scmp.lt.s32.totalorder %s32, 1
        %s762 = scalar_select %p761, %s32, 1
        %p763 = scmp.lt.s32.totalorder %s760, 1
        %s764 = scalar_select %p763, %s760, 1
        %s765 = smul.addr %s762, 2
        %s766 = sadd.s32 %s764, %s765
        %s767 = smul.addr %s766, 4
        %s768 = scalar_lea.vmem %s14, %s767
        %s769 = smul.u32 2, %s33
        %p770 = scmp.lt.s32.totalorder %s32, 1
        %s771 = scalar_select %p770, %s32, 1
        %p772 = scmp.lt.s32.totalorder %s769, 1
        %s773 = scalar_select %p772, %s769, 1
        %s774 = smul.addr %s771, 2
        %s775 = sadd.s32 %s773, %s774
        %s776 = smul.addr %s775, 4
        %s777 = scalar_lea.vmem %s0, %s776
        %s778 = smul.u32 2, %s33
        %s779 = smul.u32 2, %s33
        %p780 = scmp.lt.s32.totalorder %s32, 1
        %s781 = scalar_select %p780, %s32, 1
        %p782 = scmp.lt.s32.totalorder %s779, 1
        %s783 = scalar_select %p782, %s779, 1
        %s784 = smul.addr %s781, 2
        %s785 = sadd.s32 %s783, %s784
        %s786 = smul.addr %s785, 4
        %s787 = scalar_lea.vmem %s1, %s786
        %s788 = smul.u32 2, %s33
        %p789 = scmp.lt.s32.totalorder %s32, 1
        %s790 = scalar_select %p789, %s32, 1
        %s791 = smul.addr %s790, 4
        %s792 = smul.addr %s791, 8
        %s793 = scalar_lea.vmem %s4, %s792
        %p794 = scmp.lt.s32.totalorder %s32, 1
        %s795 = scalar_select %p794, %s32, 1
        %s796 = smul.addr %s795, 4
        %s797 = smul.addr %s796, 8
        %s798 = scalar_lea.vmem %s6, %s797
        %p799 = scmp.lt.s32.totalorder %s32, 1
        %s800 = scalar_select %p799, %s32, 1
        %s801 = smul.addr %s800, 4
        %s802 = smul.addr %s801, 8
        %s803 = scalar_lea.vmem %s7, %s802
        %s804 = smul.u32 2, %s33
        %p805 = scmp.lt.s32.totalorder %s32, 1
        %s806 = scalar_select %p805, %s32, 1
        %p807 = scmp.lt.s32.totalorder %s804, 1
        %s808 = scalar_select %p807, %s804, 1
        %s809 = smul.addr %s806, 2
        %s810 = sadd.s32 %s808, %s809
        %s811 = scalar_lea.vmem %s13, %s810
        %s812 = smul.u32 2, %s33
        %s813 = smul.u32 2, %s33
        %p814 = scmp.lt.s32.totalorder %s32, 1
        %s815 = scalar_select %p814, %s32, 1
        %p816 = scmp.lt.s32.totalorder %s813, 1
        %s817 = scalar_select %p816, %s813, 1
        %s818 = smul.addr %s815, 2
        %s819 = sadd.s32 %s817, %s818
        %s820 = smul.addr %s819, 4
        %s821 = scalar_lea.vmem %s14, %s820
        %s822 = smul.u32 2, %s33
        %v823 = vld [vmem:[%s777] sm:$0x77]
        %v824 = vld [vmem:[%s787] sm:$0x77]
        %v825 = vld [vmem:[%s681] sm:$0xff]
        %v826 = vld [vmem:[%s681 + $0x8] sm:$0xff]
        %v827 = vld [vmem:[%s681 + $0x10] sm:$0xff]
        %v828 = vld [vmem:[%s681 + $0x18] sm:$0xff]
        %v829 = vand.u32 2147483647, %v823
        %vm830 = vcmp.le.f32.partialorder %v829, 0.7853982
        %vm831 = vcmp.lt.s32.totalorder %v823, 0
        %v832 = vand.u32 %v823, 2139095040
        %v833 = vshrl.u32 %v832, 23
        %v834 = vsub.s32 %v833, 127
        %v835 = vand.u32 2147483647, %v823
        %v836 = vand.u32 %v835, 8388607
        %v837 = vor.u32 %v836, 8388608
        %v838 = vsub.s32 0, %v837
        %v839 = vadd.s32 %v834, 1
        %vm840 = vcmp.gt.s32.totalorder %v839, 0
        %v841 = vsel %vm840, %v839, 0
        %v842 = vshrl.u32 %v841, 5
        %v843 = vand.u32 %v841, 31
        %v844 = vsub.s32 32, %v843
        %v845 = vshrl.u32 683565275, %v844
        %v846 = vshll.u32 683565275, %v843
        %v847 = vshrl.u32 2475754826, %v844
        %v848 = vor.u32 %v846, %v847
        %v849 = vshll.u32 2475754826, %v843
        %v850 = vshrl.u32 2131351028, %v844
        %v851 = vor.u32 %v849, %v850
        %v852 = vshll.u32 2131351028, %v843
        %v853 = vshrl.u32 2102212464, %v844
        %v854 = vor.u32 %v852, %v853
        %v855 = vshll.u32 2102212464, %v843
        %v856 = vshrl.u32 920167782, %v844
        %v857 = vor.u32 %v855, %v856
        %v858 = vshll.u32 920167782, %v843
        %v859 = vshrl.u32 1326507024, %v844
        %v860 = vor.u32 %v858, %v859
        %vm861 = vcmp.lt.s32.totalorder %v842, 1
        %vm862 = vcmp.lt.s32.totalorder %v842, 2
        %vm863 = vcmp.lt.s32.totalorder %v842, 3
        %vm864 = vcmp.lt.s32.totalorder %v842, 4
        %v865 = vsel %vm861, %v845, %v848
        %v866 = vsel %vm864, %v854, 2102212464
        %v867 = vsel %vm863, %v851, %v866
        %v868 = vsel %vm862, %v865, %v867
        %v869 = vsel %vm861, %v848, %v851
        %v870 = vsel %vm864, %v857, 920167782
        %v871 = vsel %vm863, %v854, %v870
        %v872 = vsel %vm862, %v869, %v871
        %v873 = vsel %vm861, %v851, %v854
        %v874 = vsel %vm864, %v860, 1326507024
        %v875 = vsel %vm863, %v857, %v874
        %v876 = vsel %vm862, %v873, %v875
        %v877 = vshll.u32 %v837, 8
        %v878 = vand.u32 %v877, 65535
        %v879 = vshrl.u32 %v877, 16
        %v880 = vand.u32 %v876, 65535
        %v881 = vshrl.u32 %v876, 16
        %v882 = vmul.u32 %v878, %v880
        %v883 = vmul.u32 %v878, %v881
        %v884 = vmul.u32 %v879, %v880
        %v885 = vmul.u32 %v879, %v881
        %v886 = vshll.u32 %v883, 16
        %v887 = vshrl.u32 %v883, 16
        %v888 = vshll.u32 %v884, 16
        %v889 = vshrl.u32 %v884, 16
        %vm890 = vc.u32 %v882, %v886
        %v891 = vsel %vm890, 1, 0
        %v892 = vadd.s32 %v882, %v886
        %v893 = vadd.s32 %v885, %v891
        %vm894 = vc.u32 %v892, %v888
        %v895 = vsel %vm894, 1, 0
        %v896 = vadd.s32 %v892, %v888
        %v897 = vadd.s32 %v893, %v895
        %v898 = vadd.s32 %v897, %v887
        %v899 = vadd.s32 %v898, %v889
        %v900 = vand.u32 %v877, 65535
        %v901 = vshrl.u32 %v877, 16
        %v902 = vand.u32 %v872, 65535
        %v903 = vshrl.u32 %v872, 16
        %v904 = vmul.u32 %v900, %v902
        %v905 = vmul.u32 %v900, %v903
        %v906 = vmul.u32 %v901, %v902
        %v907 = vmul.u32 %v901, %v903
        %v908 = vshll.u32 %v905, 16
        %v909 = vshrl.u32 %v905, 16
        %v910 = vshll.u32 %v906, 16
        %v911 = vshrl.u32 %v906, 16
        %vm912 = vc.u32 %v904, %v908
        %v913 = vsel %vm912, 1, 0
        %v914 = vadd.s32 %v904, %v908
        %v915 = vadd.s32 %v907, %v913
        %vm916 = vc.u32 %v914, %v910
        %v917 = vsel %vm916, 1, 0
        %v918 = vadd.s32 %v914, %v910
        %v919 = vadd.s32 %v915, %v917
        %v920 = vadd.s32 %v919, %v909
        %v921 = vadd.s32 %v920, %v911
        %v922 = vmul.u32 %v877, %v868
        %v923 = vadd.s32 %v899, %v918
        %vm924 = vc.u32 %v899, %v918
        %v925 = vadd.s32 %v921, 1
        %v926 = vsel %vm924, %v925, %v921
        %v927 = vadd.s32 %v922, %v926
        %v928 = vadd.s32 %v927, 536870912
        %v929 = vshrl.u32 %v928, 30
        %v930 = vshll.u32 %v929, 30
        %v931 = vsub.s32 %v927, %v930
        %vm932 = vcmp.lt.s32.totalorder %v931, 0
        %v933 = vsub.s32 0, %v931
        %v934 = vsel %vm932, %v933, %v931
        %v935 = vclz %v934
        %v936 = vsub.s32 %v935, 2
        %vm937 = vcmp.gt.s32.totalorder 0, %v936
        %v938 = vsel %vm937, 0, %v936
        %v939 = vsub.s32 32, %v938
        %v940 = vshll.u32 %v931, %v938
        %v941 = vshrl.u32 %v923, %v939
        %v942 = vor.u32 %v940, %v941
        %v943 = vsub.s32 4294967266, %v938
        %v944 = vadd.s32 %v943, 127
        %v945 = vshll.u32 %v944, 23
        %v946 = vor.u32 4788187, %v945
        %v947 = vand.u32 2147483647, %v946
        %v949 = vcvt.s32.f32 %v942
        %v950 = vmul.f32 %v949, %v947
        %v951 = vxor.u32 %v950, 2147483648
        %v952 = vsel %vm831, %v951, %v950
        %v953 = vsub.s32 4, %v929
        %v954 = vsel %vm831, %v953, %v929
        %v955 = vsel %vm830, %v823, %v952
        %v956 = vsel %vm830, 0, %v954
        %v957 = vmul.f32 %v955, %v955
        %v958 = vmul.f32 %v957, -0.001358992
        %v959 = vadd.f32 %v958, 0.041655596
        %v960 = vmul.f32 %v957, %v959
        %v961 = vadd.f32 %v960, -0.4999988
        %v962 = vmul.f32 %v957, %v961
        %v963 = vadd.f32 1.0, %v962
        %v964 = vmul.f32 %v955, %v955
        %v965 = vmul.f32 %v964, -0.00019511016
        %v966 = vadd.f32 %v965, 0.008332121
        %v967 = vmul.f32 %v964, %v966
        %v968 = vadd.f32 %v967, -0.16666654
        %v969 = vmul.f32 %v964, %v968
        %v970 = vadd.f32 %v969, 1.0
        %v971 = vmul.f32 %v970, %v955
        %vm972 = vweird.f32 %v823
        %v973 = vadd.s32 %v956, 3
        %v974 = vand.u32 %v973, 3
        %vm975 = vcmp.lt.s32.totalorder %v974, 2
        %vm976 = vcmp.eq.s32.totalorder %v974, 0
        %v977 = vxor.u32 %v971, 2147483648
        %v978 = vsel %vm976, %v963, %v977
        %vm979 = vcmp.eq.s32.totalorder %v974, 2
        %v980 = vxor.u32 %v963, 2147483648
        %v981 = vsel %vm979, %v980, %v971
        %v982 = vsel %vm975, %v978, %v981
        %v983 = vsel %vm972, nan, %v982
        %s984 = scalar_lea.vmem %s681, 32 [#allocation3]
        %v985 = vld [vmem:[%s984] sm:$0xff]
        %v986 = vld [vmem:[%s984 + $0x8] sm:$0xff]
        %v987 = vld [vmem:[%s984 + $0x10] sm:$0xff]
        %v988 = vld [vmem:[%s984 + $0x18] sm:$0xff]
        %990 = vst [vmem:[#allocation1] ss:$2 sm:$0xff] %v983
        %v991 = vld.sshfl [vmem:[#allocation1] sm:$0xff pattern:$0x75316420]
        %v992 = vld.sshfl [vmem:[#allocation1 + $0x8] sm:$0xff pattern:$0x75316420]
        %vm993 = vcmask 23552
        %v995 = vsel %vm993, %v985, 0
        %v998 = vsel %vm993, %v986, 0
        %v1001 = vsel %vm993, %v987, 0
        %v1004 = vsel %vm993, %v988, 0
        %vm1006 = vcmask 1042432
        %v1007 = vsel %vm1006, %v991, 0
        %v1009 = vsel %vm1006, %v992, 0
        %1011 = vmatpush.msra.mxu0 0.0
        %1012 = vmatpush.msra.mxu0 0.0
        %1013 = vmatpush.msra.mxu0 0.0
        %1014 = vmatpush.msra.mxu0 0.0
        %1015 = vmatpush.msra.mxu0 0.0
        %1016 = vmatpush.msra.mxu0 0.0
        %1017 = vmatpush.msra.mxu0 0.0
        %1018 = vmatpush.msra.mxu0 0.0
        %1019 = vmatpush.msra.mxu0 0.0
        %1020 = vmatpush.msra.mxu0 0.0
        %1021 = vmatpush.msra.mxu0 0.0
        %1022 = vmatpush.msra.mxu0 0.0
        %1023 = vmatpush.msra.mxu0 0.0
        %1024 = vmatpush.msra.mxu0 0.0
        %1025 = vmatpush.msra.mxu0 0.0
        %1026 = vmatpush.msra.mxu0 %v1007
        %1027 = vmatmul.f32.gmra.mxu0 %v995
        %v1028 = vpop.f32.mrf.mxu0
        %v1029 = vadd.f32 0.0, %v1028
        %1030 = vmatmul.f32.gmra.mxu0 %v998
        %v1031 = vpop.f32.mrf.mxu0
        %v1032 = vadd.f32 0.0, %v1031
        %1033 = vmatmul.f32.gmra.mxu0 %v1001
        %v1034 = vpop.f32.mrf.mxu0
        %v1035 = vadd.f32 0.0, %v1034
        %1036 = vmatmul.f32.gmra.mxu0 %v1004
        %v1037 = vpop.f32.mrf.mxu0
        %v1038 = vadd.f32 0.0, %v1037
        %1039 = vdwg.mxu0
        %1040 = vmatpush.msra.mxu0 0.0
        %1041 = vmatpush.msra.mxu0 0.0
        %1042 = vmatpush.msra.mxu0 0.0
        %1043 = vmatpush.msra.mxu0 0.0
        %1044 = vmatpush.msra.mxu0 0.0
        %1045 = vmatpush.msra.mxu0 0.0
        %1046 = vmatpush.msra.mxu0 0.0
        %1047 = vmatpush.msra.mxu0 0.0
        %1048 = vmatpush.msra.mxu0 0.0
        %1049 = vmatpush.msra.mxu0 0.0
        %1050 = vmatpush.msra.mxu0 0.0
        %1051 = vmatpush.msra.mxu0 0.0
        %1052 = vmatpush.msra.mxu0 0.0
        %1053 = vmatpush.msra.mxu0 0.0
        %1054 = vmatpush.msra.mxu0 0.0
        %1055 = vmatpush.msra.mxu0 %v1009
        %1056 = vmatmul.f32.gmra.mxu0 %v995
        %v1057 = vpop.f32.mrf.mxu0
        %v1058 = vadd.f32 0.0, %v1057
        %1059 = vmatmul.f32.gmra.mxu0 %v998
        %v1060 = vpop.f32.mrf.mxu0
        %v1061 = vadd.f32 0.0, %v1060
        %1062 = vmatmul.f32.gmra.mxu0 %v1001
        %v1063 = vpop.f32.mrf.mxu0
        %v1064 = vadd.f32 0.0, %v1063
        %1065 = vmatmul.f32.gmra.mxu0 %v1004
        %v1066 = vpop.f32.mrf.mxu0
        %v1067 = vadd.f32 0.0, %v1066
        %1068 = vdwg.mxu0
        %1070 = vst [vmem:[#allocation1] ss:$2 sm:$0xff] %v823
        %v1071 = vld.sshfl [vmem:[#allocation1] sm:$0xff pattern:$0x75316420]
        %v1072 = vld.sshfl [vmem:[#allocation1 + $0x8] sm:$0xff pattern:$0x75316420]
        %v1074 = vsel %vm993, %v825, 0
        %v1077 = vsel %vm993, %v826, 0
        %v1080 = vsel %vm993, %v827, 0
        %v1083 = vsel %vm993, %v828, 0
        %v1085 = vsel %vm1006, %v1071, 0
        %v1087 = vsel %vm1006, %v1072, 0
        %1089 = vmatpush.msra.mxu0 0.0
        %1090 = vmatpush.msra.mxu0 0.0
        %1091 = vmatpush.msra.mxu0 0.0
        %1092 = vmatpush.msra.mxu0 0.0
        %1093 = vmatpush.msra.mxu0 0.0
        %1094 = vmatpush.msra.mxu0 0.0
        %1095 = vmatpush.msra.mxu0 0.0
        %1096 = vmatpush.msra.mxu0 0.0
        %1097 = vmatpush.msra.mxu0 0.0
        %1098 = vmatpush.msra.mxu0 0.0
        %1099 = vmatpush.msra.mxu0 0.0
        %1100 = vmatpush.msra.mxu0 0.0
        %1101 = vmatpush.msra.mxu0 0.0
        %1102 = vmatpush.msra.mxu0 0.0
        %1103 = vmatpush.msra.mxu0 0.0
        %1104 = vmatpush.msra.mxu0 %v1085
        %1105 = vmatmul.f32.gmra.mxu0 %v1074
        %v1106 = vpop.f32.mrf.mxu0
        %v1107 = vadd.f32 %v1029, %v1106
        %1108 = vmatmul.f32.gmra.mxu0 %v1077
        %v1109 = vpop.f32.mrf.mxu0
        %v1110 = vadd.f32 %v1032, %v1109
        %1111 = vmatmul.f32.gmra.mxu0 %v1080
        %v1112 = vpop.f32.mrf.mxu0
        %v1113 = vadd.f32 %v1035, %v1112
        %1114 = vmatmul.f32.gmra.mxu0 %v1083
        %v1115 = vpop.f32.mrf.mxu0
        %v1116 = vadd.f32 %v1038, %v1115
        %1117 = vdwg.mxu0
        %1118 = vmatpush.msra.mxu0 0.0
        %1119 = vmatpush.msra.mxu0 0.0
        %1120 = vmatpush.msra.mxu0 0.0
        %1121 = vmatpush.msra.mxu0 0.0
        %1122 = vmatpush.msra.mxu0 0.0
        %1123 = vmatpush.msra.mxu0 0.0
        %1124 = vmatpush.msra.mxu0 0.0
        %1125 = vmatpush.msra.mxu0 0.0
        %1126 = vmatpush.msra.mxu0 0.0
        %1127 = vmatpush.msra.mxu0 0.0
        %1128 = vmatpush.msra.mxu0 0.0
        %1129 = vmatpush.msra.mxu0 0.0
        %1130 = vmatpush.msra.mxu0 0.0
        %1131 = vmatpush.msra.mxu0 0.0
        %1132 = vmatpush.msra.mxu0 0.0
        %1133 = vmatpush.msra.mxu0 %v1087
        %1134 = vmatmul.f32.gmra.mxu0 %v1074
        %v1135 = vpop.f32.mrf.mxu0
        %v1136 = vadd.f32 %v1058, %v1135
        %1137 = vmatmul.f32.gmra.mxu0 %v1077
        %v1138 = vpop.f32.mrf.mxu0
        %v1139 = vadd.f32 %v1061, %v1138
        %1140 = vmatmul.f32.gmra.mxu0 %v1080
        %v1141 = vpop.f32.mrf.mxu0
        %v1142 = vadd.f32 %v1064, %v1141
        %1143 = vmatmul.f32.gmra.mxu0 %v1083
        %v1144 = vpop.f32.mrf.mxu0
        %v1145 = vadd.f32 %v1067, %v1144
        %1146 = vdwg.mxu0
        %v1147 = vand.u32 2147483647, %v823
        %vm1148 = vcmp.le.f32.partialorder %v1147, 0.7853982
        %vm1149 = vcmp.lt.s32.totalorder %v823, 0
        %v1150 = vand.u32 %v823, 2139095040
        %v1151 = vshrl.u32 %v1150, 23
        %v1152 = vsub.s32 %v1151, 127
        %v1153 = vand.u32 2147483647, %v823
        %v1154 = vand.u32 %v1153, 8388607
        %v1155 = vor.u32 %v1154, 8388608
        %v1156 = vsub.s32 0, %v1155
        %v1157 = vadd.s32 %v1152, 1
        %vm1158 = vcmp.gt.s32.totalorder %v1157, 0
        %v1159 = vsel %vm1158, %v1157, 0
        %v1160 = vshrl.u32 %v1159, 5
        %v1161 = vand.u32 %v1159, 31
        %v1162 = vsub.s32 32, %v1161
        %v1163 = vshrl.u32 683565275, %v1162
        %v1164 = vshll.u32 683565275, %v1161
        %v1165 = vshrl.u32 2475754826, %v1162
        %v1166 = vor.u32 %v1164, %v1165
        %v1167 = vshll.u32 2475754826, %v1161
        %v1168 = vshrl.u32 2131351028, %v1162
        %v1169 = vor.u32 %v1167, %v1168
        %v1170 = vshll.u32 2131351028, %v1161
        %v1171 = vshrl.u32 2102212464, %v1162
        %v1172 = vor.u32 %v1170, %v1171
        %v1173 = vshll.u32 2102212464, %v1161
        %v1174 = vshrl.u32 920167782, %v1162
        %v1175 = vor.u32 %v1173, %v1174
        %v1176 = vshll.u32 920167782, %v1161
        %v1177 = vshrl.u32 1326507024, %v1162
        %v1178 = vor.u32 %v1176, %v1177
        %vm1179 = vcmp.lt.s32.totalorder %v1160, 1
        %vm1180 = vcmp.lt.s32.totalorder %v1160, 2
        %vm1181 = vcmp.lt.s32.totalorder %v1160, 3
        %vm1182 = vcmp.lt.s32.totalorder %v1160, 4
        %v1183 = vsel %vm1179, %v1163, %v1166
        %v1184 = vsel %vm1182, %v1172, 2102212464
        %v1185 = vsel %vm1181, %v1169, %v1184
        %v1186 = vsel %vm1180, %v1183, %v1185
        %v1187 = vsel %vm1179, %v1166, %v1169
        %v1188 = vsel %vm1182, %v1175, 920167782
        %v1189 = vsel %vm1181, %v1172, %v1188
        %v1190 = vsel %vm1180, %v1187, %v1189
        %v1191 = vsel %vm1179, %v1169, %v1172
        %v1192 = vsel %vm1182, %v1178, 1326507024
        %v1193 = vsel %vm1181, %v1175, %v1192
        %v1194 = vsel %vm1180, %v1191, %v1193
        %v1195 = vshll.u32 %v1155, 8
        %v1196 = vand.u32 %v1195, 65535
        %v1197 = vshrl.u32 %v1195, 16
        %v1198 = vand.u32 %v1194, 65535
        %v1199 = vshrl.u32 %v1194, 16
        %v1200 = vmul.u32 %v1196, %v1198
        %v1201 = vmul.u32 %v1196, %v1199
        %v1202 = vmul.u32 %v1197, %v1198
        %v1203 = vmul.u32 %v1197, %v1199
        %v1204 = vshll.u32 %v1201, 16
        %v1205 = vshrl.u32 %v1201, 16
        %v1206 = vshll.u32 %v1202, 16
        %v1207 = vshrl.u32 %v1202, 16
        %vm1208 = vc.u32 %v1200, %v1204
        %v1209 = vsel %vm1208, 1, 0
        %v1210 = vadd.s32 %v1200, %v1204
        %v1211 = vadd.s32 %v1203, %v1209
        %vm1212 = vc.u32 %v1210, %v1206
        %v1213 = vsel %vm1212, 1, 0
        %v1214 = vadd.s32 %v1210, %v1206
        %v1215 = vadd.s32 %v1211, %v1213
        %v1216 = vadd.s32 %v1215, %v1205
        %v1217 = vadd.s32 %v1216, %v1207
        %v1218 = vand.u32 %v1195, 65535
        %v1219 = vshrl.u32 %v1195, 16
        %v1220 = vand.u32 %v1190, 65535
        %v1221 = vshrl.u32 %v1190, 16
        %v1222 = vmul.u32 %v1218, %v1220
        %v1223 = vmul.u32 %v1218, %v1221
        %v1224 = vmul.u32 %v1219, %v1220
        %v1225 = vmul.u32 %v1219, %v1221
        %v1226 = vshll.u32 %v1223, 16
        %v1227 = vshrl.u32 %v1223, 16
        %v1228 = vshll.u32 %v1224, 16
        %v1229 = vshrl.u32 %v1224, 16
        %vm1230 = vc.u32 %v1222, %v1226
        %v1231 = vsel %vm1230, 1, 0
        %v1232 = vadd.s32 %v1222, %v1226
        %v1233 = vadd.s32 %v1225, %v1231
        %vm1234 = vc.u32 %v1232, %v1228
        %v1235 = vsel %vm1234, 1, 0
        %v1236 = vadd.s32 %v1232, %v1228
        %v1237 = vadd.s32 %v1233, %v1235
        %v1238 = vadd.s32 %v1237, %v1227
        %v1239 = vadd.s32 %v1238, %v1229
        %v1240 = vmul.u32 %v1195, %v1186
        %v1241 = vadd.s32 %v1217, %v1236
        %vm1242 = vc.u32 %v1217, %v1236
        %v1243 = vadd.s32 %v1239, 1
        %v1244 = vsel %vm1242, %v1243, %v1239
        %v1245 = vadd.s32 %v1240, %v1244
        %v1246 = vadd.s32 %v1245, 536870912
        %v1247 = vshrl.u32 %v1246, 30
        %v1248 = vshll.u32 %v1247, 30
        %v1249 = vsub.s32 %v1245, %v1248
        %vm1250 = vcmp.lt.s32.totalorder %v1249, 0
        %v1251 = vsub.s32 0, %v1249
        %v1252 = vsel %vm1250, %v1251, %v1249
        %v1253 = vclz %v1252
        %v1254 = vsub.s32 %v1253, 2
        %vm1255 = vcmp.gt.s32.totalorder 0, %v1254
        %v1256 = vsel %vm1255, 0, %v1254
        %v1257 = vsub.s32 32, %v1256
        %v1258 = vshll.u32 %v1249, %v1256
        %v1259 = vshrl.u32 %v1241, %v1257
        %v1260 = vor.u32 %v1258, %v1259
        %v1261 = vsub.s32 4294967266, %v1256
        %v1262 = vadd.s32 %v1261, 127
        %v1263 = vshll.u32 %v1262, 23
        %v1264 = vor.u32 4788187, %v1263
        %v1265 = vand.u32 2147483647, %v1264
        %v1267 = vcvt.s32.f32 %v1260
        %v1268 = vmul.f32 %v1267, %v1265
        %v1269 = vxor.u32 %v1268, 2147483648
        %v1270 = vsel %vm1149, %v1269, %v1268
        %v1271 = vsub.s32 4, %v1247
        %v1272 = vsel %vm1149, %v1271, %v1247
        %v1273 = vsel %vm1148, %v823, %v1270
        %v1274 = vsel %vm1148, 0, %v1272
        %v1275 = vmul.f32 %v1273, %v1273
        %v1276 = vmul.f32 %v1275, -0.001358992
        %v1277 = vadd.f32 %v1276, 0.041655596
        %v1278 = vmul.f32 %v1275, %v1277
        %v1279 = vadd.f32 %v1278, -0.4999988
        %v1280 = vmul.f32 %v1275, %v1279
        %v1281 = vadd.f32 1.0, %v1280
        %v1282 = vmul.f32 %v1273, %v1273
        %v1283 = vmul.f32 %v1282, -0.00019511016
        %v1284 = vadd.f32 %v1283, 0.008332121
        %v1285 = vmul.f32 %v1282, %v1284
        %v1286 = vadd.f32 %v1285, -0.16666654
        %v1287 = vmul.f32 %v1282, %v1286
        %v1288 = vadd.f32 %v1287, 1.0
        %v1289 = vmul.f32 %v1288, %v1273
        %vm1290 = vweird.f32 %v823
        %v1291 = vand.u32 %v1274, 3
        %vm1292 = vcmp.lt.s32.totalorder %v1291, 2
        %vm1293 = vcmp.eq.s32.totalorder %v1291, 0
        %v1294 = vxor.u32 %v1289, 2147483648
        %v1295 = vsel %vm1293, %v1281, %v1294
        %vm1296 = vcmp.eq.s32.totalorder %v1291, 2
        %v1297 = vxor.u32 %v1281, 2147483648
        %v1298 = vsel %vm1296, %v1297, %v1289
        %v1299 = vsel %vm1292, %v1295, %v1298
        %v1300 = vsel %vm1290, nan, %v1299
        %s1301 = scalar_lea.vmem %s681, 64 [#allocation3]
        %v1302 = vld [vmem:[%s1301] sm:$0xff]
        %v1303 = vld [vmem:[%s1301 + $0x8] sm:$0xff]
        %v1304 = vld [vmem:[%s1301 + $0x10] sm:$0xff]
        %v1305 = vld [vmem:[%s1301 + $0x18] sm:$0xff]
        %1307 = vst [vmem:[#allocation1] ss:$2 sm:$0xff] %v1300
        %v1308 = vld.sshfl [vmem:[#allocation1] sm:$0xff pattern:$0x75316420]
        %v1309 = vld.sshfl [vmem:[#allocation1 + $0x8] sm:$0xff pattern:$0x75316420]
        %v1311 = vsel %vm993, %v1302, 0
        %v1314 = vsel %vm993, %v1303, 0
        %v1317 = vsel %vm993, %v1304, 0
        %v1320 = vsel %vm993, %v1305, 0
        %v1322 = vsel %vm1006, %v1308, 0
        %v1324 = vsel %vm1006, %v1309, 0
        %1326 = vmatpush.msra.mxu0 0.0
        %1327 = vmatpush.msra.mxu0 0.0
        %1328 = vmatpush.msra.mxu0 0.0
        %1329 = vmatpush.msra.mxu0 0.0
        %1330 = vmatpush.msra.mxu0 0.0
        %1331 = vmatpush.msra.mxu0 0.0
        %1332 = vmatpush.msra.mxu0 0.0
        %1333 = vmatpush.msra.mxu0 0.0
        %1334 = vmatpush.msra.mxu0 0.0
        %1335 = vmatpush.msra.mxu0 0.0
        %1336 = vmatpush.msra.mxu0 0.0
        %1337 = vmatpush.msra.mxu0 0.0
        %1338 = vmatpush.msra.mxu0 0.0
        %1339 = vmatpush.msra.mxu0 0.0
        %1340 = vmatpush.msra.mxu0 0.0
        %1341 = vmatpush.msra.mxu0 %v1322
        %1342 = vmatmul.f32.gmra.mxu0 %v1311
        %v1343 = vpop.f32.mrf.mxu0
        %v1344 = vadd.f32 0.0, %v1343
        %1345 = vmatmul.f32.gmra.mxu0 %v1314
        %v1346 = vpop.f32.mrf.mxu0
        %v1347 = vadd.f32 0.0, %v1346
        %1348 = vmatmul.f32.gmra.mxu0 %v1317
        %v1349 = vpop.f32.mrf.mxu0
        %v1350 = vadd.f32 0.0, %v1349
        %1351 = vmatmul.f32.gmra.mxu0 %v1320
        %v1352 = vpop.f32.mrf.mxu0
        %v1353 = vadd.f32 0.0, %v1352
        %1354 = vdwg.mxu0
        %1355 = vmatpush.msra.mxu0 0.0
        %1356 = vmatpush.msra.mxu0 0.0
        %1357 = vmatpush.msra.mxu0 0.0
        %1358 = vmatpush.msra.mxu0 0.0
        %1359 = vmatpush.msra.mxu0 0.0
        %1360 = vmatpush.msra.mxu0 0.0
        %1361 = vmatpush.msra.mxu0 0.0
        %1362 = vmatpush.msra.mxu0 0.0
        %1363 = vmatpush.msra.mxu0 0.0
        %1364 = vmatpush.msra.mxu0 0.0
        %1365 = vmatpush.msra.mxu0 0.0
        %1366 = vmatpush.msra.mxu0 0.0
        %1367 = vmatpush.msra.mxu0 0.0
        %1368 = vmatpush.msra.mxu0 0.0
        %1369 = vmatpush.msra.mxu0 0.0
        %1370 = vmatpush.msra.mxu0 %v1324
        %1371 = vmatmul.f32.gmra.mxu0 %v1311
        %v1372 = vpop.f32.mrf.mxu0
        %v1373 = vadd.f32 0.0, %v1372
        %1374 = vmatmul.f32.gmra.mxu0 %v1314
        %v1375 = vpop.f32.mrf.mxu0
        %v1376 = vadd.f32 0.0, %v1375
        %1377 = vmatmul.f32.gmra.mxu0 %v1317
        %v1378 = vpop.f32.mrf.mxu0
        %v1379 = vadd.f32 0.0, %v1378
        %1380 = vmatmul.f32.gmra.mxu0 %v1320
        %v1381 = vpop.f32.mrf.mxu0
        %v1382 = vadd.f32 0.0, %v1381
        %1383 = vdwg.mxu0
        %v1384 = vadd.f32 %v1107, %v1344
        %v1385 = vadd.f32 %v1136, %v1373
        %v1386 = vadd.f32 %v1110, %v1347
        %v1387 = vadd.f32 %v1139, %v1376
        %v1388 = vadd.f32 %v1113, %v1350
        %v1389 = vadd.f32 %v1142, %v1379
        %v1390 = vadd.f32 %v1116, %v1353
        %v1391 = vadd.f32 %v1145, %v1382
        %v1392 = vmul.f32 %v823, 2.0
        %v1393 = vand.u32 2147483647, %v1392
        %vm1394 = vcmp.le.f32.partialorder %v1393, 0.7853982
        %vm1395 = vcmp.lt.s32.totalorder %v1392, 0
        %v1396 = vand.u32 %v1392, 2139095040
        %v1397 = vshrl.u32 %v1396, 23
        %v1398 = vsub.s32 %v1397, 127
        %v1399 = vand.u32 2147483647, %v1392
        %v1400 = vand.u32 %v1399, 8388607
        %v1401 = vor.u32 %v1400, 8388608
        %v1402 = vsub.s32 0, %v1401
        %v1403 = vadd.s32 %v1398, 1
        %vm1404 = vcmp.gt.s32.totalorder %v1403, 0
        %v1405 = vsel %vm1404, %v1403, 0
        %v1406 = vshrl.u32 %v1405, 5
        %v1407 = vand.u32 %v1405, 31
        %v1408 = vsub.s32 32, %v1407
        %v1409 = vshrl.u32 683565275, %v1408
        %v1410 = vshll.u32 683565275, %v1407
        %v1411 = vshrl.u32 2475754826, %v1408
        %v1412 = vor.u32 %v1410, %v1411
        %v1413 = vshll.u32 2475754826, %v1407
        %v1414 = vshrl.u32 2131351028, %v1408
        %v1415 = vor.u32 %v1413, %v1414
        %v1416 = vshll.u32 2131351028, %v1407
        %v1417 = vshrl.u32 2102212464, %v1408
        %v1418 = vor.u32 %v1416, %v1417
        %v1419 = vshll.u32 2102212464, %v1407
        %v1420 = vshrl.u32 920167782, %v1408
        %v1421 = vor.u32 %v1419, %v1420
        %v1422 = vshll.u32 920167782, %v1407
        %v1423 = vshrl.u32 1326507024, %v1408
        %v1424 = vor.u32 %v1422, %v1423
        %vm1425 = vcmp.lt.s32.totalorder %v1406, 1
        %vm1426 = vcmp.lt.s32.totalorder %v1406, 2
        %vm1427 = vcmp.lt.s32.totalorder %v1406, 3
        %vm1428 = vcmp.lt.s32.totalorder %v1406, 4
        %v1429 = vsel %vm1425, %v1409, %v1412
        %v1430 = vsel %vm1428, %v1418, 2102212464
        %v1431 = vsel %vm1427, %v1415, %v1430
        %v1432 = vsel %vm1426, %v1429, %v1431
        %v1433 = vsel %vm1425, %v1412, %v1415
        %v1434 = vsel %vm1428, %v1421, 920167782
        %v1435 = vsel %vm1427, %v1418, %v1434
        %v1436 = vsel %vm1426, %v1433, %v1435
        %v1437 = vsel %vm1425, %v1415, %v1418
        %v1438 = vsel %vm1428, %v1424, 1326507024
        %v1439 = vsel %vm1427, %v1421, %v1438
        %v1440 = vsel %vm1426, %v1437, %v1439
        %v1441 = vshll.u32 %v1401, 8
        %v1442 = vand.u32 %v1441, 65535
        %v1443 = vshrl.u32 %v1441, 16
        %v1444 = vand.u32 %v1440, 65535
        %v1445 = vshrl.u32 %v1440, 16
        %v1446 = vmul.u32 %v1442, %v1444
        %v1447 = vmul.u32 %v1442, %v1445
        %v1448 = vmul.u32 %v1443, %v1444
        %v1449 = vmul.u32 %v1443, %v1445
        %v1450 = vshll.u32 %v1447, 16
        %v1451 = vshrl.u32 %v1447, 16
        %v1452 = vshll.u32 %v1448, 16
        %v1453 = vshrl.u32 %v1448, 16
        %vm1454 = vc.u32 %v1446, %v1450
        %v1455 = vsel %vm1454, 1, 0
        %v1456 = vadd.s32 %v1446, %v1450
        %v1457 = vadd.s32 %v1449, %v1455
        %vm1458 = vc.u32 %v1456, %v1452
        %v1459 = vsel %vm1458, 1, 0
        %v1460 = vadd.s32 %v1456, %v1452
        %v1461 = vadd.s32 %v1457, %v1459
        %v1462 = vadd.s32 %v1461, %v1451
        %v1463 = vadd.s32 %v1462, %v1453
        %v1464 = vand.u32 %v1441, 65535
        %v1465 = vshrl.u32 %v1441, 16
        %v1466 = vand.u32 %v1436, 65535
        %v1467 = vshrl.u32 %v1436, 16
        %v1468 = vmul.u32 %v1464, %v1466
        %v1469 = vmul.u32 %v1464, %v1467
        %v1470 = vmul.u32 %v1465, %v1466
        %v1471 = vmul.u32 %v1465, %v1467
        %v1472 = vshll.u32 %v1469, 16
        %v1473 = vshrl.u32 %v1469, 16
        %v1474 = vshll.u32 %v1470, 16
        %v1475 = vshrl.u32 %v1470, 16
        %vm1476 = vc.u32 %v1468, %v1472
        %v1477 = vsel %vm1476, 1, 0
        %v1478 = vadd.s32 %v1468, %v1472
        %v1479 = vadd.s32 %v1471, %v1477
        %vm1480 = vc.u32 %v1478, %v1474
        %v1481 = vsel %vm1480, 1, 0
        %v1482 = vadd.s32 %v1478, %v1474
        %v1483 = vadd.s32 %v1479, %v1481
        %v1484 = vadd.s32 %v1483, %v1473
        %v1485 = vadd.s32 %v1484, %v1475
        %v1486 = vmul.u32 %v1441, %v1432
        %v1487 = vadd.s32 %v1463, %v1482
        %vm1488 = vc.u32 %v1463, %v1482
        %v1489 = vadd.s32 %v1485, 1
        %v1490 = vsel %vm1488, %v1489, %v1485
        %v1491 = vadd.s32 %v1486, %v1490
        %v1492 = vadd.s32 %v1491, 536870912
        %v1493 = vshrl.u32 %v1492, 30
        %v1494 = vshll.u32 %v1493, 30
        %v1495 = vsub.s32 %v1491, %v1494
        %vm1496 = vcmp.lt.s32.totalorder %v1495, 0
        %v1497 = vsub.s32 0, %v1495
        %v1498 = vsel %vm1496, %v1497, %v1495
        %v1499 = vclz %v1498
        %v1500 = vsub.s32 %v1499, 2
        %vm1501 = vcmp.gt.s32.totalorder 0, %v1500
        %v1502 = vsel %vm1501, 0, %v1500
        %v1503 = vsub.s32 32, %v1502
        %v1504 = vshll.u32 %v1495, %v1502
        %v1505 = vshrl.u32 %v1487, %v1503
        %v1506 = vor.u32 %v1504, %v1505
        %v1507 = vsub.s32 4294967266, %v1502
        %v1508 = vadd.s32 %v1507, 127
        %v1509 = vshll.u32 %v1508, 23
        %v1510 = vor.u32 4788187, %v1509
        %v1511 = vand.u32 2147483647, %v1510
        %v1513 = vcvt.s32.f32 %v1506
        %v1514 = vmul.f32 %v1513, %v1511
        %v1515 = vxor.u32 %v1514, 2147483648
        %v1516 = vsel %vm1395, %v1515, %v1514
        %v1517 = vsub.s32 4, %v1493
        %v1518 = vsel %vm1395, %v1517, %v1493
        %v1519 = vsel %vm1394, %v1392, %v1516
        %v1520 = vsel %vm1394, 0, %v1518
        %v1521 = vmul.f32 %v1519, %v1519
        %v1522 = vmul.f32 %v1521, -0.001358992
        %v1523 = vadd.f32 %v1522, 0.041655596
        %v1524 = vmul.f32 %v1521, %v1523
        %v1525 = vadd.f32 %v1524, -0.4999988
        %v1526 = vmul.f32 %v1521, %v1525
        %v1527 = vadd.f32 1.0, %v1526
        %v1528 = vmul.f32 %v1519, %v1519
        %v1529 = vmul.f32 %v1528, -0.00019511016
        %v1530 = vadd.f32 %v1529, 0.008332121
        %v1531 = vmul.f32 %v1528, %v1530
        %v1532 = vadd.f32 %v1531, -0.16666654
        %v1533 = vmul.f32 %v1528, %v1532
        %v1534 = vadd.f32 %v1533, 1.0
        %v1535 = vmul.f32 %v1534, %v1519
        %vm1536 = vweird.f32 %v1392
        %v1537 = vadd.s32 %v1520, 3
        %v1538 = vand.u32 %v1537, 3
        %vm1539 = vcmp.lt.s32.totalorder %v1538, 2
        %vm1540 = vcmp.eq.s32.totalorder %v1538, 0
        %v1541 = vxor.u32 %v1535, 2147483648
        %v1542 = vsel %vm1540, %v1527, %v1541
        %vm1543 = vcmp.eq.s32.totalorder %v1538, 2
        %v1544 = vxor.u32 %v1527, 2147483648
        %v1545 = vsel %vm1543, %v1544, %v1535
        %v1546 = vsel %vm1539, %v1542, %v1545
        %v1547 = vsel %vm1536, nan, %v1546
        %s1548 = scalar_lea.vmem %s681, 96 [#allocation3]
        %v1549 = vld [vmem:[%s1548] sm:$0xff]
        %v1550 = vld [vmem:[%s1548 + $0x8] sm:$0xff]
        %v1551 = vld [vmem:[%s1548 + $0x10] sm:$0xff]
        %v1552 = vld [vmem:[%s1548 + $0x18] sm:$0xff]
        %1554 = vst [vmem:[#allocation1] ss:$2 sm:$0xff] %v1547
        %v1555 = vld.sshfl [vmem:[#allocation1] sm:$0xff pattern:$0x75316420]
        %v1556 = vld.sshfl [vmem:[#allocation1 + $0x8] sm:$0xff pattern:$0x75316420]
        %v1558 = vsel %vm993, %v1549, 0
        %v1561 = vsel %vm993, %v1550, 0
        %v1564 = vsel %vm993, %v1551, 0
        %v1567 = vsel %vm993, %v1552, 0
        %v1569 = vsel %vm1006, %v1555, 0
        %v1571 = vsel %vm1006, %v1556, 0
        %1573 = vmatpush.msra.mxu0 0.0
        %1574 = vmatpush.msra.mxu0 0.0
        %1575 = vmatpush.msra.mxu0 0.0
        %1576 = vmatpush.msra.mxu0 0.0
        %1577 = vmatpush.msra.mxu0 0.0
        %1578 = vmatpush.msra.mxu0 0.0
        %1579 = vmatpush.msra.mxu0 0.0
        %1580 = vmatpush.msra.mxu0 0.0
        %1581 = vmatpush.msra.mxu0 0.0
        %1582 = vmatpush.msra.mxu0 0.0
        %1583 = vmatpush.msra.mxu0 0.0
        %1584 = vmatpush.msra.mxu0 0.0
        %1585 = vmatpush.msra.mxu0 0.0
        %1586 = vmatpush.msra.mxu0 0.0
        %1587 = vmatpush.msra.mxu0 0.0
        %1588 = vmatpush.msra.mxu0 %v1569
        %1589 = vmatmul.f32.gmra.mxu0 %v1558
        %v1590 = vpop.f32.mrf.mxu0
        %v1591 = vadd.f32 0.0, %v1590
        %1592 = vmatmul.f32.gmra.mxu0 %v1561
        %v1593 = vpop.f32.mrf.mxu0
        %v1594 = vadd.f32 0.0, %v1593
        %1595 = vmatmul.f32.gmra.mxu0 %v1564
        %v1596 = vpop.f32.mrf.mxu0
        %v1597 = vadd.f32 0.0, %v1596
        %1598 = vmatmul.f32.gmra.mxu0 %v1567
        %v1599 = vpop.f32.mrf.mxu0
        %v1600 = vadd.f32 0.0, %v1599
        %1601 = vdwg.mxu0
        %1602 = vmatpush.msra.mxu0 0.0
        %1603 = vmatpush.msra.mxu0 0.0
        %1604 = vmatpush.msra.mxu0 0.0
        %1605 = vmatpush.msra.mxu0 0.0
        %1606 = vmatpush.msra.mxu0 0.0
        %1607 = vmatpush.msra.mxu0 0.0
        %1608 = vmatpush.msra.mxu0 0.0
        %1609 = vmatpush.msra.mxu0 0.0
        %1610 = vmatpush.msra.mxu0 0.0
        %1611 = vmatpush.msra.mxu0 0.0
        %1612 = vmatpush.msra.mxu0 0.0
        %1613 = vmatpush.msra.mxu0 0.0
        %1614 = vmatpush.msra.mxu0 0.0
        %1615 = vmatpush.msra.mxu0 0.0
        %1616 = vmatpush.msra.mxu0 0.0
        %1617 = vmatpush.msra.mxu0 %v1571
        %1618 = vmatmul.f32.gmra.mxu0 %v1558
        %v1619 = vpop.f32.mrf.mxu0
        %v1620 = vadd.f32 0.0, %v1619
        %1621 = vmatmul.f32.gmra.mxu0 %v1561
        %v1622 = vpop.f32.mrf.mxu0
        %v1623 = vadd.f32 0.0, %v1622
        %1624 = vmatmul.f32.gmra.mxu0 %v1564
        %v1625 = vpop.f32.mrf.mxu0
        %v1626 = vadd.f32 0.0, %v1625
        %1627 = vmatmul.f32.gmra.mxu0 %v1567
        %v1628 = vpop.f32.mrf.mxu0
        %v1629 = vadd.f32 0.0, %v1628
        %1630 = vdwg.mxu0
        %v1631 = vadd.f32 %v1384, %v1591
        %v1632 = vadd.f32 %v1385, %v1620
        %v1633 = vadd.f32 %v1386, %v1594
        %v1634 = vadd.f32 %v1387, %v1623
        %v1635 = vadd.f32 %v1388, %v1597
        %v1636 = vadd.f32 %v1389, %v1626
        %v1637 = vadd.f32 %v1390, %v1600
        %v1638 = vadd.f32 %v1391, %v1629
        %v1639 = vand.u32 2147483647, %v1392
        %vm1640 = vcmp.le.f32.partialorder %v1639, 0.7853982
        %vm1641 = vcmp.lt.s32.totalorder %v1392, 0
        %v1642 = vand.u32 %v1392, 2139095040
        %v1643 = vshrl.u32 %v1642, 23
        %v1644 = vsub.s32 %v1643, 127
        %v1645 = vand.u32 2147483647, %v1392
        %v1646 = vand.u32 %v1645, 8388607
        %v1647 = vor.u32 %v1646, 8388608
        %v1648 = vsub.s32 0, %v1647
        %v1649 = vadd.s32 %v1644, 1
        %vm1650 = vcmp.gt.s32.totalorder %v1649, 0
        %v1651 = vsel %vm1650, %v1649, 0
        %v1652 = vshrl.u32 %v1651, 5
        %v1653 = vand.u32 %v1651, 31
        %v1654 = vsub.s32 32, %v1653
        %v1655 = vshrl.u32 683565275, %v1654
        %v1656 = vshll.u32 683565275, %v1653
        %v1657 = vshrl.u32 2475754826, %v1654
        %v1658 = vor.u32 %v1656, %v1657
        %v1659 = vshll.u32 2475754826, %v1653
        %v1660 = vshrl.u32 2131351028, %v1654
        %v1661 = vor.u32 %v1659, %v1660
        %v1662 = vshll.u32 2131351028, %v1653
        %v1663 = vshrl.u32 2102212464, %v1654
        %v1664 = vor.u32 %v1662, %v1663
        %v1665 = vshll.u32 2102212464, %v1653
        %v1666 = vshrl.u32 920167782, %v1654
        %v1667 = vor.u32 %v1665, %v1666
        %v1668 = vshll.u32 920167782, %v1653
        %v1669 = vshrl.u32 1326507024, %v1654
        %v1670 = vor.u32 %v1668, %v1669
        %vm1671 = vcmp.lt.s32.totalorder %v1652, 1
        %vm1672 = vcmp.lt.s32.totalorder %v1652, 2
        %vm1673 = vcmp.lt.s32.totalorder %v1652, 3
        %vm1674 = vcmp.lt.s32.totalorder %v1652, 4
        %v1675 = vsel %vm1671, %v1655, %v1658
        %v1676 = vsel %vm1674, %v1664, 2102212464
        %v1677 = vsel %vm1673, %v1661, %v1676
        %v1678 = vsel %vm1672, %v1675, %v1677
        %v1679 = vsel %vm1671, %v1658, %v1661
        %v1680 = vsel %vm1674, %v1667, 920167782
        %v1681 = vsel %vm1673, %v1664, %v1680
        %v1682 = vsel %vm1672, %v1679, %v1681
        %v1683 = vsel %vm1671, %v1661, %v1664
        %v1684 = vsel %vm1674, %v1670, 1326507024
        %v1685 = vsel %vm1673, %v1667, %v1684
        %v1686 = vsel %vm1672, %v1683, %v1685
        %v1687 = vshll.u32 %v1647, 8
        %v1688 = vand.u32 %v1687, 65535
        %v1689 = vshrl.u32 %v1687, 16
        %v1690 = vand.u32 %v1686, 65535
        %v1691 = vshrl.u32 %v1686, 16
        %v1692 = vmul.u32 %v1688, %v1690
        %v1693 = vmul.u32 %v1688, %v1691
        %v1694 = vmul.u32 %v1689, %v1690
        %v1695 = vmul.u32 %v1689, %v1691
        %v1696 = vshll.u32 %v1693, 16
        %v1697 = vshrl.u32 %v1693, 16
        %v1698 = vshll.u32 %v1694, 16
        %v1699 = vshrl.u32 %v1694, 16
        %vm1700 = vc.u32 %v1692, %v1696
        %v1701 = vsel %vm1700, 1, 0
        %v1702 = vadd.s32 %v1692, %v1696
        %v1703 = vadd.s32 %v1695, %v1701
        %vm1704 = vc.u32 %v1702, %v1698
        %v1705 = vsel %vm1704, 1, 0
        %v1706 = vadd.s32 %v1702, %v1698
        %v1707 = vadd.s32 %v1703, %v1705
        %v1708 = vadd.s32 %v1707, %v1697
        %v1709 = vadd.s32 %v1708, %v1699
        %v1710 = vand.u32 %v1687, 65535
        %v1711 = vshrl.u32 %v1687, 16
        %v1712 = vand.u32 %v1682, 65535
        %v1713 = vshrl.u32 %v1682, 16
        %v1714 = vmul.u32 %v1710, %v1712
        %v1715 = vmul.u32 %v1710, %v1713
        %v1716 = vmul.u32 %v1711, %v1712
        %v1717 = vmul.u32 %v1711, %v1713
        %v1718 = vshll.u32 %v1715, 16
        %v1719 = vshrl.u32 %v1715, 16
        %v1720 = vshll.u32 %v1716, 16
        %v1721 = vshrl.u32 %v1716, 16
        %vm1722 = vc.u32 %v1714, %v1718
        %v1723 = vsel %vm1722, 1, 0
        %v1724 = vadd.s32 %v1714, %v1718
        %v1725 = vadd.s32 %v1717, %v1723
        %vm1726 = vc.u32 %v1724, %v1720
        %v1727 = vsel %vm1726, 1, 0
        %v1728 = vadd.s32 %v1724, %v1720
        %v1729 = vadd.s32 %v1725, %v1727
        %v1730 = vadd.s32 %v1729, %v1719
        %v1731 = vadd.s32 %v1730, %v1721
        %v1732 = vmul.u32 %v1687, %v1678
        %v1733 = vadd.s32 %v1709, %v1728
        %vm1734 = vc.u32 %v1709, %v1728
        %v1735 = vadd.s32 %v1731, 1
        %v1736 = vsel %vm1734, %v1735, %v1731
        %v1737 = vadd.s32 %v1732, %v1736
        %v1738 = vadd.s32 %v1737, 536870912
        %v1739 = vshrl.u32 %v1738, 30
        %v1740 = vshll.u32 %v1739, 30
        %v1741 = vsub.s32 %v1737, %v1740
        %vm1742 = vcmp.lt.s32.totalorder %v1741, 0
        %v1743 = vsub.s32 0, %v1741
        %v1744 = vsel %vm1742, %v1743, %v1741
        %v1745 = vclz %v1744
        %v1746 = vsub.s32 %v1745, 2
        %vm1747 = vcmp.gt.s32.totalorder 0, %v1746
        %v1748 = vsel %vm1747, 0, %v1746
        %v1749 = vsub.s32 32, %v1748
        %v1750 = vshll.u32 %v1741, %v1748
        %v1751 = vshrl.u32 %v1733, %v1749
        %v1752 = vor.u32 %v1750, %v1751
        %v1753 = vsub.s32 4294967266, %v1748
        %v1754 = vadd.s32 %v1753, 127
        %v1755 = vshll.u32 %v1754, 23
        %v1756 = vor.u32 4788187, %v1755
        %v1757 = vand.u32 2147483647, %v1756
        %v1759 = vcvt.s32.f32 %v1752
        %v1760 = vmul.f32 %v1759, %v1757
        %v1761 = vxor.u32 %v1760, 2147483648
        %v1762 = vsel %vm1641, %v1761, %v1760
        %v1763 = vsub.s32 4, %v1739
        %v1764 = vsel %vm1641, %v1763, %v1739
        %v1765 = vsel %vm1640, %v1392, %v1762
        %v1766 = vsel %vm1640, 0, %v1764
        %v1767 = vmul.f32 %v1765, %v1765
        %v1768 = vmul.f32 %v1767, -0.001358992
        %v1769 = vadd.f32 %v1768, 0.041655596
        %v1770 = vmul.f32 %v1767, %v1769
        %v1771 = vadd.f32 %v1770, -0.4999988
        %v1772 = vmul.f32 %v1767, %v1771
        %v1773 = vadd.f32 1.0, %v1772
        %v1774 = vmul.f32 %v1765, %v1765
        %v1775 = vmul.f32 %v1774, -0.00019511016
        %v1776 = vadd.f32 %v1775, 0.008332121
        %v1777 = vmul.f32 %v1774, %v1776
        %v1778 = vadd.f32 %v1777, -0.16666654
        %v1779 = vmul.f32 %v1774, %v1778
        %v1780 = vadd.f32 %v1779, 1.0
        %v1781 = vmul.f32 %v1780, %v1765
        %vm1782 = vweird.f32 %v1392
        %v1783 = vand.u32 %v1766, 3
        %vm1784 = vcmp.lt.s32.totalorder %v1783, 2
        %vm1785 = vcmp.eq.s32.totalorder %v1783, 0
        %v1786 = vxor.u32 %v1781, 2147483648
        %v1787 = vsel %vm1785, %v1773, %v1786
        %vm1788 = vcmp.eq.s32.totalorder %v1783, 2
        %v1789 = vxor.u32 %v1773, 2147483648
        %v1790 = vsel %vm1788, %v1789, %v1781
        %v1791 = vsel %vm1784, %v1787, %v1790
        %v1792 = vsel %vm1782, nan, %v1791
        %s1793 = scalar_lea.vmem %s681, 128 [#allocation3]
        %v1794 = vld [vmem:[%s1793] sm:$0xff]
        %v1795 = vld [vmem:[%s1793 + $0x8] sm:$0xff]
        %v1796 = vld [vmem:[%s1793 + $0x10] sm:$0xff]
        %v1797 = vld [vmem:[%s1793 + $0x18] sm:$0xff]
        %1799 = vst [vmem:[#allocation1] ss:$2 sm:$0xff] %v1792
        %v1800 = vld.sshfl [vmem:[#allocation1] sm:$0xff pattern:$0x75316420]
        %v1801 = vld.sshfl [vmem:[#allocation1 + $0x8] sm:$0xff pattern:$0x75316420]
        %v1803 = vsel %vm993, %v1794, 0
        %v1806 = vsel %vm993, %v1795, 0
        %v1809 = vsel %vm993, %v1796, 0
        %v1812 = vsel %vm993, %v1797, 0
        %v1814 = vsel %vm1006, %v1800, 0
        %v1816 = vsel %vm1006, %v1801, 0
        %1818 = vmatpush.msra.mxu0 0.0
        %1819 = vmatpush.msra.mxu0 0.0
        %1820 = vmatpush.msra.mxu0 0.0
        %1821 = vmatpush.msra.mxu0 0.0
        %1822 = vmatpush.msra.mxu0 0.0
        %1823 = vmatpush.msra.mxu0 0.0
        %1824 = vmatpush.msra.mxu0 0.0
        %1825 = vmatpush.msra.mxu0 0.0
        %1826 = vmatpush.msra.mxu0 0.0
        %1827 = vmatpush.msra.mxu0 0.0
        %1828 = vmatpush.msra.mxu0 0.0
        %1829 = vmatpush.msra.mxu0 0.0
        %1830 = vmatpush.msra.mxu0 0.0
        %1831 = vmatpush.msra.mxu0 0.0
        %1832 = vmatpush.msra.mxu0 0.0
        %1833 = vmatpush.msra.mxu0 %v1814
        %1834 = vmatmul.f32.gmra.mxu0 %v1803
        %v1835 = vpop.f32.mrf.mxu0
        %v1836 = vadd.f32 0.0, %v1835
        %1837 = vmatmul.f32.gmra.mxu0 %v1806
        %v1838 = vpop.f32.mrf.mxu0
        %v1839 = vadd.f32 0.0, %v1838
        %1840 = vmatmul.f32.gmra.mxu0 %v1809
        %v1841 = vpop.f32.mrf.mxu0
        %v1842 = vadd.f32 0.0, %v1841
        %1843 = vmatmul.f32.gmra.mxu0 %v1812
        %v1844 = vpop.f32.mrf.mxu0
        %v1845 = vadd.f32 0.0, %v1844
        %1846 = vdwg.mxu0
        %1847 = vmatpush.msra.mxu0 0.0
        %1848 = vmatpush.msra.mxu0 0.0
        %1849 = vmatpush.msra.mxu0 0.0
        %1850 = vmatpush.msra.mxu0 0.0
        %1851 = vmatpush.msra.mxu0 0.0
        %1852 = vmatpush.msra.mxu0 0.0
        %1853 = vmatpush.msra.mxu0 0.0
        %1854 = vmatpush.msra.mxu0 0.0
        %1855 = vmatpush.msra.mxu0 0.0
        %1856 = vmatpush.msra.mxu0 0.0
        %1857 = vmatpush.msra.mxu0 0.0
        %1858 = vmatpush.msra.mxu0 0.0
        %1859 = vmatpush.msra.mxu0 0.0
        %1860 = vmatpush.msra.mxu0 0.0
        %1861 = vmatpush.msra.mxu0 0.0
        %1862 = vmatpush.msra.mxu0 %v1816
        %1863 = vmatmul.f32.gmra.mxu0 %v1803
        %v1864 = vpop.f32.mrf.mxu0
        %v1865 = vadd.f32 0.0, %v1864
        %1866 = vmatmul.f32.gmra.mxu0 %v1806
        %v1867 = vpop.f32.mrf.mxu0
        %v1868 = vadd.f32 0.0, %v1867
        %1869 = vmatmul.f32.gmra.mxu0 %v1809
        %v1870 = vpop.f32.mrf.mxu0
        %v1871 = vadd.f32 0.0, %v1870
        %1872 = vmatmul.f32.gmra.mxu0 %v1812
        %v1873 = vpop.f32.mrf.mxu0
        %v1874 = vadd.f32 0.0, %v1873
        %1875 = vdwg.mxu0
        %v1876 = vadd.f32 %v1631, %v1836
        %v1877 = vadd.f32 %v1632, %v1865
        %v1878 = vadd.f32 %v1633, %v1839
        %v1879 = vadd.f32 %v1634, %v1868
        %v1880 = vadd.f32 %v1635, %v1842
        %v1881 = vadd.f32 %v1636, %v1871
        %v1882 = vadd.f32 %v1637, %v1845
        %v1883 = vadd.f32 %v1638, %v1874
        %v1884 = vmul.f32 %v823, 4.0
        %v1885 = vand.u32 2147483647, %v1884
        %vm1886 = vcmp.le.f32.partialorder %v1885, 0.7853982
        %vm1887 = vcmp.lt.s32.totalorder %v1884, 0
        %v1888 = vand.u32 %v1884, 2139095040
        %v1889 = vshrl.u32 %v1888, 23
        %v1890 = vsub.s32 %v1889, 127
        %v1891 = vand.u32 2147483647, %v1884
        %v1892 = vand.u32 %v1891, 8388607
        %v1893 = vor.u32 %v1892, 8388608
        %v1894 = vsub.s32 0, %v1893
        %v1895 = vadd.s32 %v1890, 1
        %vm1896 = vcmp.gt.s32.totalorder %v1895, 0
        %v1897 = vsel %vm1896, %v1895, 0
        %v1898 = vshrl.u32 %v1897, 5
        %v1899 = vand.u32 %v1897, 31
        %v1900 = vsub.s32 32, %v1899
        %v1901 = vshrl.u32 683565275, %v1900
        %v1902 = vshll.u32 683565275, %v1899
        %v1903 = vshrl.u32 2475754826, %v1900
        %v1904 = vor.u32 %v1902, %v1903
        %v1905 = vshll.u32 2475754826, %v1899
        %v1906 = vshrl.u32 2131351028, %v1900
        %v1907 = vor.u32 %v1905, %v1906
        %v1908 = vshll.u32 2131351028, %v1899
        %v1909 = vshrl.u32 2102212464, %v1900
        %v1910 = vor.u32 %v1908, %v1909
        %v1911 = vshll.u32 2102212464, %v1899
        %v1912 = vshrl.u32 920167782, %v1900
        %v1913 = vor.u32 %v1911, %v1912
        %v1914 = vshll.u32 920167782, %v1899
        %v1915 = vshrl.u32 1326507024, %v1900
        %v1916 = vor.u32 %v1914, %v1915
        %vm1917 = vcmp.lt.s32.totalorder %v1898, 1
        %vm1918 = vcmp.lt.s32.totalorder %v1898, 2
        %vm1919 = vcmp.lt.s32.totalorder %v1898, 3
        %vm1920 = vcmp.lt.s32.totalorder %v1898, 4
        %v1921 = vsel %vm1917, %v1901, %v1904
        %v1922 = vsel %vm1920, %v1910, 2102212464
        %v1923 = vsel %vm1919, %v1907, %v1922
        %v1924 = vsel %vm1918, %v1921, %v1923
        %v1925 = vsel %vm1917, %v1904, %v1907
        %v1926 = vsel %vm1920, %v1913, 920167782
        %v1927 = vsel %vm1919, %v1910, %v1926
        %v1928 = vsel %vm1918, %v1925, %v1927
        %v1929 = vsel %vm1917, %v1907, %v1910
        %v1930 = vsel %vm1920, %v1916, 1326507024
        %v1931 = vsel %vm1919, %v1913, %v1930
        %v1932 = vsel %vm1918, %v1929, %v1931
        %v1933 = vshll.u32 %v1893, 8
        %v1934 = vand.u32 %v1933, 65535
        %v1935 = vshrl.u32 %v1933, 16
        %v1936 = vand.u32 %v1932, 65535
        %v1937 = vshrl.u32 %v1932, 16
        %v1938 = vmul.u32 %v1934, %v1936
        %v1939 = vmul.u32 %v1934, %v1937
        %v1940 = vmul.u32 %v1935, %v1936
        %v1941 = vmul.u32 %v1935, %v1937
        %v1942 = vshll.u32 %v1939, 16
        %v1943 = vshrl.u32 %v1939, 16
        %v1944 = vshll.u32 %v1940, 16
        %v1945 = vshrl.u32 %v1940, 16
        %vm1946 = vc.u32 %v1938, %v1942
        %v1947 = vsel %vm1946, 1, 0
        %v1948 = vadd.s32 %v1938, %v1942
        %v1949 = vadd.s32 %v1941, %v1947
        %vm1950 = vc.u32 %v1948, %v1944
        %v1951 = vsel %vm1950, 1, 0
        %v1952 = vadd.s32 %v1948, %v1944
        %v1953 = vadd.s32 %v1949, %v1951
        %v1954 = vadd.s32 %v1953, %v1943
        %v1955 = vadd.s32 %v1954, %v1945
        %v1956 = vand.u32 %v1933, 65535
        %v1957 = vshrl.u32 %v1933, 16
        %v1958 = vand.u32 %v1928, 65535
        %v1959 = vshrl.u32 %v1928, 16
        %v1960 = vmul.u32 %v1956, %v1958
        %v1961 = vmul.u32 %v1956, %v1959
        %v1962 = vmul.u32 %v1957, %v1958
        %v1963 = vmul.u32 %v1957, %v1959
        %v1964 = vshll.u32 %v1961, 16
        %v1965 = vshrl.u32 %v1961, 16
        %v1966 = vshll.u32 %v1962, 16
        %v1967 = vshrl.u32 %v1962, 16
        %vm1968 = vc.u32 %v1960, %v1964
        %v1969 = vsel %vm1968, 1, 0
        %v1970 = vadd.s32 %v1960, %v1964
        %v1971 = vadd.s32 %v1963, %v1969
        %vm1972 = vc.u32 %v1970, %v1966
        %v1973 = vsel %vm1972, 1, 0
        %v1974 = vadd.s32 %v1970, %v1966
        %v1975 = vadd.s32 %v1971, %v1973
        %v1976 = vadd.s32 %v1975, %v1965
        %v1977 = vadd.s32 %v1976, %v1967
        %v1978 = vmul.u32 %v1933, %v1924
        %v1979 = vadd.s32 %v1955, %v1974
        %vm1980 = vc.u32 %v1955, %v1974
        %v1981 = vadd.s32 %v1977, 1
        %v1982 = vsel %vm1980, %v1981, %v1977
        %v1983 = vadd.s32 %v1978, %v1982
        %v1984 = vadd.s32 %v1983, 536870912
        %v1985 = vshrl.u32 %v1984, 30
        %v1986 = vshll.u32 %v1985, 30
        %v1987 = vsub.s32 %v1983, %v1986
        %vm1988 = vcmp.lt.s32.totalorder %v1987, 0
        %v1989 = vsub.s32 0, %v1987
        %v1990 = vsel %vm1988, %v1989, %v1987
        %v1991 = vclz %v1990
        %v1992 = vsub.s32 %v1991, 2
        %vm1993 = vcmp.gt.s32.totalorder 0, %v1992
        %v1994 = vsel %vm1993, 0, %v1992
        %v1995 = vsub.s32 32, %v1994
        %v1996 = vshll.u32 %v1987, %v1994
        %v1997 = vshrl.u32 %v1979, %v1995
        %v1998 = vor.u32 %v1996, %v1997
        %v1999 = vsub.s32 4294967266, %v1994
        %v2000 = vadd.s32 %v1999, 127
        %v2001 = vshll.u32 %v2000, 23
        %v2002 = vor.u32 4788187, %v2001
        %v2003 = vand.u32 2147483647, %v2002
        %v2005 = vcvt.s32.f32 %v1998
        %v2006 = vmul.f32 %v2005, %v2003
        %v2007 = vxor.u32 %v2006, 2147483648
        %v2008 = vsel %vm1887, %v2007, %v2006
        %v2009 = vsub.s32 4, %v1985
        %v2010 = vsel %vm1887, %v2009, %v1985
        %v2011 = vsel %vm1886, %v1884, %v2008
        %v2012 = vsel %vm1886, 0, %v2010
        %v2013 = vmul.f32 %v2011, %v2011
        %v2014 = vmul.f32 %v2013, -0.001358992
        %v2015 = vadd.f32 %v2014, 0.041655596
        %v2016 = vmul.f32 %v2013, %v2015
        %v2017 = vadd.f32 %v2016, -0.4999988
        %v2018 = vmul.f32 %v2013, %v2017
        %v2019 = vadd.f32 1.0, %v2018
        %v2020 = vmul.f32 %v2011, %v2011
        %v2021 = vmul.f32 %v2020, -0.00019511016
        %v2022 = vadd.f32 %v2021, 0.008332121
        %v2023 = vmul.f32 %v2020, %v2022
        %v2024 = vadd.f32 %v2023, -0.16666654
        %v2025 = vmul.f32 %v2020, %v2024
        %v2026 = vadd.f32 %v2025, 1.0
        %v2027 = vmul.f32 %v2026, %v2011
        %vm2028 = vweird.f32 %v1884
        %v2029 = vadd.s32 %v2012, 3
        %v2030 = vand.u32 %v2029, 3
        %vm2031 = vcmp.lt.s32.totalorder %v2030, 2
        %vm2032 = vcmp.eq.s32.totalorder %v2030, 0
        %v2033 = vxor.u32 %v2027, 2147483648
        %v2034 = vsel %vm2032, %v2019, %v2033
        %vm2035 = vcmp.eq.s32.totalorder %v2030, 2
        %v2036 = vxor.u32 %v2019, 2147483648
        %v2037 = vsel %vm2035, %v2036, %v2027
        %v2038 = vsel %vm2031, %v2034, %v2037
        %v2039 = vsel %vm2028, nan, %v2038
        %s2040 = scalar_lea.vmem %s681, 160 [#allocation3]
        %v2041 = vld [vmem:[%s2040] sm:$0xff]
        %v2042 = vld [vmem:[%s2040 + $0x8] sm:$0xff]
        %v2043 = vld [vmem:[%s2040 + $0x10] sm:$0xff]
        %v2044 = vld [vmem:[%s2040 + $0x18] sm:$0xff]
        %2046 = vst [vmem:[#allocation1] ss:$2 sm:$0xff] %v2039
        %v2047 = vld.sshfl [vmem:[#allocation1] sm:$0xff pattern:$0x75316420]
        %v2048 = vld.sshfl [vmem:[#allocation1 + $0x8] sm:$0xff pattern:$0x75316420]
        %v2050 = vsel %vm993, %v2041, 0
        %v2053 = vsel %vm993, %v2042, 0
        %v2056 = vsel %vm993, %v2043, 0
        %v2059 = vsel %vm993, %v2044, 0
        %v2061 = vsel %vm1006, %v2047, 0
        %v2063 = vsel %vm1006, %v2048, 0
        %2065 = vmatpush.msra.mxu0 0.0
        %2066 = vmatpush.msra.mxu0 0.0
        %2067 = vmatpush.msra.mxu0 0.0
        %2068 = vmatpush.msra.mxu0 0.0
        %2069 = vmatpush.msra.mxu0 0.0
        %2070 = vmatpush.msra.mxu0 0.0
        %2071 = vmatpush.msra.mxu0 0.0
        %2072 = vmatpush.msra.mxu0 0.0
        %2073 = vmatpush.msra.mxu0 0.0
        %2074 = vmatpush.msra.mxu0 0.0
        %2075 = vmatpush.msra.mxu0 0.0
        %2076 = vmatpush.msra.mxu0 0.0
        %2077 = vmatpush.msra.mxu0 0.0
        %2078 = vmatpush.msra.mxu0 0.0
        %2079 = vmatpush.msra.mxu0 0.0
        %2080 = vmatpush.msra.mxu0 %v2061
        %2081 = vmatmul.f32.gmra.mxu0 %v2050
        %v2082 = vpop.f32.mrf.mxu0
        %v2083 = vadd.f32 0.0, %v2082
        %2084 = vmatmul.f32.gmra.mxu0 %v2053
        %v2085 = vpop.f32.mrf.mxu0
        %v2086 = vadd.f32 0.0, %v2085
        %2087 = vmatmul.f32.gmra.mxu0 %v2056
        %v2088 = vpop.f32.mrf.mxu0
        %v2089 = vadd.f32 0.0, %v2088
        %2090 = vmatmul.f32.gmra.mxu0 %v2059
        %v2091 = vpop.f32.mrf.mxu0
        %v2092 = vadd.f32 0.0, %v2091
        %2093 = vdwg.mxu0
        %2094 = vmatpush.msra.mxu0 0.0
        %2095 = vmatpush.msra.mxu0 0.0
        %2096 = vmatpush.msra.mxu0 0.0
        %2097 = vmatpush.msra.mxu0 0.0
        %2098 = vmatpush.msra.mxu0 0.0
        %2099 = vmatpush.msra.mxu0 0.0
        %2100 = vmatpush.msra.mxu0 0.0
        %2101 = vmatpush.msra.mxu0 0.0
        %2102 = vmatpush.msra.mxu0 0.0
        %2103 = vmatpush.msra.mxu0 0.0
        %2104 = vmatpush.msra.mxu0 0.0
        %2105 = vmatpush.msra.mxu0 0.0
        %2106 = vmatpush.msra.mxu0 0.0
        %2107 = vmatpush.msra.mxu0 0.0
        %2108 = vmatpush.msra.mxu0 0.0
        %2109 = vmatpush.msra.mxu0 %v2063
        %2110 = vmatmul.f32.gmra.mxu0 %v2050
        %v2111 = vpop.f32.mrf.mxu0
        %v2112 = vadd.f32 0.0, %v2111
        %2113 = vmatmul.f32.gmra.mxu0 %v2053
        %v2114 = vpop.f32.mrf.mxu0
        %v2115 = vadd.f32 0.0, %v2114
        %2116 = vmatmul.f32.gmra.mxu0 %v2056
        %v2117 = vpop.f32.mrf.mxu0
        %v2118 = vadd.f32 0.0, %v2117
        %2119 = vmatmul.f32.gmra.mxu0 %v2059
        %v2120 = vpop.f32.mrf.mxu0
        %v2121 = vadd.f32 0.0, %v2120
        %2122 = vdwg.mxu0
        %v2123 = vadd.f32 %v1876, %v2083
        %v2124 = vadd.f32 %v1877, %v2112
        %v2125 = vadd.f32 %v1878, %v2086
        %v2126 = vadd.f32 %v1879, %v2115
        %v2127 = vadd.f32 %v1880, %v2089
        %v2128 = vadd.f32 %v1881, %v2118
        %v2129 = vadd.f32 %v1882, %v2092
        %v2130 = vadd.f32 %v1883, %v2121
        %v2131 = vand.u32 2147483647, %v1884
        %vm2132 = vcmp.le.f32.partialorder %v2131, 0.7853982
        %vm2133 = vcmp.lt.s32.totalorder %v1884, 0
        %v2134 = vand.u32 %v1884, 2139095040
        %v2135 = vshrl.u32 %v2134, 23
        %v2136 = vsub.s32 %v2135, 127
        %v2137 = vand.u32 2147483647, %v1884
        %v2138 = vand.u32 %v2137, 8388607
        %v2139 = vor.u32 %v2138, 8388608
        %v2140 = vsub.s32 0, %v2139
        %v2141 = vadd.s32 %v2136, 1
        %vm2142 = vcmp.gt.s32.totalorder %v2141, 0
        %v2143 = vsel %vm2142, %v2141, 0
        %v2144 = vshrl.u32 %v2143, 5
        %v2145 = vand.u32 %v2143, 31
        %v2146 = vsub.s32 32, %v2145
        %v2147 = vshrl.u32 683565275, %v2146
        %v2148 = vshll.u32 683565275, %v2145
        %v2149 = vshrl.u32 2475754826, %v2146
        %v2150 = vor.u32 %v2148, %v2149
        %v2151 = vshll.u32 2475754826, %v2145
        %v2152 = vshrl.u32 2131351028, %v2146
        %v2153 = vor.u32 %v2151, %v2152
        %v2154 = vshll.u32 2131351028, %v2145
        %v2155 = vshrl.u32 2102212464, %v2146
        %v2156 = vor.u32 %v2154, %v2155
        %v2157 = vshll.u32 2102212464, %v2145
        %v2158 = vshrl.u32 920167782, %v2146
        %v2159 = vor.u32 %v2157, %v2158
        %v2160 = vshll.u32 920167782, %v2145
        %v2161 = vshrl.u32 1326507024, %v2146
        %v2162 = vor.u32 %v2160, %v2161
        %vm2163 = vcmp.lt.s32.totalorder %v2144, 1
        %vm2164 = vcmp.lt.s32.totalorder %v2144, 2
        %vm2165 = vcmp.lt.s32.totalorder %v2144, 3
        %vm2166 = vcmp.lt.s32.totalorder %v2144, 4
        %v2167 = vsel %vm2163, %v2147, %v2150
        %v2168 = vsel %vm2166, %v2156, 2102212464
        %v2169 = vsel %vm2165, %v2153, %v2168
        %v2170 = vsel %vm2164, %v2167, %v2169
        %v2171 = vsel %vm2163, %v2150, %v2153
        %v2172 = vsel %vm2166, %v2159, 920167782
        %v2173 = vsel %vm2165, %v2156, %v2172
        %v2174 = vsel %vm2164, %v2171, %v2173
        %v2175 = vsel %vm2163, %v2153, %v2156
        %v2176 = vsel %vm2166, %v2162, 1326507024
        %v2177 = vsel %vm2165, %v2159, %v2176
        %v2178 = vsel %vm2164, %v2175, %v2177
        %v2179 = vshll.u32 %v2139, 8
        %v2180 = vand.u32 %v2179, 65535
        %v2181 = vshrl.u32 %v2179, 16
        %v2182 = vand.u32 %v2178, 65535
        %v2183 = vshrl.u32 %v2178, 16
        %v2184 = vmul.u32 %v2180, %v2182
        %v2185 = vmul.u32 %v2180, %v2183
        %v2186 = vmul.u32 %v2181, %v2182
        %v2187 = vmul.u32 %v2181, %v2183
        %v2188 = vshll.u32 %v2185, 16
        %v2189 = vshrl.u32 %v2185, 16
        %v2190 = vshll.u32 %v2186, 16
        %v2191 = vshrl.u32 %v2186, 16
        %vm2192 = vc.u32 %v2184, %v2188
        %v2193 = vsel %vm2192, 1, 0
        %v2194 = vadd.s32 %v2184, %v2188
        %v2195 = vadd.s32 %v2187, %v2193
        %vm2196 = vc.u32 %v2194, %v2190
        %v2197 = vsel %vm2196, 1, 0
        %v2198 = vadd.s32 %v2194, %v2190
        %v2199 = vadd.s32 %v2195, %v2197
        %v2200 = vadd.s32 %v2199, %v2189
        %v2201 = vadd.s32 %v2200, %v2191
        %v2202 = vand.u32 %v2179, 65535
        %v2203 = vshrl.u32 %v2179, 16
        %v2204 = vand.u32 %v2174, 65535
        %v2205 = vshrl.u32 %v2174, 16
        %v2206 = vmul.u32 %v2202, %v2204
        %v2207 = vmul.u32 %v2202, %v2205
        %v2208 = vmul.u32 %v2203, %v2204
        %v2209 = vmul.u32 %v2203, %v2205
        %v2210 = vshll.u32 %v2207, 16
        %v2211 = vshrl.u32 %v2207, 16
        %v2212 = vshll.u32 %v2208, 16
        %v2213 = vshrl.u32 %v2208, 16
        %vm2214 = vc.u32 %v2206, %v2210
        %v2215 = vsel %vm2214, 1, 0
        %v2216 = vadd.s32 %v2206, %v2210
        %v2217 = vadd.s32 %v2209, %v2215
        %vm2218 = vc.u32 %v2216, %v2212
        %v2219 = vsel %vm2218, 1, 0
        %v2220 = vadd.s32 %v2216, %v2212
        %v2221 = vadd.s32 %v2217, %v2219
        %v2222 = vadd.s32 %v2221, %v2211
        %v2223 = vadd.s32 %v2222, %v2213
        %v2224 = vmul.u32 %v2179, %v2170
        %v2225 = vadd.s32 %v2201, %v2220
        %vm2226 = vc.u32 %v2201, %v2220
        %v2227 = vadd.s32 %v2223, 1
        %v2228 = vsel %vm2226, %v2227, %v2223
        %v2229 = vadd.s32 %v2224, %v2228
        %v2230 = vadd.s32 %v2229, 536870912
        %v2231 = vshrl.u32 %v2230, 30
        %v2232 = vshll.u32 %v2231, 30
        %v2233 = vsub.s32 %v2229, %v2232
        %vm2234 = vcmp.lt.s32.totalorder %v2233, 0
        %v2235 = vsub.s32 0, %v2233
        %v2236 = vsel %vm2234, %v2235, %v2233
        %v2237 = vclz %v2236
        %v2238 = vsub.s32 %v2237, 2
        %vm2239 = vcmp.gt.s32.totalorder 0, %v2238
        %v2240 = vsel %vm2239, 0, %v2238
        %v2241 = vsub.s32 32, %v2240
        %v2242 = vshll.u32 %v2233, %v2240
        %v2243 = vshrl.u32 %v2225, %v2241
        %v2244 = vor.u32 %v2242, %v2243
        %v2245 = vsub.s32 4294967266, %v2240
        %v2246 = vadd.s32 %v2245, 127
        %v2247 = vshll.u32 %v2246, 23
        %v2248 = vor.u32 4788187, %v2247
        %v2249 = vand.u32 2147483647, %v2248
        %v2251 = vcvt.s32.f32 %v2244
        %v2252 = vmul.f32 %v2251, %v2249
        %v2253 = vxor.u32 %v2252, 2147483648
        %v2254 = vsel %vm2133, %v2253, %v2252
        %v2255 = vsub.s32 4, %v2231
        %v2256 = vsel %vm2133, %v2255, %v2231
        %v2257 = vsel %vm2132, %v1884, %v2254
        %v2258 = vsel %vm2132, 0, %v2256
        %v2259 = vmul.f32 %v2257, %v2257
        %v2260 = vmul.f32 %v2259, -0.001358992
        %v2261 = vadd.f32 %v2260, 0.041655596
        %v2262 = vmul.f32 %v2259, %v2261
        %v2263 = vadd.f32 %v2262, -0.4999988
        %v2264 = vmul.f32 %v2259, %v2263
        %v2265 = vadd.f32 1.0, %v2264
        %v2266 = vmul.f32 %v2257, %v2257
        %v2267 = vmul.f32 %v2266, -0.00019511016
        %v2268 = vadd.f32 %v2267, 0.008332121
        %v2269 = vmul.f32 %v2266, %v2268
        %v2270 = vadd.f32 %v2269, -0.16666654
        %v2271 = vmul.f32 %v2266, %v2270
        %v2272 = vadd.f32 %v2271, 1.0
        %v2273 = vmul.f32 %v2272, %v2257
        %vm2274 = vweird.f32 %v1884
        %v2275 = vand.u32 %v2258, 3
        %vm2276 = vcmp.lt.s32.totalorder %v2275, 2
        %vm2277 = vcmp.eq.s32.totalorder %v2275, 0
        %v2278 = vxor.u32 %v2273, 2147483648
        %v2279 = vsel %vm2277, %v2265, %v2278
        %vm2280 = vcmp.eq.s32.totalorder %v2275, 2
        %v2281 = vxor.u32 %v2265, 2147483648
        %v2282 = vsel %vm2280, %v2281, %v2273
        %v2283 = vsel %vm2276, %v2279, %v2282
        %v2284 = vsel %vm2274, nan, %v2283
        %s2285 = scalar_lea.vmem %s681, 192 [#allocation3]
        %v2286 = vld [vmem:[%s2285] sm:$0xff]
        %v2287 = vld [vmem:[%s2285 + $0x8] sm:$0xff]
        %v2288 = vld [vmem:[%s2285 + $0x10] sm:$0xff]
        %v2289 = vld [vmem:[%s2285 + $0x18] sm:$0xff]
        %2291 = vst [vmem:[#allocation1] ss:$2 sm:$0xff] %v2284
        %v2292 = vld.sshfl [vmem:[#allocation1] sm:$0xff pattern:$0x75316420]
        %v2293 = vld.sshfl [vmem:[#allocation1 + $0x8] sm:$0xff pattern:$0x75316420]
        %v2295 = vsel %vm993, %v2286, 0
        %v2298 = vsel %vm993, %v2287, 0
        %v2301 = vsel %vm993, %v2288, 0
        %v2304 = vsel %vm993, %v2289, 0
        %v2306 = vsel %vm1006, %v2292, 0
        %v2308 = vsel %vm1006, %v2293, 0
        %2310 = vmatpush.msra.mxu0 0.0
        %2311 = vmatpush.msra.mxu0 0.0
        %2312 = vmatpush.msra.mxu0 0.0
        %2313 = vmatpush.msra.mxu0 0.0
        %2314 = vmatpush.msra.mxu0 0.0
        %2315 = vmatpush.msra.mxu0 0.0
        %2316 = vmatpush.msra.mxu0 0.0
        %2317 = vmatpush.msra.mxu0 0.0
        %2318 = vmatpush.msra.mxu0 0.0
        %2319 = vmatpush.msra.mxu0 0.0
        %2320 = vmatpush.msra.mxu0 0.0
        %2321 = vmatpush.msra.mxu0 0.0
        %2322 = vmatpush.msra.mxu0 0.0
        %2323 = vmatpush.msra.mxu0 0.0
        %2324 = vmatpush.msra.mxu0 0.0
        %2325 = vmatpush.msra.mxu0 %v2306
        %2326 = vmatmul.f32.gmra.mxu0 %v2295
        %v2327 = vpop.f32.mrf.mxu0
        %v2328 = vadd.f32 0.0, %v2327
        %2329 = vmatmul.f32.gmra.mxu0 %v2298
        %v2330 = vpop.f32.mrf.mxu0
        %v2331 = vadd.f32 0.0, %v2330
        %2332 = vmatmul.f32.gmra.mxu0 %v2301
        %v2333 = vpop.f32.mrf.mxu0
        %v2334 = vadd.f32 0.0, %v2333
        %2335 = vmatmul.f32.gmra.mxu0 %v2304
        %v2336 = vpop.f32.mrf.mxu0
        %v2337 = vadd.f32 0.0, %v2336
        %2338 = vdwg.mxu0
        %2339 = vmatpush.msra.mxu0 0.0
        %2340 = vmatpush.msra.mxu0 0.0
        %2341 = vmatpush.msra.mxu0 0.0
        %2342 = vmatpush.msra.mxu0 0.0
        %2343 = vmatpush.msra.mxu0 0.0
        %2344 = vmatpush.msra.mxu0 0.0
        %2345 = vmatpush.msra.mxu0 0.0
        %2346 = vmatpush.msra.mxu0 0.0
        %2347 = vmatpush.msra.mxu0 0.0
        %2348 = vmatpush.msra.mxu0 0.0
        %2349 = vmatpush.msra.mxu0 0.0
        %2350 = vmatpush.msra.mxu0 0.0
        %2351 = vmatpush.msra.mxu0 0.0
        %2352 = vmatpush.msra.mxu0 0.0
        %2353 = vmatpush.msra.mxu0 0.0
        %2354 = vmatpush.msra.mxu0 %v2308
        %2355 = vmatmul.f32.gmra.mxu0 %v2295
        %v2356 = vpop.f32.mrf.mxu0
        %v2357 = vadd.f32 0.0, %v2356
        %2358 = vmatmul.f32.gmra.mxu0 %v2298
        %v2359 = vpop.f32.mrf.mxu0
        %v2360 = vadd.f32 0.0, %v2359
        %2361 = vmatmul.f32.gmra.mxu0 %v2301
        %v2362 = vpop.f32.mrf.mxu0
        %v2363 = vadd.f32 0.0, %v2362
        %2364 = vmatmul.f32.gmra.mxu0 %v2304
        %v2365 = vpop.f32.mrf.mxu0
        %v2366 = vadd.f32 0.0, %v2365
        %2367 = vdwg.mxu0
        %v2368 = vadd.f32 %v2123, %v2328
        %v2369 = vadd.f32 %v2124, %v2357
        %v2370 = vadd.f32 %v2125, %v2331
        %v2371 = vadd.f32 %v2126, %v2360
        %v2372 = vadd.f32 %v2127, %v2334
        %v2373 = vadd.f32 %v2128, %v2363
        %v2374 = vadd.f32 %v2129, %v2337
        %v2375 = vadd.f32 %v2130, %v2366
        %v2376 = vmul.f32 %v823, 8.0
        %v2377 = vand.u32 2147483647, %v2376
        %vm2378 = vcmp.le.f32.partialorder %v2377, 0.7853982
        %vm2379 = vcmp.lt.s32.totalorder %v2376, 0
        %v2380 = vand.u32 %v2376, 2139095040
        %v2381 = vshrl.u32 %v2380, 23
        %v2382 = vsub.s32 %v2381, 127
        %v2383 = vand.u32 2147483647, %v2376
        %v2384 = vand.u32 %v2383, 8388607
        %v2385 = vor.u32 %v2384, 8388608
        %v2386 = vsub.s32 0, %v2385
        %v2387 = vadd.s32 %v2382, 1
        %vm2388 = vcmp.gt.s32.totalorder %v2387, 0
        %v2389 = vsel %vm2388, %v2387, 0
        %v2390 = vshrl.u32 %v2389, 5
        %v2391 = vand.u32 %v2389, 31
        %v2392 = vsub.s32 32, %v2391
        %v2393 = vshrl.u32 683565275, %v2392
        %v2394 = vshll.u32 683565275, %v2391
        %v2395 = vshrl.u32 2475754826, %v2392
        %v2396 = vor.u32 %v2394, %v2395
        %v2397 = vshll.u32 2475754826, %v2391
        %v2398 = vshrl.u32 2131351028, %v2392
        %v2399 = vor.u32 %v2397, %v2398
        %v2400 = vshll.u32 2131351028, %v2391
        %v2401 = vshrl.u32 2102212464, %v2392
        %v2402 = vor.u32 %v2400, %v2401
        %v2403 = vshll.u32 2102212464, %v2391
        %v2404 = vshrl.u32 920167782, %v2392
        %v2405 = vor.u32 %v2403, %v2404
        %v2406 = vshll.u32 920167782, %v2391
        %v2407 = vshrl.u32 1326507024, %v2392
        %v2408 = vor.u32 %v2406, %v2407
        %vm2409 = vcmp.lt.s32.totalorder %v2390, 1
        %vm2410 = vcmp.lt.s32.totalorder %v2390, 2
        %vm2411 = vcmp.lt.s32.totalorder %v2390, 3
        %vm2412 = vcmp.lt.s32.totalorder %v2390, 4
        %v2413 = vsel %vm2409, %v2393, %v2396
        %v2414 = vsel %vm2412, %v2402, 2102212464
        %v2415 = vsel %vm2411, %v2399, %v2414
        %v2416 = vsel %vm2410, %v2413, %v2415
        %v2417 = vsel %vm2409, %v2396, %v2399
        %v2418 = vsel %vm2412, %v2405, 920167782
        %v2419 = vsel %vm2411, %v2402, %v2418
        %v2420 = vsel %vm2410, %v2417, %v2419
        %v2421 = vsel %vm2409, %v2399, %v2402
        %v2422 = vsel %vm2412, %v2408, 1326507024
        %v2423 = vsel %vm2411, %v2405, %v2422
        %v2424 = vsel %vm2410, %v2421, %v2423
        %v2425 = vshll.u32 %v2385, 8
        %v2426 = vand.u32 %v2425, 65535
        %v2427 = vshrl.u32 %v2425, 16
        %v2428 = vand.u32 %v2424, 65535
        %v2429 = vshrl.u32 %v2424, 16
        %v2430 = vmul.u32 %v2426, %v2428
        %v2431 = vmul.u32 %v2426, %v2429
        %v2432 = vmul.u32 %v2427, %v2428
        %v2433 = vmul.u32 %v2427, %v2429
        %v2434 = vshll.u32 %v2431, 16
        %v2435 = vshrl.u32 %v2431, 16
        %v2436 = vshll.u32 %v2432, 16
        %v2437 = vshrl.u32 %v2432, 16
        %vm2438 = vc.u32 %v2430, %v2434
        %v2439 = vsel %vm2438, 1, 0
        %v2440 = vadd.s32 %v2430, %v2434
        %v2441 = vadd.s32 %v2433, %v2439
        %vm2442 = vc.u32 %v2440, %v2436
        %v2443 = vsel %vm2442, 1, 0
        %v2444 = vadd.s32 %v2440, %v2436
        %v2445 = vadd.s32 %v2441, %v2443
        %v2446 = vadd.s32 %v2445, %v2435
        %v2447 = vadd.s32 %v2446, %v2437
        %v2448 = vand.u32 %v2425, 65535
        %v2449 = vshrl.u32 %v2425, 16
        %v2450 = vand.u32 %v2420, 65535
        %v2451 = vshrl.u32 %v2420, 16
        %v2452 = vmul.u32 %v2448, %v2450
        %v2453 = vmul.u32 %v2448, %v2451
        %v2454 = vmul.u32 %v2449, %v2450
        %v2455 = vmul.u32 %v2449, %v2451
        %v2456 = vshll.u32 %v2453, 16
        %v2457 = vshrl.u32 %v2453, 16
        %v2458 = vshll.u32 %v2454, 16
        %v2459 = vshrl.u32 %v2454, 16
        %vm2460 = vc.u32 %v2452, %v2456
        %v2461 = vsel %vm2460, 1, 0
        %v2462 = vadd.s32 %v2452, %v2456
        %v2463 = vadd.s32 %v2455, %v2461
        %vm2464 = vc.u32 %v2462, %v2458
        %v2465 = vsel %vm2464, 1, 0
        %v2466 = vadd.s32 %v2462, %v2458
        %v2467 = vadd.s32 %v2463, %v2465
        %v2468 = vadd.s32 %v2467, %v2457
        %v2469 = vadd.s32 %v2468, %v2459
        %v2470 = vmul.u32 %v2425, %v2416
        %v2471 = vadd.s32 %v2447, %v2466
        %vm2472 = vc.u32 %v2447, %v2466
        %v2473 = vadd.s32 %v2469, 1
        %v2474 = vsel %vm2472, %v2473, %v2469
        %v2475 = vadd.s32 %v2470, %v2474
        %v2476 = vadd.s32 %v2475, 536870912
        %v2477 = vshrl.u32 %v2476, 30
        %v2478 = vshll.u32 %v2477, 30
        %v2479 = vsub.s32 %v2475, %v2478
        %vm2480 = vcmp.lt.s32.totalorder %v2479, 0
        %v2481 = vsub.s32 0, %v2479
        %v2482 = vsel %vm2480, %v2481, %v2479
        %v2483 = vclz %v2482
        %v2484 = vsub.s32 %v2483, 2
        %vm2485 = vcmp.gt.s32.totalorder 0, %v2484
        %v2486 = vsel %vm2485, 0, %v2484
        %v2487 = vsub.s32 32, %v2486
        %v2488 = vshll.u32 %v2479, %v2486
        %v2489 = vshrl.u32 %v2471, %v2487
        %v2490 = vor.u32 %v2488, %v2489
        %v2491 = vsub.s32 4294967266, %v2486
        %v2492 = vadd.s32 %v2491, 127
        %v2493 = vshll.u32 %v2492, 23
        %v2494 = vor.u32 4788187, %v2493
        %v2495 = vand.u32 2147483647, %v2494
        %v2497 = vcvt.s32.f32 %v2490
        %v2498 = vmul.f32 %v2497, %v2495
        %v2499 = vxor.u32 %v2498, 2147483648
        %v2500 = vsel %vm2379, %v2499, %v2498
        %v2501 = vsub.s32 4, %v2477
        %v2502 = vsel %vm2379, %v2501, %v2477
        %v2503 = vsel %vm2378, %v2376, %v2500
        %v2504 = vsel %vm2378, 0, %v2502
        %v2505 = vmul.f32 %v2503, %v2503
        %v2506 = vmul.f32 %v2505, -0.001358992
        %v2507 = vadd.f32 %v2506, 0.041655596
        %v2508 = vmul.f32 %v2505, %v2507
        %v2509 = vadd.f32 %v2508, -0.4999988
        %v2510 = vmul.f32 %v2505, %v2509
        %v2511 = vadd.f32 1.0, %v2510
        %v2512 = vmul.f32 %v2503, %v2503
        %v2513 = vmul.f32 %v2512, -0.00019511016
        %v2514 = vadd.f32 %v2513, 0.008332121
        %v2515 = vmul.f32 %v2512, %v2514
        %v2516 = vadd.f32 %v2515, -0.16666654
        %v2517 = vmul.f32 %v2512, %v2516
        %v2518 = vadd.f32 %v2517, 1.0
        %v2519 = vmul.f32 %v2518, %v2503
        %vm2520 = vweird.f32 %v2376
        %v2521 = vadd.s32 %v2504, 3
        %v2522 = vand.u32 %v2521, 3
        %vm2523 = vcmp.lt.s32.totalorder %v2522, 2
        %vm2524 = vcmp.eq.s32.totalorder %v2522, 0
        %v2525 = vxor.u32 %v2519, 2147483648
        %v2526 = vsel %vm2524, %v2511, %v2525
        %vm2527 = vcmp.eq.s32.totalorder %v2522, 2
        %v2528 = vxor.u32 %v2511, 2147483648
        %v2529 = vsel %vm2527, %v2528, %v2519
        %v2530 = vsel %vm2523, %v2526, %v2529
        %v2531 = vsel %vm2520, nan, %v2530
        %s2532 = scalar_lea.vmem %s681, 224 [#allocation3]
        %v2533 = vld [vmem:[%s2532] sm:$0xff]
        %v2534 = vld [vmem:[%s2532 + $0x8] sm:$0xff]
        %v2535 = vld [vmem:[%s2532 + $0x10] sm:$0xff]
        %v2536 = vld [vmem:[%s2532 + $0x18] sm:$0xff]
        %2538 = vst [vmem:[#allocation1] ss:$2 sm:$0xff] %v2531
        %v2539 = vld.sshfl [vmem:[#allocation1] sm:$0xff pattern:$0x75316420]
        %v2540 = vld.sshfl [vmem:[#allocation1 + $0x8] sm:$0xff pattern:$0x75316420]
        %v2542 = vsel %vm993, %v2533, 0
        %v2545 = vsel %vm993, %v2534, 0
        %v2548 = vsel %vm993, %v2535, 0
        %v2551 = vsel %vm993, %v2536, 0
        %v2553 = vsel %vm1006, %v2539, 0
        %v2555 = vsel %vm1006, %v2540, 0
        %2557 = vmatpush.msra.mxu0 0.0
        %2558 = vmatpush.msra.mxu0 0.0
        %2559 = vmatpush.msra.mxu0 0.0
        %2560 = vmatpush.msra.mxu0 0.0
        %2561 = vmatpush.msra.mxu0 0.0
        %2562 = vmatpush.msra.mxu0 0.0
        %2563 = vmatpush.msra.mxu0 0.0
        %2564 = vmatpush.msra.mxu0 0.0
        %2565 = vmatpush.msra.mxu0 0.0
        %2566 = vmatpush.msra.mxu0 0.0
        %2567 = vmatpush.msra.mxu0 0.0
        %2568 = vmatpush.msra.mxu0 0.0
        %2569 = vmatpush.msra.mxu0 0.0
        %2570 = vmatpush.msra.mxu0 0.0
        %2571 = vmatpush.msra.mxu0 0.0
        %2572 = vmatpush.msra.mxu0 %v2553
        %2573 = vmatmul.f32.gmra.mxu0 %v2542
        %v2574 = vpop.f32.mrf.mxu0
        %v2575 = vadd.f32 0.0, %v2574
        %2576 = vmatmul.f32.gmra.mxu0 %v2545
        %v2577 = vpop.f32.mrf.mxu0
        %v2578 = vadd.f32 0.0, %v2577
        %2579 = vmatmul.f32.gmra.mxu0 %v2548
        %v2580 = vpop.f32.mrf.mxu0
        %v2581 = vadd.f32 0.0, %v2580
        %2582 = vmatmul.f32.gmra.mxu0 %v2551
        %v2583 = vpop.f32.mrf.mxu0
        %v2584 = vadd.f32 0.0, %v2583
        %2585 = vdwg.mxu0
        %2586 = vmatpush.msra.mxu0 0.0
        %2587 = vmatpush.msra.mxu0 0.0
        %2588 = vmatpush.msra.mxu0 0.0
        %2589 = vmatpush.msra.mxu0 0.0
        %2590 = vmatpush.msra.mxu0 0.0
        %2591 = vmatpush.msra.mxu0 0.0
        %2592 = vmatpush.msra.mxu0 0.0
        %2593 = vmatpush.msra.mxu0 0.0
        %2594 = vmatpush.msra.mxu0 0.0
        %2595 = vmatpush.msra.mxu0 0.0
        %2596 = vmatpush.msra.mxu0 0.0
        %2597 = vmatpush.msra.mxu0 0.0
        %2598 = vmatpush.msra.mxu0 0.0
        %2599 = vmatpush.msra.mxu0 0.0
        %2600 = vmatpush.msra.mxu0 0.0
        %2601 = vmatpush.msra.mxu0 %v2555
        %2602 = vmatmul.f32.gmra.mxu0 %v2542
        %v2603 = vpop.f32.mrf.mxu0
        %v2604 = vadd.f32 0.0, %v2603
        %2605 = vmatmul.f32.gmra.mxu0 %v2545
        %v2606 = vpop.f32.mrf.mxu0
        %v2607 = vadd.f32 0.0, %v2606
        %2608 = vmatmul.f32.gmra.mxu0 %v2548
        %v2609 = vpop.f32.mrf.mxu0
        %v2610 = vadd.f32 0.0, %v2609
        %2611 = vmatmul.f32.gmra.mxu0 %v2551
        %v2612 = vpop.f32.mrf.mxu0
        %v2613 = vadd.f32 0.0, %v2612
        %2614 = vdwg.mxu0
        %v2615 = vadd.f32 %v2368, %v2575
        %v2616 = vadd.f32 %v2369, %v2604
        %v2617 = vadd.f32 %v2370, %v2578
        %v2618 = vadd.f32 %v2371, %v2607
        %v2619 = vadd.f32 %v2372, %v2581
        %v2620 = vadd.f32 %v2373, %v2610
        %v2621 = vadd.f32 %v2374, %v2584
        %v2622 = vadd.f32 %v2375, %v2613
        %v2623 = vand.u32 2147483647, %v2376
        %vm2624 = vcmp.le.f32.partialorder %v2623, 0.7853982
        %vm2625 = vcmp.lt.s32.totalorder %v2376, 0
        %v2626 = vand.u32 %v2376, 2139095040
        %v2627 = vshrl.u32 %v2626, 23
        %v2628 = vsub.s32 %v2627, 127
        %v2629 = vand.u32 2147483647, %v2376
        %v2630 = vand.u32 %v2629, 8388607
        %v2631 = vor.u32 %v2630, 8388608
        %v2632 = vsub.s32 0, %v2631
        %v2633 = vadd.s32 %v2628, 1
        %vm2634 = vcmp.gt.s32.totalorder %v2633, 0
        %v2635 = vsel %vm2634, %v2633, 0
        %v2636 = vshrl.u32 %v2635, 5
        %v2637 = vand.u32 %v2635, 31
        %v2638 = vsub.s32 32, %v2637
        %v2639 = vshrl.u32 683565275, %v2638
        %v2640 = vshll.u32 683565275, %v2637
        %v2641 = vshrl.u32 2475754826, %v2638
        %v2642 = vor.u32 %v2640, %v2641
        %v2643 = vshll.u32 2475754826, %v2637
        %v2644 = vshrl.u32 2131351028, %v2638
        %v2645 = vor.u32 %v2643, %v2644
        %v2646 = vshll.u32 2131351028, %v2637
        %v2647 = vshrl.u32 2102212464, %v2638
        %v2648 = vor.u32 %v2646, %v2647
        %v2649 = vshll.u32 2102212464, %v2637
        %v2650 = vshrl.u32 920167782, %v2638
        %v2651 = vor.u32 %v2649, %v2650
        %v2652 = vshll.u32 920167782, %v2637
        %v2653 = vshrl.u32 1326507024, %v2638
        %v2654 = vor.u32 %v2652, %v2653
        %vm2655 = vcmp.lt.s32.totalorder %v2636, 1
        %vm2656 = vcmp.lt.s32.totalorder %v2636, 2
        %vm2657 = vcmp.lt.s32.totalorder %v2636, 3
        %vm2658 = vcmp.lt.s32.totalorder %v2636, 4
        %v2659 = vsel %vm2655, %v2639, %v2642
        %v2660 = vsel %vm2658, %v2648, 2102212464
        %v2661 = vsel %vm2657, %v2645, %v2660
        %v2662 = vsel %vm2656, %v2659, %v2661
        %v2663 = vsel %vm2655, %v2642, %v2645
        %v2664 = vsel %vm2658, %v2651, 920167782
        %v2665 = vsel %vm2657, %v2648, %v2664
        %v2666 = vsel %vm2656, %v2663, %v2665
        %v2667 = vsel %vm2655, %v2645, %v2648
        %v2668 = vsel %vm2658, %v2654, 1326507024
        %v2669 = vsel %vm2657, %v2651, %v2668
        %v2670 = vsel %vm2656, %v2667, %v2669
        %v2671 = vshll.u32 %v2631, 8
        %v2672 = vand.u32 %v2671, 65535
        %v2673 = vshrl.u32 %v2671, 16
        %v2674 = vand.u32 %v2670, 65535
        %v2675 = vshrl.u32 %v2670, 16
        %v2676 = vmul.u32 %v2672, %v2674
        %v2677 = vmul.u32 %v2672, %v2675
        %v2678 = vmul.u32 %v2673, %v2674
        %v2679 = vmul.u32 %v2673, %v2675
        %v2680 = vshll.u32 %v2677, 16
        %v2681 = vshrl.u32 %v2677, 16
        %v2682 = vshll.u32 %v2678, 16
        %v2683 = vshrl.u32 %v2678, 16
        %vm2684 = vc.u32 %v2676, %v2680
        %v2685 = vsel %vm2684, 1, 0
        %v2686 = vadd.s32 %v2676, %v2680
        %v2687 = vadd.s32 %v2679, %v2685
        %vm2688 = vc.u32 %v2686, %v2682
        %v2689 = vsel %vm2688, 1, 0
        %v2690 = vadd.s32 %v2686, %v2682
        %v2691 = vadd.s32 %v2687, %v2689
        %v2692 = vadd.s32 %v2691, %v2681
        %v2693 = vadd.s32 %v2692, %v2683
        %v2694 = vand.u32 %v2671, 65535
        %v2695 = vshrl.u32 %v2671, 16
        %v2696 = vand.u32 %v2666, 65535
        %v2697 = vshrl.u32 %v2666, 16
        %v2698 = vmul.u32 %v2694, %v2696
        %v2699 = vmul.u32 %v2694, %v2697
        %v2700 = vmul.u32 %v2695, %v2696
        %v2701 = vmul.u32 %v2695, %v2697
        %v2702 = vshll.u32 %v2699, 16
        %v2703 = vshrl.u32 %v2699, 16
        %v2704 = vshll.u32 %v2700, 16
        %v2705 = vshrl.u32 %v2700, 16
        %vm2706 = vc.u32 %v2698, %v2702
        %v2707 = vsel %vm2706, 1, 0
        %v2708 = vadd.s32 %v2698, %v2702
        %v2709 = vadd.s32 %v2701, %v2707
        %vm2710 = vc.u32 %v2708, %v2704
        %v2711 = vsel %vm2710, 1, 0
        %v2712 = vadd.s32 %v2708, %v2704
        %v2713 = vadd.s32 %v2709, %v2711
        %v2714 = vadd.s32 %v2713, %v2703
        %v2715 = vadd.s32 %v2714, %v2705
        %v2716 = vmul.u32 %v2671, %v2662
        %v2717 = vadd.s32 %v2693, %v2712
        %vm2718 = vc.u32 %v2693, %v2712
        %v2719 = vadd.s32 %v2715, 1
        %v2720 = vsel %vm2718, %v2719, %v2715
        %v2721 = vadd.s32 %v2716, %v2720
        %v2722 = vadd.s32 %v2721, 536870912
        %v2723 = vshrl.u32 %v2722, 30
        %v2724 = vshll.u32 %v2723, 30
        %v2725 = vsub.s32 %v2721, %v2724
        %vm2726 = vcmp.lt.s32.totalorder %v2725, 0
        %v2727 = vsub.s32 0, %v2725
        %v2728 = vsel %vm2726, %v2727, %v2725
        %v2729 = vclz %v2728
        %v2730 = vsub.s32 %v2729, 2
        %vm2731 = vcmp.gt.s32.totalorder 0, %v2730
        %v2732 = vsel %vm2731, 0, %v2730
        %v2733 = vsub.s32 32, %v2732
        %v2734 = vshll.u32 %v2725, %v2732
        %v2735 = vshrl.u32 %v2717, %v2733
        %v2736 = vor.u32 %v2734, %v2735
        %v2737 = vsub.s32 4294967266, %v2732
        %v2738 = vadd.s32 %v2737, 127
        %v2739 = vshll.u32 %v2738, 23
        %v2740 = vor.u32 4788187, %v2739
        %v2741 = vand.u32 2147483647, %v2740
        %v2743 = vcvt.s32.f32 %v2736
        %v2744 = vmul.f32 %v2743, %v2741
        %v2745 = vxor.u32 %v2744, 2147483648
        %v2746 = vsel %vm2625, %v2745, %v2744
        %v2747 = vsub.s32 4, %v2723
        %v2748 = vsel %vm2625, %v2747, %v2723
        %v2749 = vsel %vm2624, %v2376, %v2746
        %v2750 = vsel %vm2624, 0, %v2748
        %v2751 = vmul.f32 %v2749, %v2749
        %v2752 = vmul.f32 %v2751, -0.001358992
        %v2753 = vadd.f32 %v2752, 0.041655596
        %v2754 = vmul.f32 %v2751, %v2753
        %v2755 = vadd.f32 %v2754, -0.4999988
        %v2756 = vmul.f32 %v2751, %v2755
        %v2757 = vadd.f32 1.0, %v2756
        %v2758 = vmul.f32 %v2749, %v2749
        %v2759 = vmul.f32 %v2758, -0.00019511016
        %v2760 = vadd.f32 %v2759, 0.008332121
        %v2761 = vmul.f32 %v2758, %v2760
        %v2762 = vadd.f32 %v2761, -0.16666654
        %v2763 = vmul.f32 %v2758, %v2762
        %v2764 = vadd.f32 %v2763, 1.0
        %v2765 = vmul.f32 %v2764, %v2749
        %vm2766 = vweird.f32 %v2376
        %v2767 = vand.u32 %v2750, 3
        %vm2768 = vcmp.lt.s32.totalorder %v2767, 2
        %vm2769 = vcmp.eq.s32.totalorder %v2767, 0
        %v2770 = vxor.u32 %v2765, 2147483648
        %v2771 = vsel %vm2769, %v2757, %v2770
        %vm2772 = vcmp.eq.s32.totalorder %v2767, 2
        %v2773 = vxor.u32 %v2757, 2147483648
        %v2774 = vsel %vm2772, %v2773, %v2765
        %v2775 = vsel %vm2768, %v2771, %v2774
        %v2776 = vsel %vm2766, nan, %v2775
        %s2777 = scalar_lea.vmem %s681, 256 [#allocation3]
        %v2778 = vld [vmem:[%s2777] sm:$0xff]
        %v2779 = vld [vmem:[%s2777 + $0x8] sm:$0xff]
        %v2780 = vld [vmem:[%s2777 + $0x10] sm:$0xff]
        %v2781 = vld [vmem:[%s2777 + $0x18] sm:$0xff]
        %2783 = vst [vmem:[#allocation1] ss:$2 sm:$0xff] %v2776
        %v2784 = vld.sshfl [vmem:[#allocation1] sm:$0xff pattern:$0x75316420]
        %v2785 = vld.sshfl [vmem:[#allocation1 + $0x8] sm:$0xff pattern:$0x75316420]
        %v2787 = vsel %vm993, %v2778, 0
        %v2790 = vsel %vm993, %v2779, 0
        %v2793 = vsel %vm993, %v2780, 0
        %v2796 = vsel %vm993, %v2781, 0
        %v2798 = vsel %vm1006, %v2784, 0
        %v2800 = vsel %vm1006, %v2785, 0
        %2802 = vmatpush.msra.mxu0 0.0
        %2803 = vmatpush.msra.mxu0 0.0
        %2804 = vmatpush.msra.mxu0 0.0
        %2805 = vmatpush.msra.mxu0 0.0
        %2806 = vmatpush.msra.mxu0 0.0
        %2807 = vmatpush.msra.mxu0 0.0
        %2808 = vmatpush.msra.mxu0 0.0
        %2809 = vmatpush.msra.mxu0 0.0
        %2810 = vmatpush.msra.mxu0 0.0
        %2811 = vmatpush.msra.mxu0 0.0
        %2812 = vmatpush.msra.mxu0 0.0
        %2813 = vmatpush.msra.mxu0 0.0
        %2814 = vmatpush.msra.mxu0 0.0
        %2815 = vmatpush.msra.mxu0 0.0
        %2816 = vmatpush.msra.mxu0 0.0
        %2817 = vmatpush.msra.mxu0 %v2798
        %2818 = vmatmul.f32.gmra.mxu0 %v2787
        %v2819 = vpop.f32.mrf.mxu0
        %v2820 = vadd.f32 0.0, %v2819
        %2821 = vmatmul.f32.gmra.mxu0 %v2790
        %v2822 = vpop.f32.mrf.mxu0
        %v2823 = vadd.f32 0.0, %v2822
        %2824 = vmatmul.f32.gmra.mxu0 %v2793
        %v2825 = vpop.f32.mrf.mxu0
        %v2826 = vadd.f32 0.0, %v2825
        %2827 = vmatmul.f32.gmra.mxu0 %v2796
        %v2828 = vpop.f32.mrf.mxu0
        %v2829 = vadd.f32 0.0, %v2828
        %2830 = vdwg.mxu0
        %2831 = vmatpush.msra.mxu0 0.0
        %2832 = vmatpush.msra.mxu0 0.0
        %2833 = vmatpush.msra.mxu0 0.0
        %2834 = vmatpush.msra.mxu0 0.0
        %2835 = vmatpush.msra.mxu0 0.0
        %2836 = vmatpush.msra.mxu0 0.0
        %2837 = vmatpush.msra.mxu0 0.0
        %2838 = vmatpush.msra.mxu0 0.0
        %2839 = vmatpush.msra.mxu0 0.0
        %2840 = vmatpush.msra.mxu0 0.0
        %2841 = vmatpush.msra.mxu0 0.0
        %2842 = vmatpush.msra.mxu0 0.0
        %2843 = vmatpush.msra.mxu0 0.0
        %2844 = vmatpush.msra.mxu0 0.0
        %2845 = vmatpush.msra.mxu0 0.0
        %2846 = vmatpush.msra.mxu0 %v2800
        %2847 = vmatmul.f32.gmra.mxu0 %v2787
        %v2848 = vpop.f32.mrf.mxu0
        %v2849 = vadd.f32 0.0, %v2848
        %2850 = vmatmul.f32.gmra.mxu0 %v2790
        %v2851 = vpop.f32.mrf.mxu0
        %v2852 = vadd.f32 0.0, %v2851
        %2853 = vmatmul.f32.gmra.mxu0 %v2793
        %v2854 = vpop.f32.mrf.mxu0
        %v2855 = vadd.f32 0.0, %v2854
        %2856 = vmatmul.f32.gmra.mxu0 %v2796
        %v2857 = vpop.f32.mrf.mxu0
        %v2858 = vadd.f32 0.0, %v2857
        %2859 = vdwg.mxu0
        %v2860 = vadd.f32 %v2615, %v2820
        %v2861 = vadd.f32 %v2616, %v2849
        %v2862 = vadd.f32 %v2617, %v2823
        %v2863 = vadd.f32 %v2618, %v2852
        %v2864 = vadd.f32 %v2619, %v2826
        %v2865 = vadd.f32 %v2620, %v2855
        %v2866 = vadd.f32 %v2621, %v2829
        %v2867 = vadd.f32 %v2622, %v2858
        %v2868 = vld [vmem:[%s3] sm:$0xff]
        %v2869 = vld [vmem:[%s3 + $0x8] sm:$0xff]
        %v2870 = vld [vmem:[%s3 + $0x10] sm:$0xff]
        %v2871 = vld [vmem:[%s3 + $0x18] sm:$0xff]
        %2873 = vset.pattern.permute.xlu0 0
        %2874 = vperm.xlu0 %2873, %v2868
        %v2875 = vpop.permute.xlu0 %2874
        %2878 = vset.pattern.permute.xlu0 0
        %2879 = vperm.xlu0 %2878, %v2869
        %v2880 = vpop.permute.xlu0 %2879
        %2883 = vset.pattern.permute.xlu0 0
        %2884 = vperm.xlu0 %2883, %v2870
        %v2885 = vpop.permute.xlu0 %2884
        %2888 = vset.pattern.permute.xlu0 0
        %2889 = vperm.xlu0 %2888, %v2871
        %v2890 = vpop.permute.xlu0 %2889
        %v2892 = vadd.f32 %v2860, %v2875
        %v2893 = vadd.f32 %v2861, %v2875
        %v2894 = vadd.f32 %v2862, %v2880
        %v2895 = vadd.f32 %v2863, %v2880
        %v2896 = vadd.f32 %v2864, %v2885
        %v2897 = vadd.f32 %v2865, %v2885
        %v2898 = vadd.f32 %v2866, %v2890
        %v2899 = vadd.f32 %v2867, %v2890
        %v2900 = vmul.f32 %v2892, 0.2
        %v2901 = vmul.f32 %v2893, 0.2
        %v2902 = vmul.f32 %v2894, 0.2
        %v2903 = vmul.f32 %v2895, 0.2
        %v2904 = vmul.f32 %v2896, 0.2
        %v2905 = vmul.f32 %v2897, 0.2
        %v2906 = vmul.f32 %v2898, 0.2
        %v2907 = vmul.f32 %v2899, 0.2
        %v2908 = vmax.f32 %v2892, %v2900
        %v2909 = vmax.f32 %v2893, %v2901
        %v2910 = vmax.f32 %v2894, %v2902
        %v2911 = vmax.f32 %v2895, %v2903
        %v2912 = vmax.f32 %v2896, %v2904
        %v2913 = vmax.f32 %v2897, %v2905
        %v2914 = vmax.f32 %v2898, %v2906
        %v2915 = vmax.f32 %v2899, %v2907
        %v2916 = vld [vmem:[%s793] sm:$0xff]
        %v2917 = vld [vmem:[%s793 + $0x8] sm:$0xff]
        %v2918 = vld [vmem:[%s793 + $0x10] sm:$0xff]
        %v2919 = vld [vmem:[%s793 + $0x18] sm:$0xff]
        %v2920 = vld [vmem:[%s5] sm:$0xff]
        %v2921 = vld [vmem:[%s5 + $0x8] sm:$0xff]
        %v2922 = vld [vmem:[%s5 + $0x10] sm:$0xff]
        %v2923 = vld [vmem:[%s5 + $0x18] sm:$0xff]
        %2925 = vset.pattern.permute.xlu0 0
        %2926 = vperm.xlu0 %2925, %v2920
        %v2927 = vpop.permute.xlu0 %2926
        %2930 = vset.pattern.permute.xlu0 0
        %2931 = vperm.xlu0 %2930, %v2921
        %v2932 = vpop.permute.xlu0 %2931
        %2935 = vset.pattern.permute.xlu0 0
        %2936 = vperm.xlu0 %2935, %v2922
        %v2937 = vpop.permute.xlu0 %2936
        %2940 = vset.pattern.permute.xlu0 0
        %2941 = vperm.xlu0 %2940, %v2923
        %v2942 = vpop.permute.xlu0 %2941
        %vm2944 = vcmask 261120
        %v2946 = vsel %vm2944, %v2916, 0
        %v2949 = vsel %vm2944, %v2917, 0
        %v2952 = vsel %vm2944, %v2918, 0
        %v2955 = vsel %vm2944, %v2919, 0
        %2957 = vmatpush.msra.mxu0 0.0
        %2958 = vmatpush.msra.mxu0 0.0
        %2959 = vmatpush.msra.mxu0 0.0
        %2960 = vmatpush.msra.mxu0 0.0
        %2961 = vmatpush.msra.mxu0 0.0
        %2962 = vmatpush.msra.mxu0 0.0
        %2963 = vmatpush.msra.mxu0 0.0
        %2964 = vmatpush.msra.mxu0 0.0
        %2965 = vmatpush.msra.mxu0 0.0
        %2966 = vmatpush.msra.mxu0 0.0
        %2967 = vmatpush.msra.mxu0 0.0
        %2968 = vmatpush.msra.mxu0 0.0
        %2969 = vmatpush.msra.mxu0 %v2914
        %2970 = vmatpush.msra.mxu0 %v2912
        %2971 = vmatpush.msra.mxu0 %v2910
        %2972 = vmatpush.msra.mxu0 %v2908
        %2973 = vmatmul.f32.gmra.mxu0 %v2946
        %v2974 = vpop.f32.mrf.mxu0
        %v2975 = vadd.f32 %v2927, %v2974
        %2976 = vmatmul.f32.gmra.mxu0 %v2949
        %v2977 = vpop.f32.mrf.mxu0
        %v2978 = vadd.f32 %v2932, %v2977
        %2979 = vmatmul.f32.gmra.mxu0 %v2952
        %v2980 = vpop.f32.mrf.mxu0
        %v2981 = vadd.f32 %v2937, %v2980
        %2982 = vmatmul.f32.gmra.mxu0 %v2955
        %v2983 = vpop.f32.mrf.mxu0
        %v2984 = vadd.f32 %v2942, %v2983
        %2985 = vdwg.mxu0
        %2986 = vmatpush.msra.mxu0 0.0
        %2987 = vmatpush.msra.mxu0 0.0
        %2988 = vmatpush.msra.mxu0 0.0
        %2989 = vmatpush.msra.mxu0 0.0
        %2990 = vmatpush.msra.mxu0 0.0
        %2991 = vmatpush.msra.mxu0 0.0
        %2992 = vmatpush.msra.mxu0 0.0
        %2993 = vmatpush.msra.mxu0 0.0
        %2994 = vmatpush.msra.mxu0 0.0
        %2995 = vmatpush.msra.mxu0 0.0
        %2996 = vmatpush.msra.mxu0 0.0
        %2997 = vmatpush.msra.mxu0 0.0
        %2998 = vmatpush.msra.mxu0 %v2915
        %2999 = vmatpush.msra.mxu0 %v2913
        %3000 = vmatpush.msra.mxu0 %v2911
        %3001 = vmatpush.msra.mxu0 %v2909
        %3002 = vmatmul.f32.gmra.mxu0 %v2946
        %v3003 = vpop.f32.mrf.mxu0
        %v3004 = vadd.f32 %v2927, %v3003
        %3005 = vmatmul.f32.gmra.mxu0 %v2949
        %v3006 = vpop.f32.mrf.mxu0
        %v3007 = vadd.f32 %v2932, %v3006
        %3008 = vmatmul.f32.gmra.mxu0 %v2952
        %v3009 = vpop.f32.mrf.mxu0
        %v3010 = vadd.f32 %v2937, %v3009
        %3011 = vmatmul.f32.gmra.mxu0 %v2955
        %v3012 = vpop.f32.mrf.mxu0
        %v3013 = vadd.f32 %v2942, %v3012
        %3014 = vdwg.mxu0
        %v3015 = vmul.f32 %v2975, 0.2
        %v3016 = vmul.f32 %v3004, 0.2
        %v3017 = vmul.f32 %v2978, 0.2
        %v3018 = vmul.f32 %v3007, 0.2
        %v3019 = vmul.f32 %v2981, 0.2
        %v3020 = vmul.f32 %v3010, 0.2
        %v3021 = vmul.f32 %v2984, 0.2
        %v3022 = vmul.f32 %v3013, 0.2
        %v3023 = vmax.f32 %v2975, %v3015
        %v3024 = vmax.f32 %v3004, %v3016
        %v3025 = vmax.f32 %v2978, %v3017
        %v3026 = vmax.f32 %v3007, %v3018
        %v3027 = vmax.f32 %v2981, %v3019
        %v3028 = vmax.f32 %v3010, %v3020
        %v3029 = vmax.f32 %v2984, %v3021
        %v3030 = vmax.f32 %v3013, %v3022
        %v3031 = vld [vmem:[%s9] sm:$0x1]
        %v3032 = vld [vmem:[#allocation2] sm:$0x1]
        %3034 = vset.pattern.permute.xlu0 0
        %3035 = vperm.xlu0 %3034, %v3032
        %v3036 = vpop.permute.xlu0 %3035
        %v3038 = vperm.slane %v3036, 0
        %v3040 = vsel %vm2944, %v3031, 0
        %3042 = vmatpush.msra.mxu0 0.0
        %3043 = vmatpush.msra.mxu0 0.0
        %3044 = vmatpush.msra.mxu0 0.0
        %3045 = vmatpush.msra.mxu0 0.0
        %3046 = vmatpush.msra.mxu0 0.0
        %3047 = vmatpush.msra.mxu0 0.0
        %3048 = vmatpush.msra.mxu0 0.0
        %3049 = vmatpush.msra.mxu0 0.0
        %3050 = vmatpush.msra.mxu0 0.0
        %3051 = vmatpush.msra.mxu0 0.0
        %3052 = vmatpush.msra.mxu0 0.0
        %3053 = vmatpush.msra.mxu0 0.0
        %3054 = vmatpush.msra.mxu0 %v3029
        %3055 = vmatpush.msra.mxu0 %v3027
        %3056 = vmatpush.msra.mxu0 %v3025
        %3057 = vmatpush.msra.mxu0 %v3023
        %3058 = vmatmul.f32.gmra.mxu0 %v3040
        %v3059 = vpop.f32.mrf.mxu0
        %v3060 = vadd.f32 %v3038, %v3059
        %3061 = vdwg.mxu0
        %3062 = vmatpush.msra.mxu0 0.0
        %3063 = vmatpush.msra.mxu0 0.0
        %3064 = vmatpush.msra.mxu0 0.0
        %3065 = vmatpush.msra.mxu0 0.0
        %3066 = vmatpush.msra.mxu0 0.0
        %3067 = vmatpush.msra.mxu0 0.0
        %3068 = vmatpush.msra.mxu0 0.0
        %3069 = vmatpush.msra.mxu0 0.0
        %3070 = vmatpush.msra.mxu0 0.0
        %3071 = vmatpush.msra.mxu0 0.0
        %3072 = vmatpush.msra.mxu0 0.0
        %3073 = vmatpush.msra.mxu0 0.0
        %3074 = vmatpush.msra.mxu0 %v3030
        %3075 = vmatpush.msra.mxu0 %v3028
        %3076 = vmatpush.msra.mxu0 %v3026
        %3077 = vmatpush.msra.mxu0 %v3024
        %3078 = vmatmul.f32.gmra.mxu0 %v3040
        %v3079 = vpop.f32.mrf.mxu0
        %v3080 = vadd.f32 %v3038, %v3079
        %3081 = vdwg.mxu0
        %v3084 = vrot.slane %v3080, 7
        %vm3085 = vcmask 1040384
        %v3086 = vsel %vm3085, %v3060, %v3084
        %v3088 = vlaneseq
        %vm3089 = vcmp.ge.s32.totalorder %v3088, 0
        %vm3090 = vcmp.lt.s32.totalorder %v3088, 256
        %vm3091 = vmand %vm3089, %vm3090
        %3092 = vst.msk [vmem:[%s811] sm:$0x3] %vm3091, %v3086
        %v3093 = vld [vmem:[%s798] sm:$0xff]
        %v3094 = vld [vmem:[%s798 + $0x8] sm:$0xff]
        %v3095 = vld [vmem:[%s798 + $0x10] sm:$0xff]
        %v3096 = vld [vmem:[%s798 + $0x18] sm:$0xff]
        %v3097 = vld [vmem:[%s803] sm:$0xff]
        %v3098 = vld [vmem:[%s803 + $0x8] sm:$0xff]
        %v3099 = vld [vmem:[%s803 + $0x10] sm:$0xff]
        %v3100 = vld [vmem:[%s803 + $0x18] sm:$0xff]
        %3102 = vst [vmem:[#allocation1] ss:$2 sm:$0xff] %v824
        %v3103 = vld.sshfl [vmem:[#allocation1] sm:$0xff pattern:$0x75316420]
        %v3104 = vld.sshfl [vmem:[#allocation1 + $0x8] sm:$0xff pattern:$0x75316420]
        %v3106 = vsel %vm993, %v3097, 0
        %v3109 = vsel %vm993, %v3098, 0
        %v3112 = vsel %vm993, %v3099, 0
        %v3115 = vsel %vm993, %v3100, 0
        %v3117 = vsel %vm1006, %v3103, 0
        %v3119 = vsel %vm1006, %v3104, 0
        %3121 = vmatpush.msra.mxu0 0.0
        %3122 = vmatpush.msra.mxu0 0.0
        %3123 = vmatpush.msra.mxu0 0.0
        %3124 = vmatpush.msra.mxu0 0.0
        %3125 = vmatpush.msra.mxu0 0.0
        %3126 = vmatpush.msra.mxu0 0.0
        %3127 = vmatpush.msra.mxu0 0.0
        %3128 = vmatpush.msra.mxu0 0.0
        %3129 = vmatpush.msra.mxu0 0.0
        %3130 = vmatpush.msra.mxu0 0.0
        %3131 = vmatpush.msra.mxu0 0.0
        %3132 = vmatpush.msra.mxu0 0.0
        %3133 = vmatpush.msra.mxu0 0.0
        %3134 = vmatpush.msra.mxu0 0.0
        %3135 = vmatpush.msra.mxu0 0.0
        %3136 = vmatpush.msra.mxu0 %v3117
        %3137 = vmatmul.f32.gmra.mxu0 %v3106
        %v3138 = vpop.f32.mrf.mxu0
        %v3139 = vadd.f32 0.0, %v3138
        %3140 = vmatmul.f32.gmra.mxu0 %v3109
        %v3141 = vpop.f32.mrf.mxu0
        %v3142 = vadd.f32 0.0, %v3141
        %3143 = vmatmul.f32.gmra.mxu0 %v3112
        %v3144 = vpop.f32.mrf.mxu0
        %v3145 = vadd.f32 0.0, %v3144
        %3146 = vmatmul.f32.gmra.mxu0 %v3115
        %v3147 = vpop.f32.mrf.mxu0
        %v3148 = vadd.f32 0.0, %v3147
        %3149 = vdwg.mxu0
        %3150 = vmatpush.msra.mxu0 0.0
        %3151 = vmatpush.msra.mxu0 0.0
        %3152 = vmatpush.msra.mxu0 0.0
        %3153 = vmatpush.msra.mxu0 0.0
        %3154 = vmatpush.msra.mxu0 0.0
        %3155 = vmatpush.msra.mxu0 0.0
        %3156 = vmatpush.msra.mxu0 0.0
        %3157 = vmatpush.msra.mxu0 0.0
        %3158 = vmatpush.msra.mxu0 0.0
        %3159 = vmatpush.msra.mxu0 0.0
        %3160 = vmatpush.msra.mxu0 0.0
        %3161 = vmatpush.msra.mxu0 0.0
        %3162 = vmatpush.msra.mxu0 0.0
        %3163 = vmatpush.msra.mxu0 0.0
        %3164 = vmatpush.msra.mxu0 0.0
        %3165 = vmatpush.msra.mxu0 %v3119
        %3166 = vmatmul.f32.gmra.mxu0 %v3106
        %v3167 = vpop.f32.mrf.mxu0
        %v3168 = vadd.f32 0.0, %v3167
        %3169 = vmatmul.f32.gmra.mxu0 %v3109
        %v3170 = vpop.f32.mrf.mxu0
        %v3171 = vadd.f32 0.0, %v3170
        %3172 = vmatmul.f32.gmra.mxu0 %v3112
        %v3173 = vpop.f32.mrf.mxu0
        %v3174 = vadd.f32 0.0, %v3173
        %3175 = vmatmul.f32.gmra.mxu0 %v3115
        %v3176 = vpop.f32.mrf.mxu0
        %v3177 = vadd.f32 0.0, %v3176
        %3178 = vdwg.mxu0
        %v3180 = vsel %vm2944, %v3093, 0
        %v3183 = vsel %vm2944, %v3094, 0
        %v3186 = vsel %vm2944, %v3095, 0
        %v3189 = vsel %vm2944, %v3096, 0
        %3191 = vmatpush.msra.mxu0 0.0
        %3192 = vmatpush.msra.mxu0 0.0
        %3193 = vmatpush.msra.mxu0 0.0
        %3194 = vmatpush.msra.mxu0 0.0
        %3195 = vmatpush.msra.mxu0 0.0
        %3196 = vmatpush.msra.mxu0 0.0
        %3197 = vmatpush.msra.mxu0 0.0
        %3198 = vmatpush.msra.mxu0 0.0
        %3199 = vmatpush.msra.mxu0 0.0
        %3200 = vmatpush.msra.mxu0 0.0
        %3201 = vmatpush.msra.mxu0 0.0
        %3202 = vmatpush.msra.mxu0 0.0
        %3203 = vmatpush.msra.mxu0 %v3029
        %3204 = vmatpush.msra.mxu0 %v3027
        %3205 = vmatpush.msra.mxu0 %v3025
        %3206 = vmatpush.msra.mxu0 %v3023
        %3207 = vmatmul.f32.gmra.mxu0 %v3180
        %v3208 = vpop.f32.mrf.mxu0
        %v3209 = vadd.f32 %v3139, %v3208
        %3210 = vmatmul.f32.gmra.mxu0 %v3183
        %v3211 = vpop.f32.mrf.mxu0
        %v3212 = vadd.f32 %v3142, %v3211
        %3213 = vmatmul.f32.gmra.mxu0 %v3186
        %v3214 = vpop.f32.mrf.mxu0
        %v3215 = vadd.f32 %v3145, %v3214
        %3216 = vmatmul.f32.gmra.mxu0 %v3189
        %v3217 = vpop.f32.mrf.mxu0
        %v3218 = vadd.f32 %v3148, %v3217
        %3219 = vdwg.mxu0
        %3220 = vmatpush.msra.mxu0 0.0
        %3221 = vmatpush.msra.mxu0 0.0
        %3222 = vmatpush.msra.mxu0 0.0
        %3223 = vmatpush.msra.mxu0 0.0
        %3224 = vmatpush.msra.mxu0 0.0
        %3225 = vmatpush.msra.mxu0 0.0
        %3226 = vmatpush.msra.mxu0 0.0
        %3227 = vmatpush.msra.mxu0 0.0
        %3228 = vmatpush.msra.mxu0 0.0
        %3229 = vmatpush.msra.mxu0 0.0
        %3230 = vmatpush.msra.mxu0 0.0
        %3231 = vmatpush.msra.mxu0 0.0
        %3232 = vmatpush.msra.mxu0 %v3030
        %3233 = vmatpush.msra.mxu0 %v3028
        %3234 = vmatpush.msra.mxu0 %v3026
        %3235 = vmatpush.msra.mxu0 %v3024
        %3236 = vmatmul.f32.gmra.mxu0 %v3180
        %v3237 = vpop.f32.mrf.mxu0
        %v3238 = vadd.f32 %v3168, %v3237
        %3239 = vmatmul.f32.gmra.mxu0 %v3183
        %v3240 = vpop.f32.mrf.mxu0
        %v3241 = vadd.f32 %v3171, %v3240
        %3242 = vmatmul.f32.gmra.mxu0 %v3186
        %v3243 = vpop.f32.mrf.mxu0
        %v3244 = vadd.f32 %v3174, %v3243
        %3245 = vmatmul.f32.gmra.mxu0 %v3189
        %v3246 = vpop.f32.mrf.mxu0
        %v3247 = vadd.f32 %v3177, %v3246
        %3248 = vdwg.mxu0
        %v3249 = vld [vmem:[%s8] sm:$0xff]
        %v3250 = vld [vmem:[%s8 + $0x8] sm:$0xff]
        %v3251 = vld [vmem:[%s8 + $0x10] sm:$0xff]
        %v3252 = vld [vmem:[%s8 + $0x18] sm:$0xff]
        %3254 = vset.pattern.permute.xlu0 0
        %3255 = vperm.xlu0 %3254, %v3249
        %v3256 = vpop.permute.xlu0 %3255
        %3259 = vset.pattern.permute.xlu0 0
        %3260 = vperm.xlu0 %3259, %v3250
        %v3261 = vpop.permute.xlu0 %3260
        %3264 = vset.pattern.permute.xlu0 0
        %3265 = vperm.xlu0 %3264, %v3251
        %v3266 = vpop.permute.xlu0 %3265
        %3269 = vset.pattern.permute.xlu0 0
        %3270 = vperm.xlu0 %3269, %v3252
        %v3271 = vpop.permute.xlu0 %3270
        %v3273 = vadd.f32 %v3209, %v3256
        %v3274 = vadd.f32 %v3238, %v3256
        %v3275 = vadd.f32 %v3212, %v3261
        %v3276 = vadd.f32 %v3241, %v3261
        %v3277 = vadd.f32 %v3215, %v3266
        %v3278 = vadd.f32 %v3244, %v3266
        %v3279 = vadd.f32 %v3218, %v3271
        %v3280 = vadd.f32 %v3247, %v3271
        %v3281 = vmul.f32 %v3273, 0.2
        %v3282 = vmul.f32 %v3274, 0.2
        %v3283 = vmul.f32 %v3275, 0.2
        %v3284 = vmul.f32 %v3276, 0.2
        %v3285 = vmul.f32 %v3277, 0.2
        %v3286 = vmul.f32 %v3278, 0.2
        %v3287 = vmul.f32 %v3279, 0.2
        %v3288 = vmul.f32 %v3280, 0.2
        %v3289 = vmax.f32 %v3273, %v3281
        %v3290 = vmax.f32 %v3274, %v3282
        %v3291 = vmax.f32 %v3275, %v3283
        %v3292 = vmax.f32 %v3276, %v3284
        %v3293 = vmax.f32 %v3277, %v3285
        %v3294 = vmax.f32 %v3278, %v3286
        %v3295 = vmax.f32 %v3279, %v3287
        %v3296 = vmax.f32 %v3280, %v3288
        %v3297 = vld [vmem:[%s11] sm:$0x7]
        %v3298 = vld [vmem:[%s12] sm:$0x7]
        %3300 = vset.pattern.permute.xlu0 0
        %3301 = vperm.xlu0 %3300, %v3298
        %v3302 = vpop.permute.xlu0 %3301
        %v3305 = vsel %vm2944, %v3297, 0
        %3307 = vmatpush.msra.mxu0 0.0
        %3308 = vmatpush.msra.mxu0 0.0
        %3309 = vmatpush.msra.mxu0 0.0
        %3310 = vmatpush.msra.mxu0 0.0
        %3311 = vmatpush.msra.mxu0 0.0
        %3312 = vmatpush.msra.mxu0 0.0
        %3313 = vmatpush.msra.mxu0 0.0
        %3314 = vmatpush.msra.mxu0 0.0
        %3315 = vmatpush.msra.mxu0 0.0
        %3316 = vmatpush.msra.mxu0 0.0
        %3317 = vmatpush.msra.mxu0 0.0
        %3318 = vmatpush.msra.mxu0 0.0
        %3319 = vmatpush.msra.mxu0 %v3295
        %3320 = vmatpush.msra.mxu0 %v3293
        %3321 = vmatpush.msra.mxu0 %v3291
        %3322 = vmatpush.msra.mxu0 %v3289
        %3323 = vmatmul.f32.gmra.mxu0 %v3305
        %v3324 = vpop.f32.mrf.mxu0
        %v3325 = vadd.f32 %v3302, %v3324
        %3326 = vdwg.mxu0
        %3327 = vmatpush.msra.mxu0 0.0
        %3328 = vmatpush.msra.mxu0 0.0
        %3329 = vmatpush.msra.mxu0 0.0
        %3330 = vmatpush.msra.mxu0 0.0
        %3331 = vmatpush.msra.mxu0 0.0
        %3332 = vmatpush.msra.mxu0 0.0
        %3333 = vmatpush.msra.mxu0 0.0
        %3334 = vmatpush.msra.mxu0 0.0
        %3335 = vmatpush.msra.mxu0 0.0
        %3336 = vmatpush.msra.mxu0 0.0
        %3337 = vmatpush.msra.mxu0 0.0
        %3338 = vmatpush.msra.mxu0 0.0
        %3339 = vmatpush.msra.mxu0 %v3296
        %3340 = vmatpush.msra.mxu0 %v3294
        %3341 = vmatpush.msra.mxu0 %v3292
        %3342 = vmatpush.msra.mxu0 %v3290
        %3343 = vmatmul.f32.gmra.mxu0 %v3305
        %v3344 = vpop.f32.mrf.mxu0
        %v3345 = vadd.f32 %v3302, %v3344
        %3346 = vdwg.mxu0
        %v3349 = vrot.slane %v3345, 4
        %vm3350 = vcmask 1043456
        %v3351 = vsel %vm3350, %v3325, %v3349
        %3353 = vst [vmem:[%s821] sm:$0x77] %v3351
        %s3354 = smul.u32 2, %s33
        %p3355 = scmp.lt.s32.totalorder %s32, 1
        %s3356 = scalar_select %p3355, %s32, 1
        %p3357 = scmp.lt.s32.totalorder %s3354, 1
        %s3358 = scalar_select %p3357, %s3354, 1
        %s3359 = smul.addr %s3356, 2
        %s3360 = sadd.s32 %s3358, %s3359
        %s3361 = scalar_lea.vmem %s13, %s3360
        %s3362 = smul.u32 2, %s33
        %p3363 = scmp.lt.s32.totalorder %s32, 1
        %s3364 = scalar_select %p3363, %s32, 1
        %p3365 = scmp.lt.s32.totalorder %s3362, 1
        %s3366 = scalar_select %p3365, %s3362, 1
        %s3367 = smul.addr %s3364, 2
        %s3368 = sadd.s32 %s3366, %s3367
        %s3369 = smul.addr %s3368, 4
        %s3370 = scalar_lea.vmem %s14, %s3369
        // Predicated region
        $region111: #{_lambda_.3} parent=105 // pred_check
          %p3371 = pneg %p367
        $region112: #{_lambda_.3} parent=105 // pred_check_branch
          %3373 = sbr.rel (%p3371) target = $region114
        $region113: #{_lambda_.3} parent=105 // pred_region
          %s3374 = smul.u32 2, %s33
        $region114: #{_lambda_.3} parent=105 // pred_fallthru
          _
        // Predicated region
        $region115: #{_lambda_.3} parent=105 // pred_check
          %p3375 = pneg %p395
        $region116: #{_lambda_.3} parent=105 // pred_check_branch
          %3377 = sbr.rel (%p3375) target = $region118
        $region117: #{_lambda_.3} parent=105 // pred_region
          %s3378 = smul.u32 2, %s33
        $region118: #{_lambda_.3} parent=105 // pred_fallthru
          _
      $region106: #{_lambda_.3} parent=5 // pred_fallthru
        _
      %p3379 = scmp.le.s32.totalorder 2, %s23
      // Predicated region
      $region119: #{_lambda_.3} parent=5 // pred_check
        %p3380 = pneg %p3379
      $region120: #{_lambda_.3} parent=5 // pred_check_branch
        %3382 = sbr.rel (%p3380) target = $region122
      $region121: #{_lambda_.3} parent=5 // pred_region
        %s3383 = ssub.s32 %s23, 2
        // Predicated region
        $region123: #{_lambda_.3} parent=121 // pred_check
          %p3384 = pneg %p373
        $region124: #{_lambda_.3} parent=121 // pred_check_branch
          %3386 = sbr.rel (%p3384) target = $region126
        $region125: #{_lambda_.3} parent=121 // pred_region
          %s3387 = smul.u32 2, %s35
          %p3388 = scmp.lt.s32.totalorder %s34, 1
          %s3389 = scalar_select %p3388, %s34, 1
          %p3390 = scmp.lt.s32.totalorder %s3387, 1
          %s3391 = scalar_select %p3390, %s3387, 1
          %s3392 = smul.addr %s3389, 2
          %s3393 = sadd.s32 %s3391, %s3392
          %s3394 = scalar_lea.vmem %s13, %s3393
        $region126: #{_lambda_.3} parent=121 // pred_fallthru
          _
        // Predicated region
        $region127: #{_lambda_.3} parent=121 // pred_check
          %p3395 = pneg %p401
        $region128: #{_lambda_.3} parent=121 // pred_check_branch
          %3397 = sbr.rel (%p3395) target = $region130
        $region129: #{_lambda_.3} parent=121 // pred_region
          %s3398 = smul.u32 2, %s35
          %p3399 = scmp.lt.s32.totalorder %s34, 1
          %s3400 = scalar_select %p3399, %s34, 1
          %p3401 = scmp.lt.s32.totalorder %s3398, 1
          %s3402 = scalar_select %p3401, %s3398, 1
          %s3403 = smul.addr %s3400, 2
          %s3404 = sadd.s32 %s3402, %s3403
          %s3405 = smul.addr %s3404, 4
          %s3406 = scalar_lea.vmem %s14, %s3405
        $region130: #{_lambda_.3} parent=121 // pred_fallthru
          _
      $region122: #{_lambda_.3} parent=5 // pred_fallthru
        _
    $region6: #{_lambda_.3} parent=1 // loop_footer
      %s27 = sadd.s32 1, %s23
    $region7: #{_lambda_.3} parent=1 // loop_footer_branch
      %22 = sbr.rel target = $region3
    $region8: #{_lambda_.3} parent=1 // loop_exit
      _

</llo_original>
